<compile_context>
chip_gen: v7x
topology: tpu7x:2x2x1
jax: 0.10.0
libtpu: 0.0.40
codegen_flags: <defaults>
</compile_context>

<pallas_src>
import jax
import jax.numpy as jnp
from jax import lax
from jax.experimental import pallas as pl
from jax.experimental.pallas import tpu as pltpu

LANE = 128


def _silu(x):
    # x * sigmoid(x); approximate reciprocal goes to the EUP alongside exp.
    return x * pl.reciprocal(1.0 + jnp.exp(-x), approx=True)


def resnet_block_kernel(x_ref, w1s_ref, b1_ref, w2_ref, b2_ref,
                        w3_ref, b3s_ref, o_ref, pad_ref):
    # x_ref  : (1, H, W, C1p)       bf16
    # w1s_ref: (C1p, C2p + C3p)     bf16   [cv1 weight | shortcut weight] fused
    # b1_ref : (1, C2p)             f32    cv1 bias (BN folded)
    # w2_ref : (9, C2p, C2p)        bf16   cv2 3x3 taps
    # b2_ref : (1, C2p)             f32
    # w3_ref : (C2p, C3p)           bf16   cv3
    # b3s_ref: (1, C3p)             f32    cv3 bias + shortcut bias (pre-summed)
    # o_ref  : (1, H, W, C3p)       f32
    # pad_ref: (H+2, Wp, C2p)       f32 VMEM scratch -- zero-padded y1 for the 3x3 conv
    H, W = x_ref.shape[1], x_ref.shape[2]
    C1 = x_ref.shape[3]
    C2 = b1_ref.shape[1]
    C3 = o_ref.shape[3]

    x = x_ref[0].reshape(H * W, C1)                         # bf16 MXU operand

    # cv1 and the 1x1 shortcut share the same LHS -> one fused MXU matmul.
    y = jnp.dot(x, w1s_ref[...], preferred_element_type=jnp.float32)   # (HW, C2+C3)
    y1 = _silu(y[:, :C2] + b1_ref[...])                     # cv1 output, f32
    sc = y[:, C2:]                                          # shortcut (bias folded below)

    # Stage y1 into one zero-padded scratch (no pad/concat per tap).
    pad_ref[...] = jnp.zeros_like(pad_ref)
    pad_ref[1:H + 1, 1:W + 1, :] = y1.reshape(H, W, C2)

    # cv2: 3x3 conv, stride 1, pad 1 == sum of 9 shifted MXU matmuls (f32 accumulate).
    acc = None
    for k in range(9):
        dy, dx = divmod(k, 3)
        patch = pad_ref[dy:dy + H, dx:dx + W, :].reshape(H * W, C2)
        term = jnp.dot(patch.astype(jnp.bfloat16), w2_ref[k],
                       preferred_element_type=jnp.float32)
        acc = term if acc is None else acc + term
    y2 = _silu(acc + b2_ref[...])

    # cv3 (1x1, no activation) + shortcut + combined bias + ReLU.
    z = jnp.dot(y2.astype(jnp.bfloat16), w3_ref[...],
                preferred_element_type=jnp.float32)
    out = jnp.maximum(z + sc + b3s_ref[...], 0.0)
    o_ref[0] = out.reshape(H, W, C3).astype(o_ref.dtype)


def _pad_to(a, axis, mult):
    pad = (-a.shape[axis]) % mult
    if pad == 0:
        return a
    widths = [(0, 0)] * a.ndim
    widths[axis] = (0, pad)
    return jnp.pad(a, widths)


def resnet_block_pallas(x_nchw, params):
    w1, b1, w2, b2, w3, b3, ws, bs = params
    N, c1, H, W = x_nchw.shape
    c2 = w1.shape[1]
    c3 = w3.shape[1]

    c1p = c1 + (-c1) % LANE
    c2p = c2 + (-c2) % LANE
    c3p = c3 + (-c3) % LANE

    # NHWC, lane-dense channels, bf16 MXU operands (biases stay f32).
    x = jnp.transpose(x_nchw, (0, 2, 3, 1))
    x = _pad_to(x, 3, LANE).astype(jnp.bfloat16)

    w1p = _pad_to(_pad_to(w1, 0, LANE), 1, LANE).astype(jnp.bfloat16)
    wsp = _pad_to(_pad_to(ws, 0, LANE), 1, LANE).astype(jnp.bfloat16)
    w1sp = jnp.concatenate([w1p, wsp], axis=1)                     # (c1p, c2p + c3p)
    w2p = _pad_to(_pad_to(w2.reshape(9, c2, c2), 1, LANE), 2, LANE).astype(jnp.bfloat16)
    w3p = _pad_to(_pad_to(w3, 0, LANE), 1, LANE).astype(jnp.bfloat16)
    b1p = _pad_to(b1[None, :], 1, LANE).astype(jnp.float32)
    b2p = _pad_to(b2[None, :], 1, LANE).astype(jnp.float32)
    b3sp = (_pad_to(b3[None, :], 1, LANE) + _pad_to(bs[None, :], 1, LANE)
            ).astype(jnp.float32)                                   # cv3 + shortcut bias

    w_pad = (W + 2) + (-(W + 2)) % 8      # sublane-aligned padded-scratch width

    # Explicit scoped-VMEM budget from the working set (double-buffered I/O + weights
    # + scratch + in-flight f32 intermediates), clamped to sane per-generation limits.
    blk_in = H * W * c1p * 2
    blk_out = H * W * c3p * 4
    wgt_bytes = (w1sp.size + w2p.size + w3p.size) * 2 \
        + (b1p.size + b2p.size + b3sp.size) * 4
    scratch_bytes = (H + 2) * w_pad * c2p * 4
    tmp_bytes = H * W * (c2p + c3p) * 4 * 6
    working = 2 * (blk_in + blk_out) + 2 * wgt_bytes + scratch_bytes + tmp_bytes
    vmem_limit = int(min(64 * 2**20, max(32 * 2**20, 4 * working)))

    flops = 2 * N * H * W * (c1p * (c2p + c3p) + 9 * c2p * c2p + c2p * c3p)
    transcendentals = 2 * N * H * W * c2p
    bytes_accessed = int(x.size * 2 + N * H * W * c3p * 4 + wgt_bytes)

    out_nhwc = pl.pallas_call(
        resnet_block_kernel,
        out_shape=jax.ShapeDtypeStruct((N, H, W, c3p), jnp.float32),
        grid=(N,),
        in_specs=[
            pl.BlockSpec((1, H, W, c1p), lambda n: (n, 0, 0, 0)),
            pl.BlockSpec((c1p, c2p + c3p), lambda n: (0, 0)),
            pl.BlockSpec((1, c2p), lambda n: (0, 0)),
            pl.BlockSpec((9, c2p, c2p), lambda n: (0, 0, 0)),
            pl.BlockSpec((1, c2p), lambda n: (0, 0)),
            pl.BlockSpec((c2p, c3p), lambda n: (0, 0)),
            pl.BlockSpec((1, c3p), lambda n: (0, 0)),
        ],
        out_specs=pl.BlockSpec((1, H, W, c3p), lambda n: (n, 0, 0, 0)),
        scratch_shapes=[pltpu.VMEM((H + 2, w_pad, c2p), jnp.float32)],
        compiler_params=pltpu.CompilerParams(
            dimension_semantics=("parallel",),
            vmem_limit_bytes=vmem_limit,
        ),
        cost_estimate=pl.CostEstimate(
            flops=flops, transcendentals=transcendentals,
            bytes_accessed=bytes_accessed),
    )(x, w1sp, b1p, w2p, b2p, w3p, b3sp)

    out = out_nhwc[..., :c3]
    return jnp.transpose(out, (0, 3, 1, 2)).astype(x_nchw.dtype)


def resnet_block_reference(x_nchw, params):
    """Pure-JAX f32 reference (NCHW in/out) for correctness checking."""
    w1, b1, w2, b2, w3, b3, ws, bs = params
    x = jnp.transpose(x_nchw, (0, 2, 3, 1)).astype(jnp.float32)
    y1 = jax.nn.silu(jnp.einsum("nhwc,cd->nhwd", x, w1) + b1)
    y2 = lax.conv_general_dilated(
        y1, w2, window_strides=(1, 1), padding="SAME",
        dimension_numbers=("NHWC", "HWIO", "NHWC"))
    y2 = jax.nn.silu(y2 + b2)
    z = jnp.einsum("nhwc,cd->nhwd", y2, w3) + b3
    sc = jnp.einsum("nhwc,cd->nhwd", x, ws) + bs
    out = jnp.maximum(z + sc, 0.0)
    return jnp.transpose(out, (0, 3, 1, 2))


def _fold_bn(key, cin, cout, ksize, eps=1e-3, w_scale=0.2):
    """Synthetic Conv(+BN) params with BN folded into weight/bias (inference form)."""
    ks = jax.random.split(key, 5)
    if ksize == 1:
        w = jax.random.normal(ks[0], (cin, cout), jnp.float32) * w_scale
    else:
        w = jax.random.normal(ks[0], (ksize, ksize, cin, cout), jnp.float32) * w_scale
    gamma = 1.0 + 0.1 * jax.random.normal(ks[1], (cout,), jnp.float32)
    beta = 0.1 * jax.random.normal(ks[2], (cout,), jnp.float32)
    mean = 0.1 * jax.random.normal(ks[3], (cout,), jnp.float32)
    var = jax.random.uniform(ks[4], (cout,), jnp.float32, minval=0.5, maxval=1.5)
    s = gamma / jnp.sqrt(var + eps)
    return w * s, beta - mean * s


def make_params(key, c1, c2, e=4):
    c3 = e * c2
    k1, k2, k3, k4 = jax.random.split(key, 4)
    w1, b1 = _fold_bn(k1, c1, c2, 1)      # cv1: 1x1, act=True
    w2, b2 = _fold_bn(k2, c2, c2, 3)      # cv2: 3x3, s=1, p=1, act=True
    w3, b3 = _fold_bn(k3, c2, c3, 1)      # cv3: 1x1, act=False
    ws, bs = _fold_bn(k4, c1, c3, 1)      # shortcut: 1x1 (c1 != c3), act=False
    return (w1, b1, w2, b2, w3, b3, ws, bs)


if __name__ == "__main__":
    key = jax.random.PRNGKey(0)
    k_x, k_p = jax.random.split(key)

    N, c1, c2, e = 2, 4, 8, 4             # c3 = e * c2 = 32
    H = W = 16
    x = jax.random.normal(k_x, (N, c1, H, W), jnp.float32)
    params = make_params(k_p, c1, c2, e)

    out = jax.block_until_ready(resnet_block_pallas(x, params))
    ref = jax.block_until_ready(resnet_block_reference(x, params))

    assert out.shape == (N, e * c2, H, W), out.shape
    max_err = float(jnp.max(jnp.abs(out - ref)))
    assert jnp.allclose(out, ref, atol=3e-2, rtol=3e-2), max_err

    print("KERNEL_OK")
</pallas_src>

<mosaic_0001>
module attributes {stable_mosaic.version = 11 : i64} {
  func.func @resnet_block_kernel(%arg0: i32, %arg1: memref<1x16x16x128xbf16, #tpu.memory_space<vmem>>, %arg2: memref<128x256xbf16, #tpu.memory_space<vmem>>, %arg3: memref<1x128xf32, #tpu.memory_space<vmem>>, %arg4: memref<9x128x128xbf16, #tpu.memory_space<vmem>>, %arg5: memref<1x128xf32, #tpu.memory_space<vmem>>, %arg6: memref<128x128xbf16, #tpu.memory_space<vmem>>, %arg7: memref<1x128xf32, #tpu.memory_space<vmem>>, %arg8: memref<1x16x16x128xf32, #tpu.memory_space<vmem>>, %arg9: memref<18x24x128xf32, #tpu.memory_space<vmem>>) attributes {dimension_semantics = [#tpu.dimension_semantics<parallel>], iteration_bounds = array<i64: 2>, scalar_prefetch = 0 : i64, scratch_operands = 1 : i64, tpu.core_type = #tpu.core_type<tc>, window_params = [{transform_indices = @transform_0, window_bounds = array<i64: 1, 16, 16, 128>}, {pipeline_mode = #tpu.pipeline_mode<synchronous>, transform_indices = @transform_1, window_bounds = array<i64: 128, 256>}, {pipeline_mode = #tpu.pipeline_mode<synchronous>, transform_indices = @transform_2, window_bounds = array<i64: 1, 128>}, {pipeline_mode = #tpu.pipeline_mode<synchronous>, transform_indices = @transform_3, window_bounds = array<i64: 9, 128, 128>}, {pipeline_mode = #tpu.pipeline_mode<synchronous>, transform_indices = @transform_4, window_bounds = array<i64: 1, 128>}, {pipeline_mode = #tpu.pipeline_mode<synchronous>, transform_indices = @transform_5, window_bounds = array<i64: 128, 128>}, {pipeline_mode = #tpu.pipeline_mode<synchronous>, transform_indices = @transform_6, window_bounds = array<i64: 1, 128>}, {transform_indices = @transform_7, window_bounds = array<i64: 1, 16, 16, 128>}]} {
    %c0 = arith.constant 0 : index
    %c0_0 = arith.constant 0 : index
    %c0_1 = arith.constant 0 : index
    %c0_2 = arith.constant 0 : index
    %0 = vector.load %arg1[%c0, %c0_0, %c0_1, %c0_2] : memref<1x16x16x128xbf16, #tpu.memory_space<vmem>>, vector<1x16x16x128xbf16>
    %1 = vector.shape_cast %0 : vector<1x16x16x128xbf16> to vector<16x16x128xbf16>
    %2 = vector.shape_cast %1 : vector<16x16x128xbf16> to vector<256x128xbf16>
    %c0_3 = arith.constant 0 : index
    %c0_4 = arith.constant 0 : index
    %3 = vector.load %arg2[%c0_3, %c0_4] : memref<128x256xbf16, #tpu.memory_space<vmem>>, vector<128x256xbf16>
    %cst = arith.constant dense<0.000000e+00> : vector<256x256xf32>
    %4 = tpu.matmul %2, %3, %cst {dimension_numbers = #tpu.dot_dimension_numbers<[1], [0], [0], [1], [0, 0, 1, 1], [], []>} : vector<256x128xbf16>, vector<128x256xbf16>, vector<256x256xf32> -> vector<256x256xf32>
    %5 = vector.extract_strided_slice %4 {offsets = [0, 0], sizes = [256, 128], strides = [1, 1]} : vector<256x256xf32> to vector<256x128xf32>
    %c0_5 = arith.constant 0 : index
    %c0_6 = arith.constant 0 : index
    %6 = vector.load %arg3[%c0_5, %c0_6] : memref<1x128xf32, #tpu.memory_space<vmem>>, vector<1x128xf32>
    %7 = vector.broadcast %6 : vector<1x128xf32> to vector<256x128xf32>
    %8 = arith.addf %5, %7 : vector<256x128xf32>
    %cst_7 = arith.constant 0.000000e+00 : f32
    %9 = vector.broadcast %cst_7 : f32 to vector<256x128xf32>
    %10 = arith.subf %9, %8 : vector<256x128xf32>
    %11 = math.exp %10 : vector<256x128xf32>
    %cst_8 = arith.constant 1.000000e+00 : f32
    %12 = vector.broadcast %cst_8 : f32 to vector<256x128xf32>
    %13 = arith.addf %12, %11 : vector<256x128xf32>
    %14 = tpu.reciprocal %13 {approx = true} : vector<256x128xf32> -> vector<256x128xf32>
    %15 = arith.mulf %8, %14 : vector<256x128xf32>
    %16 = vector.extract_strided_slice %4 {offsets = [0, 128], sizes = [256, 128], strides = [1, 1]} : vector<256x256xf32> to vector<256x128xf32>
    %cst_9 = arith.constant 0.000000e+00 : f32
    %17 = vector.broadcast %cst_9 : f32 to vector<18x24x128xf32>
    %c0_10 = arith.constant 0 : index
    %c0_11 = arith.constant 0 : index
    %c0_12 = arith.constant 0 : index
    %18 = vector.load %arg9[%c0_10, %c0_11, %c0_12] : memref<18x24x128xf32, #tpu.memory_space<vmem>>, vector<18x24x128xf32>
    tpu.vector_store %arg9[%c0_10, %c0_11, %c0_12], %17 {strides = array<i32>} : memref<18x24x128xf32, #tpu.memory_space<vmem>>, vector<18x24x128xf32>,
    %19 = vector.shape_cast %15 : vector<256x128xf32> to vector<16x16x128xf32>
    %c1 = arith.constant 1 : index
    %c1_13 = arith.constant 1 : index
    %c0_14 = arith.constant 0 : index
    %20 = vector.load %arg9[%c1, %c1_13, %c0_14] : memref<18x24x128xf32, #tpu.memory_space<vmem>>, vector<16x16x128xf32>
    tpu.vector_store %arg9[%c1, %c1_13, %c0_14], %19 {strides = array<i32>} : memref<18x24x128xf32, #tpu.memory_space<vmem>>, vector<16x16x128xf32>,
    %c0_15 = arith.constant 0 : index
    %c0_16 = arith.constant 0 : index
    %c0_17 = arith.constant 0 : index
    %21 = vector.load %arg9[%c0_15, %c0_16, %c0_17] : memref<18x24x128xf32, #tpu.memory_space<vmem>>, vector<16x16x128xf32>
    %22 = vector.shape_cast %21 : vector<16x16x128xf32> to vector<256x128xf32>
    %23 = arith.truncf %22 : vector<256x128xf32> to vector<256x128xbf16>
    %c0_18 = arith.constant 0 : index
    %c0_19 = arith.constant 0 : index
    %c0_20 = arith.constant 0 : index
    %24 = vector.load %arg4[%c0_18, %c0_19, %c0_20] : memref<9x128x128xbf16, #tpu.memory_space<vmem>>, vector<1x128x128xbf16>
    %25 = vector.shape_cast %24 : vector<1x128x128xbf16> to vector<128x128xbf16>
    %cst_21 = arith.constant dense<0.000000e+00> : vector<256x128xf32>
    %26 = tpu.matmul %23, %25, %cst_21 {dimension_numbers = #tpu.dot_dimension_numbers<[1], [0], [0], [1], [0, 0, 1, 1], [], []>} : vector<256x128xbf16>, vector<128x128xbf16>, vector<256x128xf32> -> vector<256x128xf32>
    %c0_22 = arith.constant 0 : index
    %c1_23 = arith.constant 1 : index
    %c0_24 = arith.constant 0 : index
    %27 = vector.load %arg9[%c0_22, %c1_23, %c0_24] : memref<18x24x128xf32, #tpu.memory_space<vmem>>, vector<16x16x128xf32>
    %28 = vector.shape_cast %27 : vector<16x16x128xf32> to vector<256x128xf32>
    %29 = arith.truncf %28 : vector<256x128xf32> to vector<256x128xbf16>
    %c1_25 = arith.constant 1 : index
    %c0_26 = arith.constant 0 : index
    %c0_27 = arith.constant 0 : index
    %30 = vector.load %arg4[%c1_25, %c0_26, %c0_27] : memref<9x128x128xbf16, #tpu.memory_space<vmem>>, vector<1x128x128xbf16>
    %31 = vector.shape_cast %30 : vector<1x128x128xbf16> to vector<128x128xbf16>
    %cst_28 = arith.constant dense<0.000000e+00> : vector<256x128xf32>
    %32 = tpu.matmul %29, %31, %cst_28 {dimension_numbers = #tpu.dot_dimension_numbers<[1], [0], [0], [1], [0, 0, 1, 1], [], []>} : vector<256x128xbf16>, vector<128x128xbf16>, vector<256x128xf32> -> vector<256x128xf32>
    %33 = arith.addf %26, %32 : vector<256x128xf32>
    %c0_29 = arith.constant 0 : index
    %c2 = arith.constant 2 : index
    %c0_30 = arith.constant 0 : index
    %34 = vector.load %arg9[%c0_29, %c2, %c0_30] : memref<18x24x128xf32, #tpu.memory_space<vmem>>, vector<16x16x128xf32>
    %35 = vector.shape_cast %34 : vector<16x16x128xf32> to vector<256x128xf32>
    %36 = arith.truncf %35 : vector<256x128xf32> to vector<256x128xbf16>
    %c2_31 = arith.constant 2 : index
    %c0_32 = arith.constant 0 : index
    %c0_33 = arith.constant 0 : index
    %37 = vector.load %arg4[%c2_31, %c0_32, %c0_33] : memref<9x128x128xbf16, #tpu.memory_space<vmem>>, vector<1x128x128xbf16>
    %38 = vector.shape_cast %37 : vector<1x128x128xbf16> to vector<128x128xbf16>
    %cst_34 = arith.constant dense<0.000000e+00> : vector<256x128xf32>
    %39 = tpu.matmul %36, %38, %cst_34 {dimension_numbers = #tpu.dot_dimension_numbers<[1], [0], [0], [1], [0, 0, 1, 1], [], []>} : vector<256x128xbf16>, vector<128x128xbf16>, vector<256x128xf32> -> vector<256x128xf32>
    %40 = arith.addf %33, %39 : vector<256x128xf32>
    %c1_35 = arith.constant 1 : index
    %c0_36 = arith.constant 0 : index
    %c0_37 = arith.constant 0 : index
    %41 = vector.load %arg9[%c1_35, %c0_36, %c0_37] : memref<18x24x128xf32, #tpu.memory_space<vmem>>, vector<16x16x128xf32>
    %42 = vector.shape_cast %41 : vector<16x16x128xf32> to vector<256x128xf32>
    %43 = arith.truncf %42 : vector<256x128xf32> to vector<256x128xbf16>
    %c3 = arith.constant 3 : index
    %c0_38 = arith.constant 0 : index
    %c0_39 = arith.constant 0 : index
    %44 = vector.load %arg4[%c3, %c0_38, %c0_39] : memref<9x128x128xbf16, #tpu.memory_space<vmem>>, vector<1x128x128xbf16>
    %45 = vector.shape_cast %44 : vector<1x128x128xbf16> to vector<128x128xbf16>
    %cst_40 = arith.constant dense<0.000000e+00> : vector<256x128xf32>
    %46 = tpu.matmul %43, %45, %cst_40 {dimension_numbers = #tpu.dot_dimension_numbers<[1], [0], [0], [1], [0, 0, 1, 1], [], []>} : vector<256x128xbf16>, vector<128x128xbf16>, vector<256x128xf32> -> vector<256x128xf32>
    %47 = arith.addf %40, %46 : vector<256x128xf32>
    %c1_41 = arith.constant 1 : index
    %c1_42 = arith.constant 1 : index
    %c0_43 = arith.constant 0 : index
    %48 = vector.load %arg9[%c1_41, %c1_42, %c0_43] : memref<18x24x128xf32, #tpu.memory_space<vmem>>, vector<16x16x128xf32>
    %49 = vector.shape_cast %48 : vector<16x16x128xf32> to vector<256x128xf32>
    %50 = arith.truncf %49 : vector<256x128xf32> to vector<256x128xbf16>
    %c4 = arith.constant 4 : index
    %c0_44 = arith.constant 0 : index
    %c0_45 = arith.constant 0 : index
    %51 = vector.load %arg4[%c4, %c0_44, %c0_45] : memref<9x128x128xbf16, #tpu.memory_space<vmem>>, vector<1x128x128xbf16>
    %52 = vector.shape_cast %51 : vector<1x128x128xbf16> to vector<128x128xbf16>
    %cst_46 = arith.constant dense<0.000000e+00> : vector<256x128xf32>
    %53 = tpu.matmul %50, %52, %cst_46 {dimension_numbers = #tpu.dot_dimension_numbers<[1], [0], [0], [1], [0, 0, 1, 1], [], []>} : vector<256x128xbf16>, vector<128x128xbf16>, vector<256x128xf32> -> vector<256x128xf32>
    %54 = arith.addf %47, %53 : vector<256x128xf32>
    %c1_47 = arith.constant 1 : index
    %c2_48 = arith.constant 2 : index
    %c0_49 = arith.constant 0 : index
    %55 = vector.load %arg9[%c1_47, %c2_48, %c0_49] : memref<18x24x128xf32, #tpu.memory_space<vmem>>, vector<16x16x128xf32>
    %56 = vector.shape_cast %55 : vector<16x16x128xf32> to vector<256x128xf32>
    %57 = arith.truncf %56 : vector<256x128xf32> to vector<256x128xbf16>
    %c5 = arith.constant 5 : index
    %c0_50 = arith.constant 0 : index
    %c0_51 = arith.constant 0 : index
    %58 = vector.load %arg4[%c5, %c0_50, %c0_51] : memref<9x128x128xbf16, #tpu.memory_space<vmem>>, vector<1x128x128xbf16>
    %59 = vector.shape_cast %58 : vector<1x128x128xbf16> to vector<128x128xbf16>
    %cst_52 = arith.constant dense<0.000000e+00> : vector<256x128xf32>
    %60 = tpu.matmul %57, %59, %cst_52 {dimension_numbers = #tpu.dot_dimension_numbers<[1], [0], [0], [1], [0, 0, 1, 1], [], []>} : vector<256x128xbf16>, vector<128x128xbf16>, vector<256x128xf32> -> vector<256x128xf32>
    %61 = arith.addf %54, %60 : vector<256x128xf32>
    %c2_53 = arith.constant 2 : index
    %c0_54 = arith.constant 0 : index
    %c0_55 = arith.constant 0 : index
    %62 = vector.load %arg9[%c2_53, %c0_54, %c0_55] : memref<18x24x128xf32, #tpu.memory_space<vmem>>, vector<16x16x128xf32>
    %63 = vector.shape_cast %62 : vector<16x16x128xf32> to vector<256x128xf32>
    %64 = arith.truncf %63 : vector<256x128xf32> to vector<256x128xbf16>
    %c6 = arith.constant 6 : index
    %c0_56 = arith.constant 0 : index
    %c0_57 = arith.constant 0 : index
    %65 = vector.load %arg4[%c6, %c0_56, %c0_57] : memref<9x128x128xbf16, #tpu.memory_space<vmem>>, vector<1x128x128xbf16>
    %66 = vector.shape_cast %65 : vector<1x128x128xbf16> to vector<128x128xbf16>
    %cst_58 = arith.constant dense<0.000000e+00> : vector<256x128xf32>
    %67 = tpu.matmul %64, %66, %cst_58 {dimension_numbers = #tpu.dot_dimension_numbers<[1], [0], [0], [1], [0, 0, 1, 1], [], []>} : vector<256x128xbf16>, vector<128x128xbf16>, vector<256x128xf32> -> vector<256x128xf32>
    %68 = arith.addf %61, %67 : vector<256x128xf32>
    %c2_59 = arith.constant 2 : index
    %c1_60 = arith.constant 1 : index
    %c0_61 = arith.constant 0 : index
    %69 = vector.load %arg9[%c2_59, %c1_60, %c0_61] : memref<18x24x128xf32, #tpu.memory_space<vmem>>, vector<16x16x128xf32>
    %70 = vector.shape_cast %69 : vector<16x16x128xf32> to vector<256x128xf32>
    %71 = arith.truncf %70 : vector<256x128xf32> to vector<256x128xbf16>
    %c7 = arith.constant 7 : index
    %c0_62 = arith.constant 0 : index
    %c0_63 = arith.constant 0 : index
    %72 = vector.load %arg4[%c7, %c0_62, %c0_63] : memref<9x128x128xbf16, #tpu.memory_space<vmem>>, vector<1x128x128xbf16>
    %73 = vector.shape_cast %72 : vector<1x128x128xbf16> to vector<128x128xbf16>
    %cst_64 = arith.constant dense<0.000000e+00> : vector<256x128xf32>
    %74 = tpu.matmul %71, %73, %cst_64 {dimension_numbers = #tpu.dot_dimension_numbers<[1], [0], [0], [1], [0, 0, 1, 1], [], []>} : vector<256x128xbf16>, vector<128x128xbf16>, vector<256x128xf32> -> vector<256x128xf32>
    %75 = arith.addf %68, %74 : vector<256x128xf32>
    %c2_65 = arith.constant 2 : index
    %c2_66 = arith.constant 2 : index
    %c0_67 = arith.constant 0 : index
    %76 = vector.load %arg9[%c2_65, %c2_66, %c0_67] : memref<18x24x128xf32, #tpu.memory_space<vmem>>, vector<16x16x128xf32>
    %77 = vector.shape_cast %76 : vector<16x16x128xf32> to vector<256x128xf32>
    %78 = arith.truncf %77 : vector<256x128xf32> to vector<256x128xbf16>
    %c8 = arith.constant 8 : index
    %c0_68 = arith.constant 0 : index
    %c0_69 = arith.constant 0 : index
    %79 = vector.load %arg4[%c8, %c0_68, %c0_69] : memref<9x128x128xbf16, #tpu.memory_space<vmem>>, vector<1x128x128xbf16>
    %80 = vector.shape_cast %79 : vector<1x128x128xbf16> to vector<128x128xbf16>
    %cst_70 = arith.constant dense<0.000000e+00> : vector<256x128xf32>
    %81 = tpu.matmul %78, %80, %cst_70 {dimension_numbers = #tpu.dot_dimension_numbers<[1], [0], [0], [1], [0, 0, 1, 1], [], []>} : vector<256x128xbf16>, vector<128x128xbf16>, vector<256x128xf32> -> vector<256x128xf32>
    %82 = arith.addf %75, %81 : vector<256x128xf32>
    %c0_71 = arith.constant 0 : index
    %c0_72 = arith.constant 0 : index
    %83 = vector.load %arg5[%c0_71, %c0_72] : memref<1x128xf32, #tpu.memory_space<vmem>>, vector<1x128xf32>
    %84 = vector.broadcast %83 : vector<1x128xf32> to vector<256x128xf32>
    %85 = arith.addf %82, %84 : vector<256x128xf32>
    %cst_73 = arith.constant 0.000000e+00 : f32
    %86 = vector.broadcast %cst_73 : f32 to vector<256x128xf32>
    %87 = arith.subf %86, %85 : vector<256x128xf32>
    %88 = math.exp %87 : vector<256x128xf32>
    %cst_74 = arith.constant 1.000000e+00 : f32
    %89 = vector.broadcast %cst_74 : f32 to vector<256x128xf32>
    %90 = arith.addf %89, %88 : vector<256x128xf32>
    %91 = tpu.reciprocal %90 {approx = true} : vector<256x128xf32> -> vector<256x128xf32>
    %92 = arith.mulf %85, %91 : vector<256x128xf32>
    %93 = arith.truncf %92 : vector<256x128xf32> to vector<256x128xbf16>
    %c0_75 = arith.constant 0 : index
    %c0_76 = arith.constant 0 : index
    %94 = vector.load %arg6[%c0_75, %c0_76] : memref<128x128xbf16, #tpu.memory_space<vmem>>, vector<128x128xbf16>
    %cst_77 = arith.constant dense<0.000000e+00> : vector<256x128xf32>
    %95 = tpu.matmul %93, %94, %cst_77 {dimension_numbers = #tpu.dot_dimension_numbers<[1], [0], [0], [1], [0, 0, 1, 1], [], []>} : vector<256x128xbf16>, vector<128x128xbf16>, vector<256x128xf32> -> vector<256x128xf32>
    %96 = arith.addf %95, %16 : vector<256x128xf32>
    %c0_78 = arith.constant 0 : index
    %c0_79 = arith.constant 0 : index
    %97 = vector.load %arg7[%c0_78, %c0_79] : memref<1x128xf32, #tpu.memory_space<vmem>>, vector<1x128xf32>
    %98 = vector.broadcast %97 : vector<1x128xf32> to vector<256x128xf32>
    %99 = arith.addf %96, %98 : vector<256x128xf32>
    %cst_80 = arith.constant 0.000000e+00 : f32
    %100 = vector.broadcast %cst_80 : f32 to vector<256x128xf32>
    %101 = arith.maximumf %99, %100 : vector<256x128xf32>
    %102 = vector.shape_cast %101 : vector<256x128xf32> to vector<16x16x128xf32>
    %c0_81 = arith.constant 0 : index
    %c0_82 = arith.constant 0 : index
    %c0_83 = arith.constant 0 : index
    %c0_84 = arith.constant 0 : index
    %103 = vector.load %arg8[%c0_81, %c0_82, %c0_83, %c0_84] : memref<1x16x16x128xf32, #tpu.memory_space<vmem>>, vector<1x16x16x128xf32>
    %104 = vector.shape_cast %103 : vector<1x16x16x128xf32> to vector<16x16x128xf32>
    %105 = vector.shape_cast %102 : vector<16x16x128xf32> to vector<1x16x16x128xf32>
    tpu.vector_store %arg8[%c0_81, %c0_82, %c0_83, %c0_84], %105 {strides = array<i32>} : memref<1x16x16x128xf32, #tpu.memory_space<vmem>>, vector<1x16x16x128xf32>,
    return
  }
  func.func @transform_0(%arg0: i32) -> (i32, i32, i32, i32) {
    %c0_i32 = arith.constant 0 : i32
    %c0_i32_0 = arith.constant 0 : i32
    %c0_i32_1 = arith.constant 0 : i32
    %c0_i32_2 = arith.constant 0 : i32
    return %arg0, %c0_i32, %c0_i32_0, %c0_i32_1 : i32, i32, i32, i32
  }
  func.func @transform_1(%arg0: i32) -> (i32, i32) {
    %c0_i32 = arith.constant 0 : i32
    %c0_i32_0 = arith.constant 0 : i32
    %c0_i32_1 = arith.constant 0 : i32
    return %c0_i32, %c0_i32_0 : i32, i32
  }
  func.func @transform_2(%arg0: i32) -> (i32, i32) {
    %c0_i32 = arith.constant 0 : i32
    %c0_i32_0 = arith.constant 0 : i32
    %c0_i32_1 = arith.constant 0 : i32
    return %c0_i32, %c0_i32_0 : i32, i32
  }
  func.func @transform_3(%arg0: i32) -> (i32, i32, i32) {
    %c0_i32 = arith.constant 0 : i32
    %c0_i32_0 = arith.constant 0 : i32
    %c0_i32_1 = arith.constant 0 : i32
    %c0_i32_2 = arith.constant 0 : i32
    return %c0_i32, %c0_i32_0, %c0_i32_1 : i32, i32, i32
  }
  func.func @transform_4(%arg0: i32) -> (i32, i32) {
    %c0_i32 = arith.constant 0 : i32
    %c0_i32_0 = arith.constant 0 : i32
    %c0_i32_1 = arith.constant 0 : i32
    return %c0_i32, %c0_i32_0 : i32, i32
  }
  func.func @transform_5(%arg0: i32) -> (i32, i32) {
    %c0_i32 = arith.constant 0 : i32
    %c0_i32_0 = arith.constant 0 : i32
    %c0_i32_1 = arith.constant 0 : i32
    return %c0_i32, %c0_i32_0 : i32, i32
  }
  func.func @transform_6(%arg0: i32) -> (i32, i32) {
    %c0_i32 = arith.constant 0 : i32
    %c0_i32_0 = arith.constant 0 : i32
    %c0_i32_1 = arith.constant 0 : i32
    return %c0_i32, %c0_i32_0 : i32, i32
  }
  func.func @transform_7(%arg0: i32) -> (i32, i32, i32, i32) {
    %c0_i32 = arith.constant 0 : i32
    %c0_i32_0 = arith.constant 0 : i32
    %c0_i32_1 = arith.constant 0 : i32
    %c0_i32_2 = arith.constant 0 : i32
    return %arg0, %c0_i32, %c0_i32_0, %c0_i32_1 : i32, i32, i32, i32
  }
}

</mosaic_0001>

<llo_original>
// kernel: tpu_custom_call.1
$region0: #{tpu_custom_call.1}
  #allocation0 [shape = 'u32[]', space=smem, size = 0x4, offset = 0x4, fixed_abs, tag = 'smem constant byte address 0x4 - core index']
  #allocation1 [shape = 'u32[144,128]{1,0:T(1,128)}', space=vmem, size = 0x12000, scoped, tag = 'internal scratch']
  #allocation2 [shape = 'f32[18,24,128]{2,1,0:T(8,128)}', space=vmem, size = 0x36000, scoped, tag = 'scratch operand']
  %s0 = inlined_call_operand.hbm [shape: bf16[2,16,16,128], index: 0, kind: input, shape index: {}]
  %s1 = inlined_call_operand.hbm [shape: bf16[128,256], index: 1, kind: input, shape index: {}]
  %s2 = inlined_call_operand.vmem [shape: f32[1,128], index: 2, kind: input, shape index: {}]
  %s3 = inlined_call_operand.hbm [shape: bf16[9,128,128], index: 3, kind: input, shape index: {}]
  %s4 = inlined_call_operand.vmem [shape: f32[1,128], index: 4, kind: input, shape index: {}]
  %s5 = inlined_call_operand.hbm [shape: bf16[128,128], index: 5, kind: input, shape index: {}]
  %s6 = inlined_call_operand.vmem [shape: f32[1,128], index: 6, kind: input, shape index: {}]
  %s7 = inlined_call_operand.hbm [shape: f32[2,16,16,128], index: 7, kind: output, shape index: {}]
  %s8 = sld [smem:[#allocation0]]
  $region77: #{tpu_custom_call.1} parent=0
    _
  %s10 = ssub.s32 1, %s8
  %s11 = scalar_select 0, %s10, %s8
  $region1: #{tpu_custom_call.1} parent=0
    #allocation3 [shape = 'u8[131072]{0}', space=vmem, size = 0x20000, scoped, tag = 'input window, operand 0']
    #allocation4 [shape = 's32[2]{0}', space=sflag, size = 0x8, scoped, tag = 'scoped memory for tpu_custom_call.1']
    #allocation5 [shape = 's32[2]{0}', space=sflag, size = 0x8, scoped, tag = 'scoped memory for tpu_custom_call.1']
    #allocation6 [shape = 'u8[65536]{0}', space=vmem, size = 0x10000, scoped, tag = 'input window, operand 1, single buffered']
    #allocation7 [shape = 's32[1]{0}', space=sflag, size = 0x4, scoped, tag = 'scoped memory for tpu_custom_call.1']
    #allocation8 [shape = 'u8[294912]{0}', space=vmem, size = 0x48000, scoped, tag = 'input window, operand 3, single buffered']
    #allocation9 [shape = 'u8[32768]{0}', space=vmem, size = 0x8000, scoped, tag = 'input window, operand 5, single buffered']
    #allocation10 [shape = 's32[1]{0}', space=sflag, size = 0x4, scoped, tag = 'scoped memory for tpu_custom_call.1']
    #allocation11 [shape = 'u8[262144]{0}', space=vmem, size = 0x40000, scoped, tag = 'output window, operand 0']
    %12 = vsyncpa [#allocation4], 0
    %s13 = scalar_lea.sflag [#allocation4], 1
    %14 = vsyncpa %s13, 0
    %15 = vsyncpa [#allocation7], 0
    %16 = vsyncpa [#allocation10], 0
    %17 = vsyncpa [#allocation5], 0
    %s18 = scalar_lea.sflag [#allocation5], 1
    %19 = vsyncpa %s18, 0
    loop: start=0, step=1, limit=4
    $region2: #{tpu_custom_call.1} parent=1 // loop_pre_header
      _
    $region3: #{tpu_custom_call.1} parent=1 // loop_header
      %s21 = sphi 0, %s25
      %p22 = scmp.ge.s32.totalorder %s21, 4
      %s31 = sphi 0, %s33
      %s34 = sphi 0, %s31
      %s35 = sphi 0, %s34
      %s51 = sphi 0, %s35
      %s55 = sphi 0, %s55
      %s57 = sphi 0, %s55
      %s58 = sphi 0, %s57
      %s72 = sphi 0, %s58
      %s76 = sphi 0, %s76
      %s78 = sphi 0, %s76
      %s79 = sphi 0, %s78
      %s93 = sphi 0, %s79
      %s97 = sphi 0, %s97
      %s99 = sphi 0, %s97
      %s100 = sphi 0, %s99
      %s114 = sphi 0, %s100
      %s118 = sphi 0, %s118
      %s120 = sphi 0, %s118
      %s121 = sphi 0, %s120
      %s135 = sphi 0, %s121
      %s139 = sphi 0, %s139
      %s141 = sphi 0, %s139
      %s142 = sphi 0, %s141
      %s156 = sphi 0, %s142
      %s160 = sphi 0, %s160
      %s162 = sphi 0, %s160
      %s163 = sphi 0, %s162
      %s177 = sphi 0, %s163
      %s183 = sphi 0, %s185
      %s186 = sphi 0, %s183
      %s187 = sphi 0, %s186
      %s203 = sphi 0, %s187
    $region4: #{tpu_custom_call.1} parent=1 // loop_header_branch
      %24 = sbr.rel (%p22) target = $region8
    $region5: #{tpu_custom_call.1} parent=1 // loop_body
      %s26 = ssub.s32 %s21, 1
      %s27 = ssub.s32 %s21, 2
      %s28 = sadd.s32 %s21, 1
      %s29 = ssub.s32 %s21, %s28
      %p30 = scmp.eq.s32.totalorder %s29, 0
      %s32 = sadd.s32 %s31, 1
      %s33 = scalar_select %p30, %s31, %s32
      %p36 = pneg %p30
      %p37 = scmp.eq.s32.totalorder %s21, 1
      %p38 = por %p36, %p37
      %p39 = scmp.ne.s32.totalorder %s31, %s34
      %p40 = scmp.eq.s32.totalorder %s21, 0
      %p41 = por %p39, %p40
      %p42 = scmp.ne.s32.totalorder %s31, %s34
      %p43 = scmp.eq.s32.totalorder %s26, 1
      %p44 = por %p42, %p43
      %p45 = scmp.ne.s32.totalorder %s34, %s35
      %p46 = scmp.eq.s32.totalorder %s26, 0
      %p47 = por %p45, %p46
      %p48 = scmp.ne.s32.totalorder %s34, %s35
      %p49 = scmp.eq.s32.totalorder %s27, 1
      %p50 = por %p48, %p49
      %p52 = scmp.ne.s32.totalorder %s35, %s51
      %p53 = scmp.eq.s32.totalorder %s27, 0
      %p54 = por %p52, %p53
      %s56 = sadd.s32 %s55, 1
      %p59 = scmp.eq.s32.totalorder %s21, 1
      %p60 = scmp.ne.s32.totalorder %s55, %s57
      %p61 = scmp.eq.s32.totalorder %s21, 0
      %p62 = por %p60, %p61
      %p63 = scmp.ne.s32.totalorder %s55, %s57
      %p64 = scmp.eq.s32.totalorder %s26, 1
      %p65 = por %p63, %p64
      %p66 = scmp.ne.s32.totalorder %s57, %s58
      %p67 = scmp.eq.s32.totalorder %s26, 0
      %p68 = por %p66, %p67
      %p69 = scmp.ne.s32.totalorder %s57, %s58
      %p70 = scmp.eq.s32.totalorder %s27, 1
      %p71 = por %p69, %p70
      %p73 = scmp.ne.s32.totalorder %s58, %s72
      %p74 = scmp.eq.s32.totalorder %s27, 0
      %p75 = por %p73, %p74
      %s77 = sadd.s32 %s76, 1
      %p80 = scmp.eq.s32.totalorder %s21, 1
      %p81 = scmp.ne.s32.totalorder %s76, %s78
      %p82 = scmp.eq.s32.totalorder %s21, 0
      %p83 = por %p81, %p82
      %p84 = scmp.ne.s32.totalorder %s76, %s78
      %p85 = scmp.eq.s32.totalorder %s26, 1
      %p86 = por %p84, %p85
      %p87 = scmp.ne.s32.totalorder %s78, %s79
      %p88 = scmp.eq.s32.totalorder %s26, 0
      %p89 = por %p87, %p88
      %p90 = scmp.ne.s32.totalorder %s78, %s79
      %p91 = scmp.eq.s32.totalorder %s27, 1
      %p92 = por %p90, %p91
      %p94 = scmp.ne.s32.totalorder %s79, %s93
      %p95 = scmp.eq.s32.totalorder %s27, 0
      %p96 = por %p94, %p95
      %s98 = sadd.s32 %s97, 1
      %p101 = scmp.eq.s32.totalorder %s21, 1
      %p102 = scmp.ne.s32.totalorder %s97, %s99
      %p103 = scmp.eq.s32.totalorder %s21, 0
      %p104 = por %p102, %p103
      %p105 = scmp.ne.s32.totalorder %s97, %s99
      %p106 = scmp.eq.s32.totalorder %s26, 1
      %p107 = por %p105, %p106
      %p108 = scmp.ne.s32.totalorder %s99, %s100
      %p109 = scmp.eq.s32.totalorder %s26, 0
      %p110 = por %p108, %p109
      %p111 = scmp.ne.s32.totalorder %s99, %s100
      %p112 = scmp.eq.s32.totalorder %s27, 1
      %p113 = por %p111, %p112
      %p115 = scmp.ne.s32.totalorder %s100, %s114
      %p116 = scmp.eq.s32.totalorder %s27, 0
      %p117 = por %p115, %p116
      %s119 = sadd.s32 %s118, 1
      %p122 = scmp.eq.s32.totalorder %s21, 1
      %p123 = scmp.ne.s32.totalorder %s118, %s120
      %p124 = scmp.eq.s32.totalorder %s21, 0
      %p125 = por %p123, %p124
      %p126 = scmp.ne.s32.totalorder %s118, %s120
      %p127 = scmp.eq.s32.totalorder %s26, 1
      %p128 = por %p126, %p127
      %p129 = scmp.ne.s32.totalorder %s120, %s121
      %p130 = scmp.eq.s32.totalorder %s26, 0
      %p131 = por %p129, %p130
      %p132 = scmp.ne.s32.totalorder %s120, %s121
      %p133 = scmp.eq.s32.totalorder %s27, 1
      %p134 = por %p132, %p133
      %p136 = scmp.ne.s32.totalorder %s121, %s135
      %p137 = scmp.eq.s32.totalorder %s27, 0
      %p138 = por %p136, %p137
      %s140 = sadd.s32 %s139, 1
      %p143 = scmp.eq.s32.totalorder %s21, 1
      %p144 = scmp.ne.s32.totalorder %s139, %s141
      %p145 = scmp.eq.s32.totalorder %s21, 0
      %p146 = por %p144, %p145
      %p147 = scmp.ne.s32.totalorder %s139, %s141
      %p148 = scmp.eq.s32.totalorder %s26, 1
      %p149 = por %p147, %p148
      %p150 = scmp.ne.s32.totalorder %s141, %s142
      %p151 = scmp.eq.s32.totalorder %s26, 0
      %p152 = por %p150, %p151
      %p153 = scmp.ne.s32.totalorder %s141, %s142
      %p154 = scmp.eq.s32.totalorder %s27, 1
      %p155 = por %p153, %p154
      %p157 = scmp.ne.s32.totalorder %s142, %s156
      %p158 = scmp.eq.s32.totalorder %s27, 0
      %p159 = por %p157, %p158
      %s161 = sadd.s32 %s160, 1
      %p164 = scmp.eq.s32.totalorder %s21, 1
      %p165 = scmp.ne.s32.totalorder %s160, %s162
      %p166 = scmp.eq.s32.totalorder %s21, 0
      %p167 = por %p165, %p166
      %p168 = scmp.ne.s32.totalorder %s160, %s162
      %p169 = scmp.eq.s32.totalorder %s26, 1
      %p170 = por %p168, %p169
      %p171 = scmp.ne.s32.totalorder %s162, %s163
      %p172 = scmp.eq.s32.totalorder %s26, 0
      %p173 = por %p171, %p172
      %p174 = scmp.ne.s32.totalorder %s162, %s163
      %p175 = scmp.eq.s32.totalorder %s27, 1
      %p176 = por %p174, %p175
      %p178 = scmp.ne.s32.totalorder %s163, %s177
      %p179 = scmp.eq.s32.totalorder %s27, 0
      %p180 = por %p178, %p179
      %s181 = ssub.s32 %s21, %s28
      %p182 = scmp.eq.s32.totalorder %s181, 0
      %s184 = sadd.s32 %s183, 1
      %s185 = scalar_select %p182, %s183, %s184
      %p188 = pneg %p182
      %p189 = scmp.eq.s32.totalorder %s21, 1
      %p190 = por %p188, %p189
      %p191 = scmp.ne.s32.totalorder %s183, %s186
      %p192 = scmp.eq.s32.totalorder %s21, 0
      %p193 = por %p191, %p192
      %p194 = scmp.ne.s32.totalorder %s183, %s186
      %p195 = scmp.eq.s32.totalorder %s26, 1
      %p196 = por %p194, %p195
      %p197 = scmp.ne.s32.totalorder %s186, %s187
      %p198 = scmp.eq.s32.totalorder %s26, 0
      %p199 = por %p197, %p198
      %p200 = scmp.ne.s32.totalorder %s186, %s187
      %p201 = scmp.eq.s32.totalorder %s27, 1
      %p202 = por %p200, %p201
      %p204 = scmp.ne.s32.totalorder %s187, %s203
      %p205 = scmp.eq.s32.totalorder %s27, 0
      %p206 = por %p204, %p205
      %p207 = scmp.le.s32.totalorder 1, %s21
      %p208 = scmp.lt.s32.totalorder %s21, 3
      %p209 = pnand %p207, %p208
      %p210 = pneg %p209
      // Predicated region
      $region9: #{tpu_custom_call.1} parent=5 // pred_check
        _
      $region10: #{tpu_custom_call.1} parent=5 // pred_check_branch
        %212 = sbr.rel (%p209) target = $region12
      $region11: #{tpu_custom_call.1} parent=5 // pred_region
        %s213 = ssub.s32 %s21, 1
        // Predicated region
        $region13: #{tpu_custom_call.1} parent=11 // pred_check
          %p214 = pneg %p68
        $region14: #{tpu_custom_call.1} parent=11 // pred_check_branch
          %216 = sbr.rel (%p214) target = $region16
        $region15: #{tpu_custom_call.1} parent=11 // pred_region
          %s218 = ssub.s32 2048, 2048
          %219 = vsyncadd [#allocation7], %s218
          %s220 = sshll.u32 [#allocation6], 4
          %s221 = int_to_ptr.vmem [resolvable:$true] %s220
          %226 = dma.hbm_to_vmem [thread:$0]  %s1, 2048, %s221, [#allocation7], 128, 128, 8
        $region16: #{tpu_custom_call.1} parent=11 // pred_fallthru
          _
        // Predicated region
        $region17: #{tpu_custom_call.1} parent=11 // pred_check
          %p227 = pneg %p89
        $region18: #{tpu_custom_call.1} parent=11 // pred_check_branch
          %229 = sbr.rel (%p227) target = $region20
        $region19: #{tpu_custom_call.1} parent=11 // pred_region
          _
        $region20: #{tpu_custom_call.1} parent=11 // pred_fallthru
          _
        // Predicated region
        $region21: #{tpu_custom_call.1} parent=11 // pred_check
          %p230 = pneg %p110
        $region22: #{tpu_custom_call.1} parent=11 // pred_check_branch
          %232 = sbr.rel (%p230) target = $region24
        $region23: #{tpu_custom_call.1} parent=11 // pred_region
          %s234 = ssub.s32 9216, 9216
          %235 = vsyncadd [#allocation7], %s234
          %s236 = sshll.u32 [#allocation8], 4
          %s237 = int_to_ptr.vmem [resolvable:$true] %s236
          %242 = dma.hbm_to_vmem [thread:$0]  %s3, 9216, %s237, [#allocation7], 64, 64, 4
        $region24: #{tpu_custom_call.1} parent=11 // pred_fallthru
          _
        // Predicated region
        $region25: #{tpu_custom_call.1} parent=11 // pred_check
          %p243 = pneg %p131
        $region26: #{tpu_custom_call.1} parent=11 // pred_check_branch
          %245 = sbr.rel (%p243) target = $region28
        $region27: #{tpu_custom_call.1} parent=11 // pred_region
          _
        $region28: #{tpu_custom_call.1} parent=11 // pred_fallthru
          _
        // Predicated region
        $region29: #{tpu_custom_call.1} parent=11 // pred_check
          %p246 = pneg %p152
        $region30: #{tpu_custom_call.1} parent=11 // pred_check_branch
          %248 = sbr.rel (%p246) target = $region32
        $region31: #{tpu_custom_call.1} parent=11 // pred_region
          %s250 = ssub.s32 1024, 1024
          %251 = vsyncadd [#allocation10], %s250
          %s252 = sshll.u32 [#allocation9], 4
          %s253 = int_to_ptr.vmem [resolvable:$true] %s252
          %258 = dma.hbm_to_vmem [thread:$0]  %s5, 1024, %s253, [#allocation10], 64, 64, 4
        $region32: #{tpu_custom_call.1} parent=11 // pred_fallthru
          _
        // Predicated region
        $region33: #{tpu_custom_call.1} parent=11 // pred_check
          %p259 = pneg %p173
        $region34: #{tpu_custom_call.1} parent=11 // pred_check_branch
          %261 = sbr.rel (%p259) target = $region36
        $region35: #{tpu_custom_call.1} parent=11 // pred_region
          _
        $region36: #{tpu_custom_call.1} parent=11 // pred_fallthru
          _
      $region12: #{tpu_custom_call.1} parent=5 // pred_fallthru
        _
      %p262 = scmp.lt.s32.totalorder %s21, 2
      // Predicated region
      $region37: #{tpu_custom_call.1} parent=5 // pred_check
        %p263 = pneg %p262
      $region38: #{tpu_custom_call.1} parent=5 // pred_check_branch
        %265 = sbr.rel (%p263) target = $region40
      $region39: #{tpu_custom_call.1} parent=5 // pred_region
        // Predicated region
        $region41: #{tpu_custom_call.1} parent=39 // pred_check
          %p266 = pneg %p41
        $region42: #{tpu_custom_call.1} parent=39 // pred_check_branch
          %268 = sbr.rel (%p266) target = $region44
        $region43: #{tpu_custom_call.1} parent=39 // pred_region
          %s269 = sand.u32 %s31, 1
          %s270 = scalar_lea.sflag [#allocation4], %s269
          %s271 = sand.u32 %s31, 1
          %s272 = smul.addr %s271, 128
          %s273 = scalar_lea.vmem [#allocation3], %s272
          %s275 = ssub.s32 2048, 2048
          %276 = vsyncadd %s270, %s275
          %s277 = smul.addr %s21, 32
          %s278 = smul.addr %s277, 64
          %s279 = scalar_lea.hbm %s0, %s278
          %s280 = sshll.u32 %s273, 4
          %s281 = int_to_ptr.vmem [resolvable:$true] %s280
          %286 = dma.hbm_to_vmem [thread:$0]  %s279, 2048, %s281, %s270, 64, 64, 4
        $region44: #{tpu_custom_call.1} parent=39 // pred_fallthru
          _
      $region40: #{tpu_custom_call.1} parent=5 // pred_fallthru
        _
      %p287 = scmp.le.s32.totalorder 1, %s21
      %p288 = scmp.lt.s32.totalorder %s21, 3
      %p289 = pnand %p287, %p288
      %p290 = pneg %p289
      // Predicated region
      $region45: #{tpu_custom_call.1} parent=5 // pred_check
        _
      $region46: #{tpu_custom_call.1} parent=5 // pred_check_branch
        %292 = sbr.rel (%p289) target = $region48
      $region47: #{tpu_custom_call.1} parent=5 // pred_region
        %s293 = ssub.s32 %s21, 1
        %s294 = sand.u32 %s34, 1
        %s295 = scalar_lea.sflag [#allocation4], %s294
        %s296 = sand.u32 %s34, 1
        %s297 = smul.addr %s296, 128
        %s298 = scalar_lea.vmem [#allocation3], %s297
        // Predicated region
        $region49: #{tpu_custom_call.1} parent=47 // pred_check
          %p299 = pneg %p47
        $region50: #{tpu_custom_call.1} parent=47 // pred_check_branch
          %301 = sbr.rel (%p299) target = $region52
        $region51: #{tpu_custom_call.1} parent=47 // pred_region
          %302 = dma.done %s295, 2048
        $region52: #{tpu_custom_call.1} parent=47 // pred_fallthru
          _
        // Predicated region
        $region53: #{tpu_custom_call.1} parent=47 // pred_check
          %p303 = pneg %p68
        $region54: #{tpu_custom_call.1} parent=47 // pred_check_branch
          %305 = sbr.rel (%p303) target = $region56
        $region55: #{tpu_custom_call.1} parent=47 // pred_region
          %306 = dma.done [#allocation7], 2048
        $region56: #{tpu_custom_call.1} parent=47 // pred_fallthru
          _
        // Predicated region
        $region57: #{tpu_custom_call.1} parent=47 // pred_check
          %p307 = pneg %p110
        $region58: #{tpu_custom_call.1} parent=47 // pred_check_branch
          %309 = sbr.rel (%p307) target = $region60
        $region59: #{tpu_custom_call.1} parent=47 // pred_region
          %310 = dma.done [#allocation7], 9216
        $region60: #{tpu_custom_call.1} parent=47 // pred_fallthru
          _
        // Predicated region
        $region61: #{tpu_custom_call.1} parent=47 // pred_check
          %p311 = pneg %p152
        $region62: #{tpu_custom_call.1} parent=47 // pred_check_branch
          %313 = sbr.rel (%p311) target = $region64
        $region63: #{tpu_custom_call.1} parent=47 // pred_region
          %314 = dma.done [#allocation10], 1024
        $region64: #{tpu_custom_call.1} parent=47 // pred_fallthru
          _
        %s315 = sand.u32 %s34, 1
        %s316 = scalar_lea.sflag [#allocation4], %s315
        %s317 = sand.u32 %s34, 1
        %s318 = smul.addr %s317, 128
        %s319 = scalar_lea.vmem [#allocation3], %s318
        %p320 = pneg %p47
        %p321 = pneg %p44
        %p322 = pneg %p68
        %p323 = pneg %p65
        %p324 = pneg %p89
        %p325 = pneg %p86
        %p326 = pneg %p110
        %p327 = pneg %p107
        %p328 = pneg %p131
        %p329 = pneg %p128
        %p330 = pneg %p152
        %p331 = pneg %p149
        %p332 = pneg %p173
        %p333 = pneg %p170
        %p334 = pneg %p199
        %p335 = pneg %p196
        %s336 = sand.u32 %s186, 1
        %s337 = scalar_lea.sflag [#allocation5], %s336
        %s338 = sand.u32 %s186, 1
        %s339 = smul.addr %s338, 256
        %s340 = scalar_lea.vmem [#allocation11], %s339
        %v342 = vld [vmem:[%s298] sm:$0xf]
        %v343 = vld [vmem:[%s298 + $0x4] sm:$0xf]
        %v344 = vld [vmem:[%s298 + $0x8] sm:$0xf]
        %v345 = vld [vmem:[%s298 + $0xc] sm:$0xf]
        %v346 = vld [vmem:[%s298 + $0x10] sm:$0xf]
        %v347 = vld [vmem:[%s298 + $0x14] sm:$0xf]
        %v348 = vld [vmem:[%s298 + $0x18] sm:$0xf]
        %v349 = vld [vmem:[%s298 + $0x1c] sm:$0xf]
        %v350 = vld [vmem:[%s298 + $0x20] sm:$0xf]
        %v351 = vld [vmem:[%s298 + $0x24] sm:$0xf]
        %v352 = vld [vmem:[%s298 + $0x28] sm:$0xf]
        %v353 = vld [vmem:[%s298 + $0x2c] sm:$0xf]
        %v354 = vld [vmem:[%s298 + $0x30] sm:$0xf]
        %v355 = vld [vmem:[%s298 + $0x34] sm:$0xf]
        %v356 = vld [vmem:[%s298 + $0x38] sm:$0xf]
        %v357 = vld [vmem:[%s298 + $0x3c] sm:$0xf]
        %v358 = vld [vmem:[%s298 + $0x40] sm:$0xf]
        %v359 = vld [vmem:[%s298 + $0x44] sm:$0xf]
        %v360 = vld [vmem:[%s298 + $0x48] sm:$0xf]
        %v361 = vld [vmem:[%s298 + $0x4c] sm:$0xf]
        %v362 = vld [vmem:[%s298 + $0x50] sm:$0xf]
        %v363 = vld [vmem:[%s298 + $0x54] sm:$0xf]
        %v364 = vld [vmem:[%s298 + $0x58] sm:$0xf]
        %v365 = vld [vmem:[%s298 + $0x5c] sm:$0xf]
        %v366 = vld [vmem:[%s298 + $0x60] sm:$0xf]
        %v367 = vld [vmem:[%s298 + $0x64] sm:$0xf]
        %v368 = vld [vmem:[%s298 + $0x68] sm:$0xf]
        %v369 = vld [vmem:[%s298 + $0x6c] sm:$0xf]
        %v370 = vld [vmem:[%s298 + $0x70] sm:$0xf]
        %v371 = vld [vmem:[%s298 + $0x74] sm:$0xf]
        %v372 = vld [vmem:[%s298 + $0x78] sm:$0xf]
        %v373 = vld [vmem:[%s298 + $0x7c] sm:$0xf]
        %v374 = vld [vmem:[#allocation6] sm:$0xff]
        %v375 = vld [vmem:[#allocation6 + $0x8] sm:$0xff]
        %v376 = vld [vmem:[#allocation6 + $0x10] sm:$0xff]
        %v377 = vld [vmem:[#allocation6 + $0x18] sm:$0xff]
        %v378 = vld [vmem:[#allocation6 + $0x20] sm:$0xff]
        %v379 = vld [vmem:[#allocation6 + $0x28] sm:$0xff]
        %v380 = vld [vmem:[#allocation6 + $0x30] sm:$0xff]
        %v381 = vld [vmem:[#allocation6 + $0x38] sm:$0xff]
        %v382 = vld [vmem:[#allocation6 + $0x40] sm:$0xff]
        %v383 = vld [vmem:[#allocation6 + $0x48] sm:$0xff]
        %v384 = vld [vmem:[#allocation6 + $0x50] sm:$0xff]
        %v385 = vld [vmem:[#allocation6 + $0x58] sm:$0xff]
        %v386 = vld [vmem:[#allocation6 + $0x60] sm:$0xff]
        %v387 = vld [vmem:[#allocation6 + $0x68] sm:$0xff]
        %v388 = vld [vmem:[#allocation6 + $0x70] sm:$0xff]
        %v389 = vld [vmem:[#allocation6 + $0x78] sm:$0xff]
        %v422 = vunpack.c.l.b16 %v342
        %v423 = vunpack.c.l.b16 %v343
        %v424 = vunpack.c.l.b16 %v344
        %v425 = vunpack.c.l.b16 %v345
        %v426 = vunpack.c.l.b16 %v346
        %v427 = vunpack.c.l.b16 %v347
        %v428 = vunpack.c.l.b16 %v348
        %v429 = vunpack.c.l.b16 %v349
        %v430 = vunpack.c.l.b16 %v350
        %v431 = vunpack.c.l.b16 %v351
        %v432 = vunpack.c.l.b16 %v352
        %v433 = vunpack.c.l.b16 %v353
        %v434 = vunpack.c.l.b16 %v354
        %v435 = vunpack.c.l.b16 %v355
        %v436 = vunpack.c.l.b16 %v356
        %v437 = vunpack.c.l.b16 %v357
        %v438 = vunpack.c.l.b16 %v358
        %v439 = vunpack.c.l.b16 %v359
        %v440 = vunpack.c.l.b16 %v360
        %v441 = vunpack.c.l.b16 %v361
        %v442 = vunpack.c.l.b16 %v362
        %v443 = vunpack.c.l.b16 %v363
        %v444 = vunpack.c.l.b16 %v364
        %v445 = vunpack.c.l.b16 %v365
        %v446 = vunpack.c.l.b16 %v366
        %v447 = vunpack.c.l.b16 %v367
        %v448 = vunpack.c.l.b16 %v368
        %v449 = vunpack.c.l.b16 %v369
        %v450 = vunpack.c.l.b16 %v370
        %v451 = vunpack.c.l.b16 %v371
        %v452 = vunpack.c.l.b16 %v372
        %v453 = vunpack.c.l.b16 %v373
        %v454 = vpack.c.b16 %v423, %v422
        %v455 = vpack.c.b16 %v425, %v424
        %v456 = vpack.c.b16 %v427, %v426
        %v457 = vpack.c.b16 %v429, %v428
        %v458 = vpack.c.b16 %v431, %v430
        %v459 = vpack.c.b16 %v433, %v432
        %v460 = vpack.c.b16 %v435, %v434
        %v461 = vpack.c.b16 %v437, %v436
        %v462 = vpack.c.b16 %v439, %v438
        %v463 = vpack.c.b16 %v441, %v440
        %v464 = vpack.c.b16 %v443, %v442
        %v465 = vpack.c.b16 %v445, %v444
        %v466 = vpack.c.b16 %v447, %v446
        %v467 = vpack.c.b16 %v449, %v448
        %v468 = vpack.c.b16 %v451, %v450
        %v469 = vpack.c.b16 %v453, %v452
        %v502 = vunpack.c.l.b16 %v374
        %v503 = vunpack.c.h.b16 %v374
        %v504 = vunpack.c.l.b16 %v375
        %v505 = vunpack.c.h.b16 %v375
        %v506 = vunpack.c.l.b16 %v376
        %v507 = vunpack.c.h.b16 %v376
        %v508 = vunpack.c.l.b16 %v377
        %v509 = vunpack.c.h.b16 %v377
        %v510 = vunpack.c.l.b16 %v378
        %v511 = vunpack.c.h.b16 %v378
        %v512 = vunpack.c.l.b16 %v379
        %v513 = vunpack.c.h.b16 %v379
        %v514 = vunpack.c.l.b16 %v380
        %v515 = vunpack.c.h.b16 %v380
        %v516 = vunpack.c.l.b16 %v381
        %v517 = vunpack.c.h.b16 %v381
        %v518 = vunpack.c.l.b16 %v382
        %v519 = vunpack.c.h.b16 %v382
        %v520 = vunpack.c.l.b16 %v383
        %v521 = vunpack.c.h.b16 %v383
        %v522 = vunpack.c.l.b16 %v384
        %v523 = vunpack.c.h.b16 %v384
        %v524 = vunpack.c.l.b16 %v385
        %v525 = vunpack.c.h.b16 %v385
        %v526 = vunpack.c.l.b16 %v386
        %v527 = vunpack.c.h.b16 %v386
        %v528 = vunpack.c.l.b16 %v387
        %v529 = vunpack.c.h.b16 %v387
        %v530 = vunpack.c.l.b16 %v388
        %v531 = vunpack.c.h.b16 %v388
        %v532 = vunpack.c.l.b16 %v389
        %v533 = vunpack.c.h.b16 %v389
        %v534 = vpack.c.b16 %v504, %v502
        %v535 = vpack.c.b16 %v505, %v503
        %v536 = vpack.c.b16 %v508, %v506
        %v537 = vpack.c.b16 %v509, %v507
        %v538 = vpack.c.b16 %v512, %v510
        %v539 = vpack.c.b16 %v513, %v511
        %v540 = vpack.c.b16 %v516, %v514
        %v541 = vpack.c.b16 %v517, %v515
        %v542 = vpack.c.b16 %v520, %v518
        %v543 = vpack.c.b16 %v521, %v519
        %v544 = vpack.c.b16 %v524, %v522
        %v545 = vpack.c.b16 %v525, %v523
        %v546 = vpack.c.b16 %v528, %v526
        %v547 = vpack.c.b16 %v529, %v527
        %v548 = vpack.c.b16 %v532, %v530
        %v549 = vpack.c.b16 %v533, %v531
        %566 = vmatprep.subr.bf16.mxu0 %v535
        %567 = vmatpush1.bf16.msra.mxu0 %v534
        %568 = vmatprep.subr.bf16.mxu0 %v537
        %569 = vmatpush1.bf16.msra.mxu0 %v536
        %570 = vmatprep.subr.bf16.mxu0 %v539
        %571 = vmatpush1.bf16.msra.mxu0 %v538
        %572 = vmatprep.subr.bf16.mxu0 %v541
        %573 = vmatpush1.bf16.msra.mxu0 %v540
        %574 = vmatprep.subr.bf16.mxu0 %v543
        %575 = vmatpush1.bf16.msra.mxu0 %v542
        %576 = vmatprep.subr.bf16.mxu0 %v545
        %577 = vmatpush1.bf16.msra.mxu0 %v544
        %578 = vmatprep.subr.bf16.mxu0 %v547
        %579 = vmatpush1.bf16.msra.mxu0 %v546
        %580 = vmatprep.subr.bf16.mxu0 %v549
        %581 = vmatpush1.bf16.msra.mxu0 %v548
        %582 = vmatprep.subr.bf16.mxu0 0
        %583 = vmatpush1.bf16.msra.mxu0 0
        %584 = vmatprep.subr.bf16.mxu0 0
        %585 = vmatpush1.bf16.msra.mxu0 0
        %586 = vmatprep.subr.bf16.mxu0 0
        %587 = vmatpush1.bf16.msra.mxu0 0
        %588 = vmatprep.subr.bf16.mxu0 0
        %589 = vmatpush1.bf16.msra.mxu0 0
        %590 = vmatprep.subr.bf16.mxu0 0
        %591 = vmatpush1.bf16.msra.mxu0 0
        %592 = vmatprep.subr.bf16.mxu0 0
        %593 = vmatpush1.bf16.msra.mxu0 0
        %594 = vmatprep.subr.bf16.mxu0 0
        %595 = vmatpush1.bf16.msra.mxu0 0
        %596 = vmatprep.subr.bf16.mxu0 0
        %597 = vmatpush1.bf16.msra.mxu0 0
        %598 = vmatprep.mubr.bf16.mxu0 0
        %599 = vmatmul.mubr.bf16.gmra.mrb[0].mxu0 %v454
        %v600 = vpop.f32.mrb[0].mxu0
        %v601 = vadd.f32 0.0, %v600
        %v602 = vpop.f32.mrb[0].mxu0
        %v603 = vadd.f32 0.0, %v602
        %v604 = vpop.f32.mrb[0].mxu0
        %v605 = vadd.f32 0.0, %v604
        %v606 = vpop.f32.mrb[0].mxu0
        %v607 = vadd.f32 0.0, %v606
        %608 = vmatprep.mubr.bf16.mxu0 0
        %609 = vmatmul.mubr.bf16.gmra.mrb[0].mxu0 %v455
        %v610 = vpop.f32.mrb[0].mxu0
        %v611 = vadd.f32 0.0, %v610
        %v612 = vpop.f32.mrb[0].mxu0
        %v613 = vadd.f32 0.0, %v612
        %v614 = vpop.f32.mrb[0].mxu0
        %v615 = vadd.f32 0.0, %v614
        %v616 = vpop.f32.mrb[0].mxu0
        %v617 = vadd.f32 0.0, %v616
        %618 = vmatprep.mubr.bf16.mxu0 0
        %619 = vmatmul.mubr.bf16.gmra.mrb[0].mxu0 %v456
        %v620 = vpop.f32.mrb[0].mxu0
        %v621 = vadd.f32 0.0, %v620
        %v622 = vpop.f32.mrb[0].mxu0
        %v623 = vadd.f32 0.0, %v622
        %v624 = vpop.f32.mrb[0].mxu0
        %v625 = vadd.f32 0.0, %v624
        %v626 = vpop.f32.mrb[0].mxu0
        %v627 = vadd.f32 0.0, %v626
        %628 = vmatprep.mubr.bf16.mxu0 0
        %629 = vmatmul.mubr.bf16.gmra.mrb[0].mxu0 %v457
        %v630 = vpop.f32.mrb[0].mxu0
        %v631 = vadd.f32 0.0, %v630
        %v632 = vpop.f32.mrb[0].mxu0
        %v633 = vadd.f32 0.0, %v632
        %v634 = vpop.f32.mrb[0].mxu0
        %v635 = vadd.f32 0.0, %v634
        %v636 = vpop.f32.mrb[0].mxu0
        %v637 = vadd.f32 0.0, %v636
        %638 = vmatprep.mubr.bf16.mxu0 0
        %639 = vmatmul.mubr.bf16.gmra.mrb[0].mxu0 %v458
        %v640 = vpop.f32.mrb[0].mxu0
        %v641 = vadd.f32 0.0, %v640
        %v642 = vpop.f32.mrb[0].mxu0
        %v643 = vadd.f32 0.0, %v642
        %v644 = vpop.f32.mrb[0].mxu0
        %v645 = vadd.f32 0.0, %v644
        %v646 = vpop.f32.mrb[0].mxu0
        %v647 = vadd.f32 0.0, %v646
        %648 = vmatprep.mubr.bf16.mxu0 0
        %649 = vmatmul.mubr.bf16.gmra.mrb[0].mxu0 %v459
        %v650 = vpop.f32.mrb[0].mxu0
        %v651 = vadd.f32 0.0, %v650
        %v652 = vpop.f32.mrb[0].mxu0
        %v653 = vadd.f32 0.0, %v652
        %v654 = vpop.f32.mrb[0].mxu0
        %v655 = vadd.f32 0.0, %v654
        %v656 = vpop.f32.mrb[0].mxu0
        %v657 = vadd.f32 0.0, %v656
        %658 = vmatprep.mubr.bf16.mxu0 0
        %659 = vmatmul.mubr.bf16.gmra.mrb[0].mxu0 %v460
        %v660 = vpop.f32.mrb[0].mxu0
        %v661 = vadd.f32 0.0, %v660
        %v662 = vpop.f32.mrb[0].mxu0
        %v663 = vadd.f32 0.0, %v662
        %v664 = vpop.f32.mrb[0].mxu0
        %v665 = vadd.f32 0.0, %v664
        %v666 = vpop.f32.mrb[0].mxu0
        %v667 = vadd.f32 0.0, %v666
        %668 = vmatprep.mubr.bf16.mxu0 0
        %669 = vmatmul.mubr.bf16.gmra.mrb[0].mxu0 %v461
        %v670 = vpop.f32.mrb[0].mxu0
        %v671 = vadd.f32 0.0, %v670
        %v672 = vpop.f32.mrb[0].mxu0
        %v673 = vadd.f32 0.0, %v672
        %v674 = vpop.f32.mrb[0].mxu0
        %v675 = vadd.f32 0.0, %v674
        %v676 = vpop.f32.mrb[0].mxu0
        %v677 = vadd.f32 0.0, %v676
        %678 = vmatprep.mubr.bf16.mxu0 0
        %679 = vmatmul.mubr.bf16.gmra.mrb[0].mxu0 %v462
        %v680 = vpop.f32.mrb[0].mxu0
        %v681 = vadd.f32 0.0, %v680
        %v682 = vpop.f32.mrb[0].mxu0
        %v683 = vadd.f32 0.0, %v682
        %v684 = vpop.f32.mrb[0].mxu0
        %v685 = vadd.f32 0.0, %v684
        %v686 = vpop.f32.mrb[0].mxu0
        %v687 = vadd.f32 0.0, %v686
        %688 = vmatprep.mubr.bf16.mxu0 0
        %689 = vmatmul.mubr.bf16.gmra.mrb[0].mxu0 %v463
        %v690 = vpop.f32.mrb[0].mxu0
        %v691 = vadd.f32 0.0, %v690
        %v692 = vpop.f32.mrb[0].mxu0
        %v693 = vadd.f32 0.0, %v692
        %v694 = vpop.f32.mrb[0].mxu0
        %v695 = vadd.f32 0.0, %v694
        %v696 = vpop.f32.mrb[0].mxu0
        %v697 = vadd.f32 0.0, %v696
        %698 = vmatprep.mubr.bf16.mxu0 0
        %699 = vmatmul.mubr.bf16.gmra.mrb[0].mxu0 %v464
        %v700 = vpop.f32.mrb[0].mxu0
        %v701 = vadd.f32 0.0, %v700
        %v702 = vpop.f32.mrb[0].mxu0
        %v703 = vadd.f32 0.0, %v702
        %v704 = vpop.f32.mrb[0].mxu0
        %v705 = vadd.f32 0.0, %v704
        %v706 = vpop.f32.mrb[0].mxu0
        %v707 = vadd.f32 0.0, %v706
        %708 = vmatprep.mubr.bf16.mxu0 0
        %709 = vmatmul.mubr.bf16.gmra.mrb[0].mxu0 %v465
        %v710 = vpop.f32.mrb[0].mxu0
        %v711 = vadd.f32 0.0, %v710
        %v712 = vpop.f32.mrb[0].mxu0
        %v713 = vadd.f32 0.0, %v712
        %v714 = vpop.f32.mrb[0].mxu0
        %v715 = vadd.f32 0.0, %v714
        %v716 = vpop.f32.mrb[0].mxu0
        %v717 = vadd.f32 0.0, %v716
        %718 = vmatprep.mubr.bf16.mxu0 0
        %719 = vmatmul.mubr.bf16.gmra.mrb[0].mxu0 %v466
        %v720 = vpop.f32.mrb[0].mxu0
        %v721 = vadd.f32 0.0, %v720
        %v722 = vpop.f32.mrb[0].mxu0
        %v723 = vadd.f32 0.0, %v722
        %v724 = vpop.f32.mrb[0].mxu0
        %v725 = vadd.f32 0.0, %v724
        %v726 = vpop.f32.mrb[0].mxu0
        %v727 = vadd.f32 0.0, %v726
        %728 = vmatprep.mubr.bf16.mxu0 0
        %729 = vmatmul.mubr.bf16.gmra.mrb[0].mxu0 %v467
        %v730 = vpop.f32.mrb[0].mxu0
        %v731 = vadd.f32 0.0, %v730
        %v732 = vpop.f32.mrb[0].mxu0
        %v733 = vadd.f32 0.0, %v732
        %v734 = vpop.f32.mrb[0].mxu0
        %v735 = vadd.f32 0.0, %v734
        %v736 = vpop.f32.mrb[0].mxu0
        %v737 = vadd.f32 0.0, %v736
        %738 = vmatprep.mubr.bf16.mxu0 0
        %739 = vmatmul.mubr.bf16.gmra.mrb[0].mxu0 %v468
        %v740 = vpop.f32.mrb[0].mxu0
        %v741 = vadd.f32 0.0, %v740
        %v742 = vpop.f32.mrb[0].mxu0
        %v743 = vadd.f32 0.0, %v742
        %v744 = vpop.f32.mrb[0].mxu0
        %v745 = vadd.f32 0.0, %v744
        %v746 = vpop.f32.mrb[0].mxu0
        %v747 = vadd.f32 0.0, %v746
        %748 = vmatprep.mubr.bf16.mxu0 0
        %749 = vmatmul.mubr.bf16.gmra.mrb[0].mxu0 %v469
        %v750 = vpop.f32.mrb[0].mxu0
        %v751 = vadd.f32 0.0, %v750
        %v752 = vpop.f32.mrb[0].mxu0
        %v753 = vadd.f32 0.0, %v752
        %v754 = vpop.f32.mrb[0].mxu0
        %v755 = vadd.f32 0.0, %v754
        %v756 = vpop.f32.mrb[0].mxu0
        %v757 = vadd.f32 0.0, %v756
        %758 = vdwg.mxu0
        %v759 = vld [vmem:[%s2] sm:$0x1]
        %v761 = vlaneseq
        %v762 = vshrl.u32 %v761, 7
        %v763 = vsub.s32 0, %v762
        %v764 = vrot.slane %v759, %v763
        %v766 = vadd.f32 %v601, %v764
        %v767 = vadd.f32 %v605, %v764
        %v768 = vadd.f32 %v611, %v764
        %v769 = vadd.f32 %v615, %v764
        %v770 = vadd.f32 %v621, %v764
        %v771 = vadd.f32 %v625, %v764
        %v772 = vadd.f32 %v631, %v764
        %v773 = vadd.f32 %v635, %v764
        %v774 = vadd.f32 %v641, %v764
        %v775 = vadd.f32 %v645, %v764
        %v776 = vadd.f32 %v651, %v764
        %v777 = vadd.f32 %v655, %v764
        %v778 = vadd.f32 %v661, %v764
        %v779 = vadd.f32 %v665, %v764
        %v780 = vadd.f32 %v671, %v764
        %v781 = vadd.f32 %v675, %v764
        %v782 = vadd.f32 %v681, %v764
        %v783 = vadd.f32 %v685, %v764
        %v784 = vadd.f32 %v691, %v764
        %v785 = vadd.f32 %v695, %v764
        %v786 = vadd.f32 %v701, %v764
        %v787 = vadd.f32 %v705, %v764
        %v788 = vadd.f32 %v711, %v764
        %v789 = vadd.f32 %v715, %v764
        %v790 = vadd.f32 %v721, %v764
        %v791 = vadd.f32 %v725, %v764
        %v792 = vadd.f32 %v731, %v764
        %v793 = vadd.f32 %v735, %v764
        %v794 = vadd.f32 %v741, %v764
        %v795 = vadd.f32 %v745, %v764
        %v796 = vadd.f32 %v751, %v764
        %v797 = vadd.f32 %v755, %v764
        %v798 = vsub.f32 0.0, %v766
        %v799 = vsub.f32 0.0, %v767
        %v800 = vsub.f32 0.0, %v768
        %v801 = vsub.f32 0.0, %v769
        %v802 = vsub.f32 0.0, %v770
        %v803 = vsub.f32 0.0, %v771
        %v804 = vsub.f32 0.0, %v772
        %v805 = vsub.f32 0.0, %v773
        %v806 = vsub.f32 0.0, %v774
        %v807 = vsub.f32 0.0, %v775
        %v808 = vsub.f32 0.0, %v776
        %v809 = vsub.f32 0.0, %v777
        %v810 = vsub.f32 0.0, %v778
        %v811 = vsub.f32 0.0, %v779
        %v812 = vsub.f32 0.0, %v780
        %v813 = vsub.f32 0.0, %v781
        %v814 = vsub.f32 0.0, %v782
        %v815 = vsub.f32 0.0, %v783
        %v816 = vsub.f32 0.0, %v784
        %v817 = vsub.f32 0.0, %v785
        %v818 = vsub.f32 0.0, %v786
        %v819 = vsub.f32 0.0, %v787
        %v820 = vsub.f32 0.0, %v788
        %v821 = vsub.f32 0.0, %v789
        %v822 = vsub.f32 0.0, %v790
        %v823 = vsub.f32 0.0, %v791
        %v824 = vsub.f32 0.0, %v792
        %v825 = vsub.f32 0.0, %v793
        %v826 = vsub.f32 0.0, %v794
        %v827 = vsub.f32 0.0, %v795
        %v828 = vsub.f32 0.0, %v796
        %v829 = vsub.f32 0.0, %v797
        %v830 = vmul.f32 %v798, 1.442695
        %v831 = vpow.pop %v830
        %v832 = vmul.f32 %v799, 1.442695
        %v833 = vpow.pop %v832
        %v834 = vmul.f32 %v800, 1.442695
        %v835 = vpow.pop %v834
        %v836 = vmul.f32 %v801, 1.442695
        %v837 = vpow.pop %v836
        %v838 = vmul.f32 %v802, 1.442695
        %v839 = vpow.pop %v838
        %v840 = vmul.f32 %v803, 1.442695
        %v841 = vpow.pop %v840
        %v842 = vmul.f32 %v804, 1.442695
        %v843 = vpow.pop %v842
        %v844 = vmul.f32 %v805, 1.442695
        %v845 = vpow.pop %v844
        %v846 = vmul.f32 %v806, 1.442695
        %v847 = vpow.pop %v846
        %v848 = vmul.f32 %v807, 1.442695
        %v849 = vpow.pop %v848
        %v850 = vmul.f32 %v808, 1.442695
        %v851 = vpow.pop %v850
        %v852 = vmul.f32 %v809, 1.442695
        %v853 = vpow.pop %v852
        %v854 = vmul.f32 %v810, 1.442695
        %v855 = vpow.pop %v854
        %v856 = vmul.f32 %v811, 1.442695
        %v857 = vpow.pop %v856
        %v858 = vmul.f32 %v812, 1.442695
        %v859 = vpow.pop %v858
        %v860 = vmul.f32 %v813, 1.442695
        %v861 = vpow.pop %v860
        %v862 = vmul.f32 %v814, 1.442695
        %v863 = vpow.pop %v862
        %v864 = vmul.f32 %v815, 1.442695
        %v865 = vpow.pop %v864
        %v866 = vmul.f32 %v816, 1.442695
        %v867 = vpow.pop %v866
        %v868 = vmul.f32 %v817, 1.442695
        %v869 = vpow.pop %v868
        %v870 = vmul.f32 %v818, 1.442695
        %v871 = vpow.pop %v870
        %v872 = vmul.f32 %v819, 1.442695
        %v873 = vpow.pop %v872
        %v874 = vmul.f32 %v820, 1.442695
        %v875 = vpow.pop %v874
        %v876 = vmul.f32 %v821, 1.442695
        %v877 = vpow.pop %v876
        %v878 = vmul.f32 %v822, 1.442695
        %v879 = vpow.pop %v878
        %v880 = vmul.f32 %v823, 1.442695
        %v881 = vpow.pop %v880
        %v882 = vmul.f32 %v824, 1.442695
        %v883 = vpow.pop %v882
        %v884 = vmul.f32 %v825, 1.442695
        %v885 = vpow.pop %v884
        %v886 = vmul.f32 %v826, 1.442695
        %v887 = vpow.pop %v886
        %v888 = vmul.f32 %v827, 1.442695
        %v889 = vpow.pop %v888
        %v890 = vmul.f32 %v828, 1.442695
        %v891 = vpow.pop %v890
        %v892 = vmul.f32 %v829, 1.442695
        %v893 = vpow.pop %v892
        %v894 = vadd.f32 %v831, 1.0
        %v895 = vadd.f32 %v833, 1.0
        %v896 = vadd.f32 %v835, 1.0
        %v897 = vadd.f32 %v837, 1.0
        %v898 = vadd.f32 %v839, 1.0
        %v899 = vadd.f32 %v841, 1.0
        %v900 = vadd.f32 %v843, 1.0
        %v901 = vadd.f32 %v845, 1.0
        %v902 = vadd.f32 %v847, 1.0
        %v903 = vadd.f32 %v849, 1.0
        %v904 = vadd.f32 %v851, 1.0
        %v905 = vadd.f32 %v853, 1.0
        %v906 = vadd.f32 %v855, 1.0
        %v907 = vadd.f32 %v857, 1.0
        %v908 = vadd.f32 %v859, 1.0
        %v909 = vadd.f32 %v861, 1.0
        %v910 = vadd.f32 %v863, 1.0
        %v911 = vadd.f32 %v865, 1.0
        %v912 = vadd.f32 %v867, 1.0
        %v913 = vadd.f32 %v869, 1.0
        %v914 = vadd.f32 %v871, 1.0
        %v915 = vadd.f32 %v873, 1.0
        %v916 = vadd.f32 %v875, 1.0
        %v917 = vadd.f32 %v877, 1.0
        %v918 = vadd.f32 %v879, 1.0
        %v919 = vadd.f32 %v881, 1.0
        %v920 = vadd.f32 %v883, 1.0
        %v921 = vadd.f32 %v885, 1.0
        %v922 = vadd.f32 %v887, 1.0
        %v923 = vadd.f32 %v889, 1.0
        %v924 = vadd.f32 %v891, 1.0
        %v925 = vadd.f32 %v893, 1.0
        %v926 = vrcp.pop %v894
        %v927 = vrcp.pop %v895
        %v928 = vrcp.pop %v896
        %v929 = vrcp.pop %v897
        %v930 = vrcp.pop %v898
        %v931 = vrcp.pop %v899
        %v932 = vrcp.pop %v900
        %v933 = vrcp.pop %v901
        %v934 = vrcp.pop %v902
        %v935 = vrcp.pop %v903
        %v936 = vrcp.pop %v904
        %v937 = vrcp.pop %v905
        %v938 = vrcp.pop %v906
        %v939 = vrcp.pop %v907
        %v940 = vrcp.pop %v908
        %v941 = vrcp.pop %v909
        %v942 = vrcp.pop %v910
        %v943 = vrcp.pop %v911
        %v944 = vrcp.pop %v912
        %v945 = vrcp.pop %v913
        %v946 = vrcp.pop %v914
        %v947 = vrcp.pop %v915
        %v948 = vrcp.pop %v916
        %v949 = vrcp.pop %v917
        %v950 = vrcp.pop %v918
        %v951 = vrcp.pop %v919
        %v952 = vrcp.pop %v920
        %v953 = vrcp.pop %v921
        %v954 = vrcp.pop %v922
        %v955 = vrcp.pop %v923
        %v956 = vrcp.pop %v924
        %v957 = vrcp.pop %v925
        %v958 = vmul.f32 %v766, %v926
        %v959 = vmul.f32 %v767, %v927
        %v960 = vmul.f32 %v768, %v928
        %v961 = vmul.f32 %v769, %v929
        %v962 = vmul.f32 %v770, %v930
        %v963 = vmul.f32 %v771, %v931
        %v964 = vmul.f32 %v772, %v932
        %v965 = vmul.f32 %v773, %v933
        %v966 = vmul.f32 %v774, %v934
        %v967 = vmul.f32 %v775, %v935
        %v968 = vmul.f32 %v776, %v936
        %v969 = vmul.f32 %v777, %v937
        %v970 = vmul.f32 %v778, %v938
        %v971 = vmul.f32 %v779, %v939
        %v972 = vmul.f32 %v780, %v940
        %v973 = vmul.f32 %v781, %v941
        %v974 = vmul.f32 %v782, %v942
        %v975 = vmul.f32 %v783, %v943
        %v976 = vmul.f32 %v784, %v944
        %v977 = vmul.f32 %v785, %v945
        %v978 = vmul.f32 %v786, %v946
        %v979 = vmul.f32 %v787, %v947
        %v980 = vmul.f32 %v788, %v948
        %v981 = vmul.f32 %v789, %v949
        %v982 = vmul.f32 %v790, %v950
        %v983 = vmul.f32 %v791, %v951
        %v984 = vmul.f32 %v792, %v952
        %v985 = vmul.f32 %v793, %v953
        %v986 = vmul.f32 %v794, %v954
        %v987 = vmul.f32 %v795, %v955
        %v988 = vmul.f32 %v796, %v956
        %v989 = vmul.f32 %v797, %v957
        %990 = vst [vmem:[#allocation2] sm:$0xff] 0.0
        %991 = vst [vmem:[#allocation2 + $0x8] sm:$0xff] 0.0
        %992 = vst [vmem:[#allocation2 + $0x10] sm:$0xff] 0.0
        %993 = vst [vmem:[#allocation2 + $0x18] sm:$0xff] 0.0
        %994 = vst [vmem:[#allocation2 + $0x20] sm:$0xff] 0.0
        %995 = vst [vmem:[#allocation2 + $0x28] sm:$0xff] 0.0
        %996 = vst [vmem:[#allocation2 + $0x30] sm:$0xff] 0.0
        %997 = vst [vmem:[#allocation2 + $0x38] sm:$0xff] 0.0
        %998 = vst [vmem:[#allocation2 + $0x40] sm:$0xff] 0.0
        %999 = vst [vmem:[#allocation2 + $0x48] sm:$0xff] 0.0
        %1000 = vst [vmem:[#allocation2 + $0x50] sm:$0xff] 0.0
        %1001 = vst [vmem:[#allocation2 + $0x58] sm:$0xff] 0.0
        %1002 = vst [vmem:[#allocation2 + $0x60] sm:$0xff] 0.0
        %1003 = vst [vmem:[#allocation2 + $0x68] sm:$0xff] 0.0
        %1004 = vst [vmem:[#allocation2 + $0x70] sm:$0xff] 0.0
        %1005 = vst [vmem:[#allocation2 + $0x78] sm:$0xff] 0.0
        %1006 = vst [vmem:[#allocation2 + $0x80] sm:$0xff] 0.0
        %1007 = vst [vmem:[#allocation2 + $0x88] sm:$0xff] 0.0
        %1008 = vst [vmem:[#allocation2 + $0x90] sm:$0xff] 0.0
        %1009 = vst [vmem:[#allocation2 + $0x98] sm:$0xff] 0.0
        %1010 = vst [vmem:[#allocation2 + $0xa0] sm:$0xff] 0.0
        %1011 = vst [vmem:[#allocation2 + $0xa8] sm:$0xff] 0.0
        %1012 = vst [vmem:[#allocation2 + $0xb0] sm:$0xff] 0.0
        %1013 = vst [vmem:[#allocation2 + $0xb8] sm:$0xff] 0.0
        %1014 = vst [vmem:[#allocation2 + $0xc0] sm:$0xff] 0.0
        %1015 = vst [vmem:[#allocation2 + $0xc8] sm:$0xff] 0.0
        %1016 = vst [vmem:[#allocation2 + $0xd0] sm:$0xff] 0.0
        %1017 = vst [vmem:[#allocation2 + $0xd8] sm:$0xff] 0.0
        %1018 = vst [vmem:[#allocation2 + $0xe0] sm:$0xff] 0.0
        %1019 = vst [vmem:[#allocation2 + $0xe8] sm:$0xff] 0.0
        %1020 = vst [vmem:[#allocation2 + $0xf0] sm:$0xff] 0.0
        %1021 = vst [vmem:[#allocation2 + $0xf8] sm:$0xff] 0.0
        %1022 = vst [vmem:[#allocation2 + $0x100] sm:$0xff] 0.0
        %1023 = vst [vmem:[#allocation2 + $0x108] sm:$0xff] 0.0
        %1024 = vst [vmem:[#allocation2 + $0x110] sm:$0xff] 0.0
        %1025 = vst [vmem:[#allocation2 + $0x118] sm:$0xff] 0.0
        %1026 = vst [vmem:[#allocation2 + $0x120] sm:$0xff] 0.0
        %1027 = vst [vmem:[#allocation2 + $0x128] sm:$0xff] 0.0
        %1028 = vst [vmem:[#allocation2 + $0x130] sm:$0xff] 0.0
        %1029 = vst [vmem:[#allocation2 + $0x138] sm:$0xff] 0.0
        %1030 = vst [vmem:[#allocation2 + $0x140] sm:$0xff] 0.0
        %1031 = vst [vmem:[#allocation2 + $0x148] sm:$0xff] 0.0
        %1032 = vst [vmem:[#allocation2 + $0x150] sm:$0xff] 0.0
        %1033 = vst [vmem:[#allocation2 + $0x158] sm:$0xff] 0.0
        %1034 = vst [vmem:[#allocation2 + $0x160] sm:$0xff] 0.0
        %1035 = vst [vmem:[#allocation2 + $0x168] sm:$0xff] 0.0
        %1036 = vst [vmem:[#allocation2 + $0x170] sm:$0xff] 0.0
        %1037 = vst [vmem:[#allocation2 + $0x178] sm:$0xff] 0.0
        %1038 = vst [vmem:[#allocation2 + $0x180] sm:$0xff] 0.0
        %1039 = vst [vmem:[#allocation2 + $0x188] sm:$0xff] 0.0
        %1040 = vst [vmem:[#allocation2 + $0x190] sm:$0xff] 0.0
        %1041 = vst [vmem:[#allocation2 + $0x198] sm:$0xff] 0.0
        %1042 = vst [vmem:[#allocation2 + $0x1a0] sm:$0xff] 0.0
        %1043 = vst [vmem:[#allocation2 + $0x1a8] sm:$0xff] 0.0
        %s1044 = scalar_lea.vmem [#allocation2], 24
        %1045 = vst [vmem:[%s1044 + $0x1] sm:$0xff] %v958
        %1046 = vst [vmem:[%s1044 + $0x9] sm:$0xff] %v959
        %1047 = vst [vmem:[%s1044 + $0x19] sm:$0xff] %v960
        %1048 = vst [vmem:[%s1044 + $0x21] sm:$0xff] %v961
        %1049 = vst [vmem:[%s1044 + $0x31] sm:$0xff] %v962
        %1050 = vst [vmem:[%s1044 + $0x39] sm:$0xff] %v963
        %1051 = vst [vmem:[%s1044 + $0x49] sm:$0xff] %v964
        %1052 = vst [vmem:[%s1044 + $0x51] sm:$0xff] %v965
        %1053 = vst [vmem:[%s1044 + $0x61] sm:$0xff] %v966
        %1054 = vst [vmem:[%s1044 + $0x69] sm:$0xff] %v967
        %1055 = vst [vmem:[%s1044 + $0x79] sm:$0xff] %v968
        %1056 = vst [vmem:[%s1044 + $0x81] sm:$0xff] %v969
        %1057 = vst [vmem:[%s1044 + $0x91] sm:$0xff] %v970
        %1058 = vst [vmem:[%s1044 + $0x99] sm:$0xff] %v971
        %1059 = vst [vmem:[%s1044 + $0xa9] sm:$0xff] %v972
        %1060 = vst [vmem:[%s1044 + $0xb1] sm:$0xff] %v973
        %1061 = vst [vmem:[%s1044 + $0xc1] sm:$0xff] %v974
        %1062 = vst [vmem:[%s1044 + $0xc9] sm:$0xff] %v975
        %1063 = vst [vmem:[%s1044 + $0xd9] sm:$0xff] %v976
        %1064 = vst [vmem:[%s1044 + $0xe1] sm:$0xff] %v977
        %1065 = vst [vmem:[%s1044 + $0xf1] sm:$0xff] %v978
        %1066 = vst [vmem:[%s1044 + $0xf9] sm:$0xff] %v979
        %1067 = vst [vmem:[%s1044 + $0x109] sm:$0xff] %v980
        %1068 = vst [vmem:[%s1044 + $0x111] sm:$0xff] %v981
        %1069 = vst [vmem:[%s1044 + $0x121] sm:$0xff] %v982
        %1070 = vst [vmem:[%s1044 + $0x129] sm:$0xff] %v983
        %1071 = vst [vmem:[%s1044 + $0x139] sm:$0xff] %v984
        %1072 = vst [vmem:[%s1044 + $0x141] sm:$0xff] %v985
        %1073 = vst [vmem:[%s1044 + $0x151] sm:$0xff] %v986
        %1074 = vst [vmem:[%s1044 + $0x159] sm:$0xff] %v987
        %1075 = vst [vmem:[%s1044 + $0x169] sm:$0xff] %v988
        %1076 = vst [vmem:[%s1044 + $0x171] sm:$0xff] %v989
        %v1077 = vld [vmem:[#allocation2] sm:$0xff]
        %v1078 = vld [vmem:[#allocation2 + $0x8] sm:$0xff]
        %v1079 = vld [vmem:[#allocation2 + $0x18] sm:$0xff]
        %v1080 = vld [vmem:[#allocation2 + $0x20] sm:$0xff]
        %v1081 = vld [vmem:[#allocation2 + $0x30] sm:$0xff]
        %v1082 = vld [vmem:[#allocation2 + $0x38] sm:$0xff]
        %v1083 = vld [vmem:[#allocation2 + $0x48] sm:$0xff]
        %v1084 = vld [vmem:[#allocation2 + $0x50] sm:$0xff]
        %v1085 = vld [vmem:[#allocation2 + $0x60] sm:$0xff]
        %v1086 = vld [vmem:[#allocation2 + $0x68] sm:$0xff]
        %v1087 = vld [vmem:[#allocation2 + $0x78] sm:$0xff]
        %v1088 = vld [vmem:[#allocation2 + $0x80] sm:$0xff]
        %v1089 = vld [vmem:[#allocation2 + $0x90] sm:$0xff]
        %v1090 = vld [vmem:[#allocation2 + $0x98] sm:$0xff]
        %v1091 = vld [vmem:[#allocation2 + $0xa8] sm:$0xff]
        %v1092 = vld [vmem:[#allocation2 + $0xb0] sm:$0xff]
        %v1093 = vld [vmem:[#allocation2 + $0xc0] sm:$0xff]
        %v1094 = vld [vmem:[#allocation2 + $0xc8] sm:$0xff]
        %v1095 = vld [vmem:[#allocation2 + $0xd8] sm:$0xff]
        %v1096 = vld [vmem:[#allocation2 + $0xe0] sm:$0xff]
        %v1097 = vld [vmem:[#allocation2 + $0xf0] sm:$0xff]
        %v1098 = vld [vmem:[#allocation2 + $0xf8] sm:$0xff]
        %v1099 = vld [vmem:[#allocation2 + $0x108] sm:$0xff]
        %v1100 = vld [vmem:[#allocation2 + $0x110] sm:$0xff]
        %v1101 = vld [vmem:[#allocation2 + $0x120] sm:$0xff]
        %v1102 = vld [vmem:[#allocation2 + $0x128] sm:$0xff]
        %v1103 = vld [vmem:[#allocation2 + $0x138] sm:$0xff]
        %v1104 = vld [vmem:[#allocation2 + $0x140] sm:$0xff]
        %v1105 = vld [vmem:[#allocation2 + $0x150] sm:$0xff]
        %v1106 = vld [vmem:[#allocation2 + $0x158] sm:$0xff]
        %v1107 = vld [vmem:[#allocation2 + $0x168] sm:$0xff]
        %v1108 = vld [vmem:[#allocation2 + $0x170] sm:$0xff]
        %v1109 = vpack.c.bf16 %v1078, %v1077
        %v1110 = vpack.c.bf16 %v1080, %v1079
        %v1111 = vpack.c.bf16 %v1082, %v1081
        %v1112 = vpack.c.bf16 %v1084, %v1083
        %v1113 = vpack.c.bf16 %v1086, %v1085
        %v1114 = vpack.c.bf16 %v1088, %v1087
        %v1115 = vpack.c.bf16 %v1090, %v1089
        %v1116 = vpack.c.bf16 %v1092, %v1091
        %v1117 = vpack.c.bf16 %v1094, %v1093
        %v1118 = vpack.c.bf16 %v1096, %v1095
        %v1119 = vpack.c.bf16 %v1098, %v1097
        %v1120 = vpack.c.bf16 %v1100, %v1099
        %v1121 = vpack.c.bf16 %v1102, %v1101
        %v1122 = vpack.c.bf16 %v1104, %v1103
        %v1123 = vpack.c.bf16 %v1106, %v1105
        %v1124 = vpack.c.bf16 %v1108, %v1107
        %v1125 = vld [vmem:[#allocation8] sm:$0xf]
        %v1126 = vld [vmem:[#allocation8 + $0x4] sm:$0xf]
        %v1127 = vld [vmem:[#allocation8 + $0x8] sm:$0xf]
        %v1128 = vld [vmem:[#allocation8 + $0xc] sm:$0xf]
        %v1129 = vld [vmem:[#allocation8 + $0x10] sm:$0xf]
        %v1130 = vld [vmem:[#allocation8 + $0x14] sm:$0xf]
        %v1131 = vld [vmem:[#allocation8 + $0x18] sm:$0xf]
        %v1132 = vld [vmem:[#allocation8 + $0x1c] sm:$0xf]
        %v1133 = vld [vmem:[#allocation8 + $0x20] sm:$0xf]
        %v1134 = vld [vmem:[#allocation8 + $0x24] sm:$0xf]
        %v1135 = vld [vmem:[#allocation8 + $0x28] sm:$0xf]
        %v1136 = vld [vmem:[#allocation8 + $0x2c] sm:$0xf]
        %v1137 = vld [vmem:[#allocation8 + $0x30] sm:$0xf]
        %v1138 = vld [vmem:[#allocation8 + $0x34] sm:$0xf]
        %v1139 = vld [vmem:[#allocation8 + $0x38] sm:$0xf]
        %v1140 = vld [vmem:[#allocation8 + $0x3c] sm:$0xf]
        %v1141 = vld [vmem:[#allocation2 + $0x1] sm:$0xff]
        %v1142 = vld [vmem:[#allocation2 + $0x9] sm:$0xff]
        %v1143 = vld [vmem:[#allocation2 + $0x19] sm:$0xff]
        %v1144 = vld [vmem:[#allocation2 + $0x21] sm:$0xff]
        %v1145 = vld [vmem:[#allocation2 + $0x31] sm:$0xff]
        %v1146 = vld [vmem:[#allocation2 + $0x39] sm:$0xff]
        %v1147 = vld [vmem:[#allocation2 + $0x49] sm:$0xff]
        %v1148 = vld [vmem:[#allocation2 + $0x51] sm:$0xff]
        %v1149 = vld [vmem:[#allocation2 + $0x61] sm:$0xff]
        %v1150 = vld [vmem:[#allocation2 + $0x69] sm:$0xff]
        %v1151 = vld [vmem:[#allocation2 + $0x79] sm:$0xff]
        %v1152 = vld [vmem:[#allocation2 + $0x81] sm:$0xff]
        %v1153 = vld [vmem:[#allocation2 + $0x91] sm:$0xff]
        %v1154 = vld [vmem:[#allocation2 + $0x99] sm:$0xff]
        %v1155 = vld [vmem:[#allocation2 + $0xa9] sm:$0xff]
        %v1156 = vld [vmem:[#allocation2 + $0xb1] sm:$0xff]
        %v1157 = vld [vmem:[#allocation2 + $0xc1] sm:$0xff]
        %v1158 = vld [vmem:[#allocation2 + $0xc9] sm:$0xff]
        %v1159 = vld [vmem:[#allocation2 + $0xd9] sm:$0xff]
        %v1160 = vld [vmem:[#allocation2 + $0xe1] sm:$0xff]
        %v1161 = vld [vmem:[#allocation2 + $0xf1] sm:$0xff]
        %v1162 = vld [vmem:[#allocation2 + $0xf9] sm:$0xff]
        %v1163 = vld [vmem:[#allocation2 + $0x109] sm:$0xff]
        %v1164 = vld [vmem:[#allocation2 + $0x111] sm:$0xff]
        %v1165 = vld [vmem:[#allocation2 + $0x121] sm:$0xff]
        %v1166 = vld [vmem:[#allocation2 + $0x129] sm:$0xff]
        %v1167 = vld [vmem:[#allocation2 + $0x139] sm:$0xff]
        %v1168 = vld [vmem:[#allocation2 + $0x141] sm:$0xff]
        %v1169 = vld [vmem:[#allocation2 + $0x151] sm:$0xff]
        %v1170 = vld [vmem:[#allocation2 + $0x159] sm:$0xff]
        %v1171 = vld [vmem:[#allocation2 + $0x169] sm:$0xff]
        %v1172 = vld [vmem:[#allocation2 + $0x171] sm:$0xff]
        %v1173 = vpack.c.bf16 %v1142, %v1141
        %v1174 = vpack.c.bf16 %v1144, %v1143
        %v1175 = vpack.c.bf16 %v1146, %v1145
        %v1176 = vpack.c.bf16 %v1148, %v1147
        %v1177 = vpack.c.bf16 %v1150, %v1149
        %v1178 = vpack.c.bf16 %v1152, %v1151
        %v1179 = vpack.c.bf16 %v1154, %v1153
        %v1180 = vpack.c.bf16 %v1156, %v1155
        %v1181 = vpack.c.bf16 %v1158, %v1157
        %v1182 = vpack.c.bf16 %v1160, %v1159
        %v1183 = vpack.c.bf16 %v1162, %v1161
        %v1184 = vpack.c.bf16 %v1164, %v1163
        %v1185 = vpack.c.bf16 %v1166, %v1165
        %v1186 = vpack.c.bf16 %v1168, %v1167
        %v1187 = vpack.c.bf16 %v1170, %v1169
        %v1188 = vpack.c.bf16 %v1172, %v1171
        %s1189 = scalar_lea.vmem [#allocation8], 64
        %v1190 = vld [vmem:[%s1189] sm:$0xf]
        %v1191 = vld [vmem:[%s1189 + $0x4] sm:$0xf]
        %v1192 = vld [vmem:[%s1189 + $0x8] sm:$0xf]
        %v1193 = vld [vmem:[%s1189 + $0xc] sm:$0xf]
        %v1194 = vld [vmem:[%s1189 + $0x10] sm:$0xf]
        %v1195 = vld [vmem:[%s1189 + $0x14] sm:$0xf]
        %v1196 = vld [vmem:[%s1189 + $0x18] sm:$0xf]
        %v1197 = vld [vmem:[%s1189 + $0x1c] sm:$0xf]
        %v1198 = vld [vmem:[%s1189 + $0x20] sm:$0xf]
        %v1199 = vld [vmem:[%s1189 + $0x24] sm:$0xf]
        %v1200 = vld [vmem:[%s1189 + $0x28] sm:$0xf]
        %v1201 = vld [vmem:[%s1189 + $0x2c] sm:$0xf]
        %v1202 = vld [vmem:[%s1189 + $0x30] sm:$0xf]
        %v1203 = vld [vmem:[%s1189 + $0x34] sm:$0xf]
        %v1204 = vld [vmem:[%s1189 + $0x38] sm:$0xf]
        %v1205 = vld [vmem:[%s1189 + $0x3c] sm:$0xf]
        %v1222 = vunpack.c.l.b16 %v1190
        %v1223 = vunpack.c.l.b16 %v1191
        %v1224 = vunpack.c.l.b16 %v1192
        %v1225 = vunpack.c.l.b16 %v1193
        %v1226 = vunpack.c.l.b16 %v1194
        %v1227 = vunpack.c.l.b16 %v1195
        %v1228 = vunpack.c.l.b16 %v1196
        %v1229 = vunpack.c.l.b16 %v1197
        %v1230 = vunpack.c.l.b16 %v1198
        %v1231 = vunpack.c.l.b16 %v1199
        %v1232 = vunpack.c.l.b16 %v1200
        %v1233 = vunpack.c.l.b16 %v1201
        %v1234 = vunpack.c.l.b16 %v1202
        %v1235 = vunpack.c.l.b16 %v1203
        %v1236 = vunpack.c.l.b16 %v1204
        %v1237 = vunpack.c.l.b16 %v1205
        %v1238 = vpack.c.b16 %v1223, %v1222
        %v1239 = vpack.c.b16 %v1225, %v1224
        %v1240 = vpack.c.b16 %v1227, %v1226
        %v1241 = vpack.c.b16 %v1229, %v1228
        %v1242 = vpack.c.b16 %v1231, %v1230
        %v1243 = vpack.c.b16 %v1233, %v1232
        %v1244 = vpack.c.b16 %v1235, %v1234
        %v1245 = vpack.c.b16 %v1237, %v1236
        %1254 = vmatprep.subr.bf16.mxu0 0
        %1255 = vmatpush1.bf16.msra.mxu0 %v1238
        %1256 = vmatprep.subr.bf16.mxu0 0
        %1257 = vmatpush1.bf16.msra.mxu0 %v1239
        %1258 = vmatprep.subr.bf16.mxu0 0
        %1259 = vmatpush1.bf16.msra.mxu0 %v1240
        %1260 = vmatprep.subr.bf16.mxu0 0
        %1261 = vmatpush1.bf16.msra.mxu0 %v1241
        %1262 = vmatprep.subr.bf16.mxu0 0
        %1263 = vmatpush1.bf16.msra.mxu0 %v1242
        %1264 = vmatprep.subr.bf16.mxu0 0
        %1265 = vmatpush1.bf16.msra.mxu0 %v1243
        %1266 = vmatprep.subr.bf16.mxu0 0
        %1267 = vmatpush1.bf16.msra.mxu0 %v1244
        %1268 = vmatprep.subr.bf16.mxu0 0
        %1269 = vmatpush1.bf16.msra.mxu0 %v1245
        %1270 = vmatprep.subr.bf16.mxu0 0
        %1271 = vmatpush1.bf16.msra.mxu0 0
        %1272 = vmatprep.subr.bf16.mxu0 0
        %1273 = vmatpush1.bf16.msra.mxu0 0
        %1274 = vmatprep.subr.bf16.mxu0 0
        %1275 = vmatpush1.bf16.msra.mxu0 0
        %1276 = vmatprep.subr.bf16.mxu0 0
        %1277 = vmatpush1.bf16.msra.mxu0 0
        %1278 = vmatprep.subr.bf16.mxu0 0
        %1279 = vmatpush1.bf16.msra.mxu0 0
        %1280 = vmatprep.subr.bf16.mxu0 0
        %1281 = vmatpush1.bf16.msra.mxu0 0
        %1282 = vmatprep.subr.bf16.mxu0 0
        %1283 = vmatpush1.bf16.msra.mxu0 0
        %1284 = vmatprep.subr.bf16.mxu0 0
        %1285 = vmatpush1.bf16.msra.mxu0 0
        %1286 = vmatprep.mubr.bf16.mxu0 0
        %1287 = vmatmul.mubr.bf16.gmra.mrb[0].mxu0 %v1173
        %v1288 = vpop.f32.mrb[0].mxu0
        %v1289 = vadd.f32 0.0, %v1288
        %v1290 = vpop.f32.mrb[0].mxu0
        %v1291 = vpop.f32.mrb[0].mxu0
        %v1292 = vadd.f32 0.0, %v1291
        %v1293 = vpop.f32.mrb[0].mxu0
        %1294 = vmatprep.mubr.bf16.mxu0 0
        %1295 = vmatmul.mubr.bf16.gmra.mrb[0].mxu0 %v1174
        %v1296 = vpop.f32.mrb[0].mxu0
        %v1297 = vadd.f32 0.0, %v1296
        %v1298 = vpop.f32.mrb[0].mxu0
        %v1299 = vpop.f32.mrb[0].mxu0
        %v1300 = vadd.f32 0.0, %v1299
        %v1301 = vpop.f32.mrb[0].mxu0
        %1302 = vmatprep.mubr.bf16.mxu0 0
        %1303 = vmatmul.mubr.bf16.gmra.mrb[0].mxu0 %v1175
        %v1304 = vpop.f32.mrb[0].mxu0
        %v1305 = vadd.f32 0.0, %v1304
        %v1306 = vpop.f32.mrb[0].mxu0
        %v1307 = vpop.f32.mrb[0].mxu0
        %v1308 = vadd.f32 0.0, %v1307
        %v1309 = vpop.f32.mrb[0].mxu0
        %1310 = vmatprep.mubr.bf16.mxu0 0
        %1311 = vmatmul.mubr.bf16.gmra.mrb[0].mxu0 %v1176
        %v1312 = vpop.f32.mrb[0].mxu0
        %v1313 = vadd.f32 0.0, %v1312
        %v1314 = vpop.f32.mrb[0].mxu0
        %v1315 = vpop.f32.mrb[0].mxu0
        %v1316 = vadd.f32 0.0, %v1315
        %v1317 = vpop.f32.mrb[0].mxu0
        %1318 = vmatprep.mubr.bf16.mxu0 0
        %1319 = vmatmul.mubr.bf16.gmra.mrb[0].mxu0 %v1177
        %v1320 = vpop.f32.mrb[0].mxu0
        %v1321 = vadd.f32 0.0, %v1320
        %v1322 = vpop.f32.mrb[0].mxu0
        %v1323 = vpop.f32.mrb[0].mxu0
        %v1324 = vadd.f32 0.0, %v1323
        %v1325 = vpop.f32.mrb[0].mxu0
        %1326 = vmatprep.mubr.bf16.mxu0 0
        %1327 = vmatmul.mubr.bf16.gmra.mrb[0].mxu0 %v1178
        %v1328 = vpop.f32.mrb[0].mxu0
        %v1329 = vadd.f32 0.0, %v1328
        %v1330 = vpop.f32.mrb[0].mxu0
        %v1331 = vpop.f32.mrb[0].mxu0
        %v1332 = vadd.f32 0.0, %v1331
        %v1333 = vpop.f32.mrb[0].mxu0
        %1334 = vmatprep.mubr.bf16.mxu0 0
        %1335 = vmatmul.mubr.bf16.gmra.mrb[0].mxu0 %v1179
        %v1336 = vpop.f32.mrb[0].mxu0
        %v1337 = vadd.f32 0.0, %v1336
        %v1338 = vpop.f32.mrb[0].mxu0
        %v1339 = vpop.f32.mrb[0].mxu0
        %v1340 = vadd.f32 0.0, %v1339
        %v1341 = vpop.f32.mrb[0].mxu0
        %1342 = vmatprep.mubr.bf16.mxu0 0
        %1343 = vmatmul.mubr.bf16.gmra.mrb[0].mxu0 %v1180
        %v1344 = vpop.f32.mrb[0].mxu0
        %v1345 = vadd.f32 0.0, %v1344
        %v1346 = vpop.f32.mrb[0].mxu0
        %v1347 = vpop.f32.mrb[0].mxu0
        %v1348 = vadd.f32 0.0, %v1347
        %v1349 = vpop.f32.mrb[0].mxu0
        %1350 = vmatprep.mubr.bf16.mxu0 0
        %1351 = vmatmul.mubr.bf16.gmra.mrb[0].mxu0 %v1181
        %v1352 = vpop.f32.mrb[0].mxu0
        %v1353 = vadd.f32 0.0, %v1352
        %v1354 = vpop.f32.mrb[0].mxu0
        %v1355 = vpop.f32.mrb[0].mxu0
        %v1356 = vadd.f32 0.0, %v1355
        %v1357 = vpop.f32.mrb[0].mxu0
        %1358 = vmatprep.mubr.bf16.mxu0 0
        %1359 = vmatmul.mubr.bf16.gmra.mrb[0].mxu0 %v1182
        %v1360 = vpop.f32.mrb[0].mxu0
        %v1361 = vadd.f32 0.0, %v1360
        %v1362 = vpop.f32.mrb[0].mxu0
        %v1363 = vpop.f32.mrb[0].mxu0
        %v1364 = vadd.f32 0.0, %v1363
        %v1365 = vpop.f32.mrb[0].mxu0
        %1366 = vmatprep.mubr.bf16.mxu0 0
        %1367 = vmatmul.mubr.bf16.gmra.mrb[0].mxu0 %v1183
        %v1368 = vpop.f32.mrb[0].mxu0
        %v1369 = vadd.f32 0.0, %v1368
        %v1370 = vpop.f32.mrb[0].mxu0
        %v1371 = vpop.f32.mrb[0].mxu0
        %v1372 = vadd.f32 0.0, %v1371
        %v1373 = vpop.f32.mrb[0].mxu0
        %1374 = vmatprep.mubr.bf16.mxu0 0
        %1375 = vmatmul.mubr.bf16.gmra.mrb[0].mxu0 %v1184
        %v1376 = vpop.f32.mrb[0].mxu0
        %v1377 = vadd.f32 0.0, %v1376
        %v1378 = vpop.f32.mrb[0].mxu0
        %v1379 = vpop.f32.mrb[0].mxu0
        %v1380 = vadd.f32 0.0, %v1379
        %v1381 = vpop.f32.mrb[0].mxu0
        %1382 = vmatprep.mubr.bf16.mxu0 0
        %1383 = vmatmul.mubr.bf16.gmra.mrb[0].mxu0 %v1185
        %v1384 = vpop.f32.mrb[0].mxu0
        %v1385 = vadd.f32 0.0, %v1384
        %v1386 = vpop.f32.mrb[0].mxu0
        %v1387 = vpop.f32.mrb[0].mxu0
        %v1388 = vadd.f32 0.0, %v1387
        %v1389 = vpop.f32.mrb[0].mxu0
        %1390 = vmatprep.mubr.bf16.mxu0 0
        %1391 = vmatmul.mubr.bf16.gmra.mrb[0].mxu0 %v1186
        %v1392 = vpop.f32.mrb[0].mxu0
        %v1393 = vadd.f32 0.0, %v1392
        %v1394 = vpop.f32.mrb[0].mxu0
        %v1395 = vpop.f32.mrb[0].mxu0
        %v1396 = vadd.f32 0.0, %v1395
        %v1397 = vpop.f32.mrb[0].mxu0
        %1398 = vmatprep.mubr.bf16.mxu0 0
        %1399 = vmatmul.mubr.bf16.gmra.mrb[0].mxu0 %v1187
        %v1400 = vpop.f32.mrb[0].mxu0
        %v1401 = vadd.f32 0.0, %v1400
        %v1402 = vpop.f32.mrb[0].mxu0
        %v1403 = vpop.f32.mrb[0].mxu0
        %v1404 = vadd.f32 0.0, %v1403
        %v1405 = vpop.f32.mrb[0].mxu0
        %1406 = vmatprep.mubr.bf16.mxu0 0
        %1407 = vmatmul.mubr.bf16.gmra.mrb[0].mxu0 %v1188
        %v1408 = vpop.f32.mrb[0].mxu0
        %v1409 = vadd.f32 0.0, %v1408
        %v1410 = vpop.f32.mrb[0].mxu0
        %v1411 = vpop.f32.mrb[0].mxu0
        %v1412 = vadd.f32 0.0, %v1411
        %v1413 = vpop.f32.mrb[0].mxu0
        %1414 = vdwg.mxu0
        %v1431 = vunpack.c.l.b16 %v1125
        %v1432 = vunpack.c.l.b16 %v1126
        %v1433 = vunpack.c.l.b16 %v1127
        %v1434 = vunpack.c.l.b16 %v1128
        %v1435 = vunpack.c.l.b16 %v1129
        %v1436 = vunpack.c.l.b16 %v1130
        %v1437 = vunpack.c.l.b16 %v1131
        %v1438 = vunpack.c.l.b16 %v1132
        %v1439 = vunpack.c.l.b16 %v1133
        %v1440 = vunpack.c.l.b16 %v1134
        %v1441 = vunpack.c.l.b16 %v1135
        %v1442 = vunpack.c.l.b16 %v1136
        %v1443 = vunpack.c.l.b16 %v1137
        %v1444 = vunpack.c.l.b16 %v1138
        %v1445 = vunpack.c.l.b16 %v1139
        %v1446 = vunpack.c.l.b16 %v1140
        %v1447 = vpack.c.b16 %v1432, %v1431
        %v1448 = vpack.c.b16 %v1434, %v1433
        %v1449 = vpack.c.b16 %v1436, %v1435
        %v1450 = vpack.c.b16 %v1438, %v1437
        %v1451 = vpack.c.b16 %v1440, %v1439
        %v1452 = vpack.c.b16 %v1442, %v1441
        %v1453 = vpack.c.b16 %v1444, %v1443
        %v1454 = vpack.c.b16 %v1446, %v1445
        %1463 = vmatprep.subr.bf16.mxu0 0
        %1464 = vmatpush1.bf16.msra.mxu0 %v1447
        %1465 = vmatprep.subr.bf16.mxu0 0
        %1466 = vmatpush1.bf16.msra.mxu0 %v1448
        %1467 = vmatprep.subr.bf16.mxu0 0
        %1468 = vmatpush1.bf16.msra.mxu0 %v1449
        %1469 = vmatprep.subr.bf16.mxu0 0
        %1470 = vmatpush1.bf16.msra.mxu0 %v1450
        %1471 = vmatprep.subr.bf16.mxu0 0
        %1472 = vmatpush1.bf16.msra.mxu0 %v1451
        %1473 = vmatprep.subr.bf16.mxu0 0
        %1474 = vmatpush1.bf16.msra.mxu0 %v1452
        %1475 = vmatprep.subr.bf16.mxu0 0
        %1476 = vmatpush1.bf16.msra.mxu0 %v1453
        %1477 = vmatprep.subr.bf16.mxu0 0
        %1478 = vmatpush1.bf16.msra.mxu0 %v1454
        %1479 = vmatprep.subr.bf16.mxu0 0
        %1480 = vmatpush1.bf16.msra.mxu0 0
        %1481 = vmatprep.subr.bf16.mxu0 0
        %1482 = vmatpush1.bf16.msra.mxu0 0
        %1483 = vmatprep.subr.bf16.mxu0 0
        %1484 = vmatpush1.bf16.msra.mxu0 0
        %1485 = vmatprep.subr.bf16.mxu0 0
        %1486 = vmatpush1.bf16.msra.mxu0 0
        %1487 = vmatprep.subr.bf16.mxu0 0
        %1488 = vmatpush1.bf16.msra.mxu0 0
        %1489 = vmatprep.subr.bf16.mxu0 0
        %1490 = vmatpush1.bf16.msra.mxu0 0
        %1491 = vmatprep.subr.bf16.mxu0 0
        %1492 = vmatpush1.bf16.msra.mxu0 0
        %1493 = vmatprep.subr.bf16.mxu0 0
        %1494 = vmatpush1.bf16.msra.mxu0 0
        %1495 = vmatprep.mubr.bf16.mxu0 0
        %1496 = vmatmul.mubr.bf16.gmra.mrb[0].mxu0 %v1109
        %v1497 = vpop.f32.mrb[0].mxu0
        %v1498 = vadd.f32 %v1289, %v1497
        %v1499 = vpop.f32.mrb[0].mxu0
        %v1500 = vpop.f32.mrb[0].mxu0
        %v1501 = vadd.f32 %v1292, %v1500
        %v1502 = vpop.f32.mrb[0].mxu0
        %1503 = vmatprep.mubr.bf16.mxu0 0
        %1504 = vmatmul.mubr.bf16.gmra.mrb[0].mxu0 %v1110
        %v1505 = vpop.f32.mrb[0].mxu0
        %v1506 = vadd.f32 %v1297, %v1505
        %v1507 = vpop.f32.mrb[0].mxu0
        %v1508 = vpop.f32.mrb[0].mxu0
        %v1509 = vadd.f32 %v1300, %v1508
        %v1510 = vpop.f32.mrb[0].mxu0
        %1511 = vmatprep.mubr.bf16.mxu0 0
        %1512 = vmatmul.mubr.bf16.gmra.mrb[0].mxu0 %v1111
        %v1513 = vpop.f32.mrb[0].mxu0
        %v1514 = vadd.f32 %v1305, %v1513
        %v1515 = vpop.f32.mrb[0].mxu0
        %v1516 = vpop.f32.mrb[0].mxu0
        %v1517 = vadd.f32 %v1308, %v1516
        %v1518 = vpop.f32.mrb[0].mxu0
        %1519 = vmatprep.mubr.bf16.mxu0 0
        %1520 = vmatmul.mubr.bf16.gmra.mrb[0].mxu0 %v1112
        %v1521 = vpop.f32.mrb[0].mxu0
        %v1522 = vadd.f32 %v1313, %v1521
        %v1523 = vpop.f32.mrb[0].mxu0
        %v1524 = vpop.f32.mrb[0].mxu0
        %v1525 = vadd.f32 %v1316, %v1524
        %v1526 = vpop.f32.mrb[0].mxu0
        %1527 = vmatprep.mubr.bf16.mxu0 0
        %1528 = vmatmul.mubr.bf16.gmra.mrb[0].mxu0 %v1113
        %v1529 = vpop.f32.mrb[0].mxu0
        %v1530 = vadd.f32 %v1321, %v1529
        %v1531 = vpop.f32.mrb[0].mxu0
        %v1532 = vpop.f32.mrb[0].mxu0
        %v1533 = vadd.f32 %v1324, %v1532
        %v1534 = vpop.f32.mrb[0].mxu0
        %1535 = vmatprep.mubr.bf16.mxu0 0
        %1536 = vmatmul.mubr.bf16.gmra.mrb[0].mxu0 %v1114
        %v1537 = vpop.f32.mrb[0].mxu0
        %v1538 = vadd.f32 %v1329, %v1537
        %v1539 = vpop.f32.mrb[0].mxu0
        %v1540 = vpop.f32.mrb[0].mxu0
        %v1541 = vadd.f32 %v1332, %v1540
        %v1542 = vpop.f32.mrb[0].mxu0
        %1543 = vmatprep.mubr.bf16.mxu0 0
        %1544 = vmatmul.mubr.bf16.gmra.mrb[0].mxu0 %v1115
        %v1545 = vpop.f32.mrb[0].mxu0
        %v1546 = vadd.f32 %v1337, %v1545
        %v1547 = vpop.f32.mrb[0].mxu0
        %v1548 = vpop.f32.mrb[0].mxu0
        %v1549 = vadd.f32 %v1340, %v1548
        %v1550 = vpop.f32.mrb[0].mxu0
        %1551 = vmatprep.mubr.bf16.mxu0 0
        %1552 = vmatmul.mubr.bf16.gmra.mrb[0].mxu0 %v1116
        %v1553 = vpop.f32.mrb[0].mxu0
        %v1554 = vadd.f32 %v1345, %v1553
        %v1555 = vpop.f32.mrb[0].mxu0
        %v1556 = vpop.f32.mrb[0].mxu0
        %v1557 = vadd.f32 %v1348, %v1556
        %v1558 = vpop.f32.mrb[0].mxu0
        %1559 = vmatprep.mubr.bf16.mxu0 0
        %1560 = vmatmul.mubr.bf16.gmra.mrb[0].mxu0 %v1117
        %v1561 = vpop.f32.mrb[0].mxu0
        %v1562 = vadd.f32 %v1353, %v1561
        %v1563 = vpop.f32.mrb[0].mxu0
        %v1564 = vpop.f32.mrb[0].mxu0
        %v1565 = vadd.f32 %v1356, %v1564
        %v1566 = vpop.f32.mrb[0].mxu0
        %1567 = vmatprep.mubr.bf16.mxu0 0
        %1568 = vmatmul.mubr.bf16.gmra.mrb[0].mxu0 %v1118
        %v1569 = vpop.f32.mrb[0].mxu0
        %v1570 = vadd.f32 %v1361, %v1569
        %v1571 = vpop.f32.mrb[0].mxu0
        %v1572 = vpop.f32.mrb[0].mxu0
        %v1573 = vadd.f32 %v1364, %v1572
        %v1574 = vpop.f32.mrb[0].mxu0
        %1575 = vmatprep.mubr.bf16.mxu0 0
        %1576 = vmatmul.mubr.bf16.gmra.mrb[0].mxu0 %v1119
        %v1577 = vpop.f32.mrb[0].mxu0
        %v1578 = vadd.f32 %v1369, %v1577
        %v1579 = vpop.f32.mrb[0].mxu0
        %v1580 = vpop.f32.mrb[0].mxu0
        %v1581 = vadd.f32 %v1372, %v1580
        %v1582 = vpop.f32.mrb[0].mxu0
        %1583 = vmatprep.mubr.bf16.mxu0 0
        %1584 = vmatmul.mubr.bf16.gmra.mrb[0].mxu0 %v1120
        %v1585 = vpop.f32.mrb[0].mxu0
        %v1586 = vadd.f32 %v1377, %v1585
        %v1587 = vpop.f32.mrb[0].mxu0
        %v1588 = vpop.f32.mrb[0].mxu0
        %v1589 = vadd.f32 %v1380, %v1588
        %v1590 = vpop.f32.mrb[0].mxu0
        %1591 = vmatprep.mubr.bf16.mxu0 0
        %1592 = vmatmul.mubr.bf16.gmra.mrb[0].mxu0 %v1121
        %v1593 = vpop.f32.mrb[0].mxu0
        %v1594 = vadd.f32 %v1385, %v1593
        %v1595 = vpop.f32.mrb[0].mxu0
        %v1596 = vpop.f32.mrb[0].mxu0
        %v1597 = vadd.f32 %v1388, %v1596
        %v1598 = vpop.f32.mrb[0].mxu0
        %1599 = vmatprep.mubr.bf16.mxu0 0
        %1600 = vmatmul.mubr.bf16.gmra.mrb[0].mxu0 %v1122
        %v1601 = vpop.f32.mrb[0].mxu0
        %v1602 = vadd.f32 %v1393, %v1601
        %v1603 = vpop.f32.mrb[0].mxu0
        %v1604 = vpop.f32.mrb[0].mxu0
        %v1605 = vadd.f32 %v1396, %v1604
        %v1606 = vpop.f32.mrb[0].mxu0
        %1607 = vmatprep.mubr.bf16.mxu0 0
        %1608 = vmatmul.mubr.bf16.gmra.mrb[0].mxu0 %v1123
        %v1609 = vpop.f32.mrb[0].mxu0
        %v1610 = vadd.f32 %v1401, %v1609
        %v1611 = vpop.f32.mrb[0].mxu0
        %v1612 = vpop.f32.mrb[0].mxu0
        %v1613 = vadd.f32 %v1404, %v1612
        %v1614 = vpop.f32.mrb[0].mxu0
        %1615 = vmatprep.mubr.bf16.mxu0 0
        %1616 = vmatmul.mubr.bf16.gmra.mrb[0].mxu0 %v1124
        %v1617 = vpop.f32.mrb[0].mxu0
        %v1618 = vadd.f32 %v1409, %v1617
        %v1619 = vpop.f32.mrb[0].mxu0
        %v1620 = vpop.f32.mrb[0].mxu0
        %v1621 = vadd.f32 %v1412, %v1620
        %v1622 = vpop.f32.mrb[0].mxu0
        %1623 = vdwg.mxu0
        %v1624 = vld [vmem:[#allocation2 + $0x2] sm:$0xff]
        %v1625 = vld [vmem:[#allocation2 + $0xa] sm:$0xff]
        %v1626 = vld [vmem:[#allocation2 + $0x1a] sm:$0xff]
        %v1627 = vld [vmem:[#allocation2 + $0x22] sm:$0xff]
        %v1628 = vld [vmem:[#allocation2 + $0x32] sm:$0xff]
        %v1629 = vld [vmem:[#allocation2 + $0x3a] sm:$0xff]
        %v1630 = vld [vmem:[#allocation2 + $0x4a] sm:$0xff]
        %v1631 = vld [vmem:[#allocation2 + $0x52] sm:$0xff]
        %v1632 = vld [vmem:[#allocation2 + $0x62] sm:$0xff]
        %v1633 = vld [vmem:[#allocation2 + $0x6a] sm:$0xff]
        %v1634 = vld [vmem:[#allocation2 + $0x7a] sm:$0xff]
        %v1635 = vld [vmem:[#allocation2 + $0x82] sm:$0xff]
        %v1636 = vld [vmem:[#allocation2 + $0x92] sm:$0xff]
        %v1637 = vld [vmem:[#allocation2 + $0x9a] sm:$0xff]
        %v1638 = vld [vmem:[#allocation2 + $0xaa] sm:$0xff]
        %v1639 = vld [vmem:[#allocation2 + $0xb2] sm:$0xff]
        %v1640 = vld [vmem:[#allocation2 + $0xc2] sm:$0xff]
        %v1641 = vld [vmem:[#allocation2 + $0xca] sm:$0xff]
        %v1642 = vld [vmem:[#allocation2 + $0xda] sm:$0xff]
        %v1643 = vld [vmem:[#allocation2 + $0xe2] sm:$0xff]
        %v1644 = vld [vmem:[#allocation2 + $0xf2] sm:$0xff]
        %v1645 = vld [vmem:[#allocation2 + $0xfa] sm:$0xff]
        %v1646 = vld [vmem:[#allocation2 + $0x10a] sm:$0xff]
        %v1647 = vld [vmem:[#allocation2 + $0x112] sm:$0xff]
        %v1648 = vld [vmem:[#allocation2 + $0x122] sm:$0xff]
        %v1649 = vld [vmem:[#allocation2 + $0x12a] sm:$0xff]
        %v1650 = vld [vmem:[#allocation2 + $0x13a] sm:$0xff]
        %v1651 = vld [vmem:[#allocation2 + $0x142] sm:$0xff]
        %v1652 = vld [vmem:[#allocation2 + $0x152] sm:$0xff]
        %v1653 = vld [vmem:[#allocation2 + $0x15a] sm:$0xff]
        %v1654 = vld [vmem:[#allocation2 + $0x16a] sm:$0xff]
        %v1655 = vld [vmem:[#allocation2 + $0x172] sm:$0xff]
        %v1656 = vpack.c.bf16 %v1625, %v1624
        %v1657 = vpack.c.bf16 %v1627, %v1626
        %v1658 = vpack.c.bf16 %v1629, %v1628
        %v1659 = vpack.c.bf16 %v1631, %v1630
        %v1660 = vpack.c.bf16 %v1633, %v1632
        %v1661 = vpack.c.bf16 %v1635, %v1634
        %v1662 = vpack.c.bf16 %v1637, %v1636
        %v1663 = vpack.c.bf16 %v1639, %v1638
        %v1664 = vpack.c.bf16 %v1641, %v1640
        %v1665 = vpack.c.bf16 %v1643, %v1642
        %v1666 = vpack.c.bf16 %v1645, %v1644
        %v1667 = vpack.c.bf16 %v1647, %v1646
        %v1668 = vpack.c.bf16 %v1649, %v1648
        %v1669 = vpack.c.bf16 %v1651, %v1650
        %v1670 = vpack.c.bf16 %v1653, %v1652
        %v1671 = vpack.c.bf16 %v1655, %v1654
        %s1672 = scalar_lea.vmem [#allocation8], 128
        %v1673 = vld [vmem:[%s1672] sm:$0xf]
        %v1674 = vld [vmem:[%s1672 + $0x4] sm:$0xf]
        %v1675 = vld [vmem:[%s1672 + $0x8] sm:$0xf]
        %v1676 = vld [vmem:[%s1672 + $0xc] sm:$0xf]
        %v1677 = vld [vmem:[%s1672 + $0x10] sm:$0xf]
        %v1678 = vld [vmem:[%s1672 + $0x14] sm:$0xf]
        %v1679 = vld [vmem:[%s1672 + $0x18] sm:$0xf]
        %v1680 = vld [vmem:[%s1672 + $0x1c] sm:$0xf]
        %v1681 = vld [vmem:[%s1672 + $0x20] sm:$0xf]
        %v1682 = vld [vmem:[%s1672 + $0x24] sm:$0xf]
        %v1683 = vld [vmem:[%s1672 + $0x28] sm:$0xf]
        %v1684 = vld [vmem:[%s1672 + $0x2c] sm:$0xf]
        %v1685 = vld [vmem:[%s1672 + $0x30] sm:$0xf]
        %v1686 = vld [vmem:[%s1672 + $0x34] sm:$0xf]
        %v1687 = vld [vmem:[%s1672 + $0x38] sm:$0xf]
        %v1688 = vld [vmem:[%s1672 + $0x3c] sm:$0xf]
        %v1705 = vunpack.c.l.b16 %v1673
        %v1706 = vunpack.c.l.b16 %v1674
        %v1707 = vunpack.c.l.b16 %v1675
        %v1708 = vunpack.c.l.b16 %v1676
        %v1709 = vunpack.c.l.b16 %v1677
        %v1710 = vunpack.c.l.b16 %v1678
        %v1711 = vunpack.c.l.b16 %v1679
        %v1712 = vunpack.c.l.b16 %v1680
        %v1713 = vunpack.c.l.b16 %v1681
        %v1714 = vunpack.c.l.b16 %v1682
        %v1715 = vunpack.c.l.b16 %v1683
        %v1716 = vunpack.c.l.b16 %v1684
        %v1717 = vunpack.c.l.b16 %v1685
        %v1718 = vunpack.c.l.b16 %v1686
        %v1719 = vunpack.c.l.b16 %v1687
        %v1720 = vunpack.c.l.b16 %v1688
        %v1721 = vpack.c.b16 %v1706, %v1705
        %v1722 = vpack.c.b16 %v1708, %v1707
        %v1723 = vpack.c.b16 %v1710, %v1709
        %v1724 = vpack.c.b16 %v1712, %v1711
        %v1725 = vpack.c.b16 %v1714, %v1713
        %v1726 = vpack.c.b16 %v1716, %v1715
        %v1727 = vpack.c.b16 %v1718, %v1717
        %v1728 = vpack.c.b16 %v1720, %v1719
        %1737 = vmatprep.subr.bf16.mxu0 0
        %1738 = vmatpush1.bf16.msra.mxu0 %v1721
        %1739 = vmatprep.subr.bf16.mxu0 0
        %1740 = vmatpush1.bf16.msra.mxu0 %v1722
        %1741 = vmatprep.subr.bf16.mxu0 0
        %1742 = vmatpush1.bf16.msra.mxu0 %v1723
        %1743 = vmatprep.subr.bf16.mxu0 0
        %1744 = vmatpush1.bf16.msra.mxu0 %v1724
        %1745 = vmatprep.subr.bf16.mxu0 0
        %1746 = vmatpush1.bf16.msra.mxu0 %v1725
        %1747 = vmatprep.subr.bf16.mxu0 0
        %1748 = vmatpush1.bf16.msra.mxu0 %v1726
        %1749 = vmatprep.subr.bf16.mxu0 0
        %1750 = vmatpush1.bf16.msra.mxu0 %v1727
        %1751 = vmatprep.subr.bf16.mxu0 0
        %1752 = vmatpush1.bf16.msra.mxu0 %v1728
        %1753 = vmatprep.subr.bf16.mxu0 0
        %1754 = vmatpush1.bf16.msra.mxu0 0
        %1755 = vmatprep.subr.bf16.mxu0 0
        %1756 = vmatpush1.bf16.msra.mxu0 0
        %1757 = vmatprep.subr.bf16.mxu0 0
        %1758 = vmatpush1.bf16.msra.mxu0 0
        %1759 = vmatprep.subr.bf16.mxu0 0
        %1760 = vmatpush1.bf16.msra.mxu0 0
        %1761 = vmatprep.subr.bf16.mxu0 0
        %1762 = vmatpush1.bf16.msra.mxu0 0
        %1763 = vmatprep.subr.bf16.mxu0 0
        %1764 = vmatpush1.bf16.msra.mxu0 0
        %1765 = vmatprep.subr.bf16.mxu0 0
        %1766 = vmatpush1.bf16.msra.mxu0 0
        %1767 = vmatprep.subr.bf16.mxu0 0
        %1768 = vmatpush1.bf16.msra.mxu0 0
        %1769 = vmatprep.mubr.bf16.mxu0 0
        %1770 = vmatmul.mubr.bf16.gmra.mrb[0].mxu0 %v1656
        %v1771 = vpop.f32.mrb[0].mxu0
        %v1772 = vadd.f32 0.0, %v1771
        %v1773 = vpop.f32.mrb[0].mxu0
        %v1774 = vpop.f32.mrb[0].mxu0
        %v1775 = vadd.f32 0.0, %v1774
        %v1776 = vpop.f32.mrb[0].mxu0
        %1777 = vmatprep.mubr.bf16.mxu0 0
        %1778 = vmatmul.mubr.bf16.gmra.mrb[0].mxu0 %v1657
        %v1779 = vpop.f32.mrb[0].mxu0
        %v1780 = vadd.f32 0.0, %v1779
        %v1781 = vpop.f32.mrb[0].mxu0
        %v1782 = vpop.f32.mrb[0].mxu0
        %v1783 = vadd.f32 0.0, %v1782
        %v1784 = vpop.f32.mrb[0].mxu0
        %1785 = vmatprep.mubr.bf16.mxu0 0
        %1786 = vmatmul.mubr.bf16.gmra.mrb[0].mxu0 %v1658
        %v1787 = vpop.f32.mrb[0].mxu0
        %v1788 = vadd.f32 0.0, %v1787
        %v1789 = vpop.f32.mrb[0].mxu0
        %v1790 = vpop.f32.mrb[0].mxu0
        %v1791 = vadd.f32 0.0, %v1790
        %v1792 = vpop.f32.mrb[0].mxu0
        %1793 = vmatprep.mubr.bf16.mxu0 0
        %1794 = vmatmul.mubr.bf16.gmra.mrb[0].mxu0 %v1659
        %v1795 = vpop.f32.mrb[0].mxu0
        %v1796 = vadd.f32 0.0, %v1795
        %v1797 = vpop.f32.mrb[0].mxu0
        %v1798 = vpop.f32.mrb[0].mxu0
        %v1799 = vadd.f32 0.0, %v1798
        %v1800 = vpop.f32.mrb[0].mxu0
        %1801 = vmatprep.mubr.bf16.mxu0 0
        %1802 = vmatmul.mubr.bf16.gmra.mrb[0].mxu0 %v1660
        %v1803 = vpop.f32.mrb[0].mxu0
        %v1804 = vadd.f32 0.0, %v1803
        %v1805 = vpop.f32.mrb[0].mxu0
        %v1806 = vpop.f32.mrb[0].mxu0
        %v1807 = vadd.f32 0.0, %v1806
        %v1808 = vpop.f32.mrb[0].mxu0
        %1809 = vmatprep.mubr.bf16.mxu0 0
        %1810 = vmatmul.mubr.bf16.gmra.mrb[0].mxu0 %v1661
        %v1811 = vpop.f32.mrb[0].mxu0
        %v1812 = vadd.f32 0.0, %v1811
        %v1813 = vpop.f32.mrb[0].mxu0
        %v1814 = vpop.f32.mrb[0].mxu0
        %v1815 = vadd.f32 0.0, %v1814
        %v1816 = vpop.f32.mrb[0].mxu0
        %1817 = vmatprep.mubr.bf16.mxu0 0
        %1818 = vmatmul.mubr.bf16.gmra.mrb[0].mxu0 %v1662
        %v1819 = vpop.f32.mrb[0].mxu0
        %v1820 = vadd.f32 0.0, %v1819
        %v1821 = vpop.f32.mrb[0].mxu0
        %v1822 = vpop.f32.mrb[0].mxu0
        %v1823 = vadd.f32 0.0, %v1822
        %v1824 = vpop.f32.mrb[0].mxu0
        %1825 = vmatprep.mubr.bf16.mxu0 0
        %1826 = vmatmul.mubr.bf16.gmra.mrb[0].mxu0 %v1663
        %v1827 = vpop.f32.mrb[0].mxu0
        %v1828 = vadd.f32 0.0, %v1827
        %v1829 = vpop.f32.mrb[0].mxu0
        %v1830 = vpop.f32.mrb[0].mxu0
        %v1831 = vadd.f32 0.0, %v1830
        %v1832 = vpop.f32.mrb[0].mxu0
        %1833 = vmatprep.mubr.bf16.mxu0 0
        %1834 = vmatmul.mubr.bf16.gmra.mrb[0].mxu0 %v1664
        %v1835 = vpop.f32.mrb[0].mxu0
        %v1836 = vadd.f32 0.0, %v1835
        %v1837 = vpop.f32.mrb[0].mxu0
        %v1838 = vpop.f32.mrb[0].mxu0
        %v1839 = vadd.f32 0.0, %v1838
        %v1840 = vpop.f32.mrb[0].mxu0
        %1841 = vmatprep.mubr.bf16.mxu0 0
        %1842 = vmatmul.mubr.bf16.gmra.mrb[0].mxu0 %v1665
        %v1843 = vpop.f32.mrb[0].mxu0
        %v1844 = vadd.f32 0.0, %v1843
        %v1845 = vpop.f32.mrb[0].mxu0
        %v1846 = vpop.f32.mrb[0].mxu0
        %v1847 = vadd.f32 0.0, %v1846
        %v1848 = vpop.f32.mrb[0].mxu0
        %1849 = vmatprep.mubr.bf16.mxu0 0
        %1850 = vmatmul.mubr.bf16.gmra.mrb[0].mxu0 %v1666
        %v1851 = vpop.f32.mrb[0].mxu0
        %v1852 = vadd.f32 0.0, %v1851
        %v1853 = vpop.f32.mrb[0].mxu0
        %v1854 = vpop.f32.mrb[0].mxu0
        %v1855 = vadd.f32 0.0, %v1854
        %v1856 = vpop.f32.mrb[0].mxu0
        %1857 = vmatprep.mubr.bf16.mxu0 0
        %1858 = vmatmul.mubr.bf16.gmra.mrb[0].mxu0 %v1667
        %v1859 = vpop.f32.mrb[0].mxu0
        %v1860 = vadd.f32 0.0, %v1859
        %v1861 = vpop.f32.mrb[0].mxu0
        %v1862 = vpop.f32.mrb[0].mxu0
        %v1863 = vadd.f32 0.0, %v1862
        %v1864 = vpop.f32.mrb[0].mxu0
        %1865 = vmatprep.mubr.bf16.mxu0 0
        %1866 = vmatmul.mubr.bf16.gmra.mrb[0].mxu0 %v1668
        %v1867 = vpop.f32.mrb[0].mxu0
        %v1868 = vadd.f32 0.0, %v1867
        %v1869 = vpop.f32.mrb[0].mxu0
        %v1870 = vpop.f32.mrb[0].mxu0
        %v1871 = vadd.f32 0.0, %v1870
        %v1872 = vpop.f32.mrb[0].mxu0
        %1873 = vmatprep.mubr.bf16.mxu0 0
        %1874 = vmatmul.mubr.bf16.gmra.mrb[0].mxu0 %v1669
        %v1875 = vpop.f32.mrb[0].mxu0
        %v1876 = vadd.f32 0.0, %v1875
        %v1877 = vpop.f32.mrb[0].mxu0
        %v1878 = vpop.f32.mrb[0].mxu0
        %v1879 = vadd.f32 0.0, %v1878
        %v1880 = vpop.f32.mrb[0].mxu0
        %1881 = vmatprep.mubr.bf16.mxu0 0
        %1882 = vmatmul.mubr.bf16.gmra.mrb[0].mxu0 %v1670
        %v1883 = vpop.f32.mrb[0].mxu0
        %v1884 = vadd.f32 0.0, %v1883
        %v1885 = vpop.f32.mrb[0].mxu0
        %v1886 = vpop.f32.mrb[0].mxu0
        %v1887 = vadd.f32 0.0, %v1886
        %v1888 = vpop.f32.mrb[0].mxu0
        %1889 = vmatprep.mubr.bf16.mxu0 0
        %1890 = vmatmul.mubr.bf16.gmra.mrb[0].mxu0 %v1671
        %v1891 = vpop.f32.mrb[0].mxu0
        %v1892 = vadd.f32 0.0, %v1891
        %v1893 = vpop.f32.mrb[0].mxu0
        %v1894 = vpop.f32.mrb[0].mxu0
        %v1895 = vadd.f32 0.0, %v1894
        %v1896 = vpop.f32.mrb[0].mxu0
        %1897 = vdwg.mxu0
        %v1898 = vadd.f32 %v1498, %v1772
        %v1899 = vadd.f32 %v1501, %v1775
        %v1900 = vadd.f32 %v1506, %v1780
        %v1901 = vadd.f32 %v1509, %v1783
        %v1902 = vadd.f32 %v1514, %v1788
        %v1903 = vadd.f32 %v1517, %v1791
        %v1904 = vadd.f32 %v1522, %v1796
        %v1905 = vadd.f32 %v1525, %v1799
        %v1906 = vadd.f32 %v1530, %v1804
        %v1907 = vadd.f32 %v1533, %v1807
        %v1908 = vadd.f32 %v1538, %v1812
        %v1909 = vadd.f32 %v1541, %v1815
        %v1910 = vadd.f32 %v1546, %v1820
        %v1911 = vadd.f32 %v1549, %v1823
        %v1912 = vadd.f32 %v1554, %v1828
        %v1913 = vadd.f32 %v1557, %v1831
        %v1914 = vadd.f32 %v1562, %v1836
        %v1915 = vadd.f32 %v1565, %v1839
        %v1916 = vadd.f32 %v1570, %v1844
        %v1917 = vadd.f32 %v1573, %v1847
        %v1918 = vadd.f32 %v1578, %v1852
        %v1919 = vadd.f32 %v1581, %v1855
        %v1920 = vadd.f32 %v1586, %v1860
        %v1921 = vadd.f32 %v1589, %v1863
        %v1922 = vadd.f32 %v1594, %v1868
        %v1923 = vadd.f32 %v1597, %v1871
        %v1924 = vadd.f32 %v1602, %v1876
        %v1925 = vadd.f32 %v1605, %v1879
        %v1926 = vadd.f32 %v1610, %v1884
        %v1927 = vadd.f32 %v1613, %v1887
        %v1928 = vadd.f32 %v1618, %v1892
        %v1929 = vadd.f32 %v1621, %v1895
        %v1930 = vld [vmem:[%s1044] sm:$0xff]
        %v1931 = vld [vmem:[%s1044 + $0x8] sm:$0xff]
        %v1932 = vld [vmem:[%s1044 + $0x18] sm:$0xff]
        %v1933 = vld [vmem:[%s1044 + $0x20] sm:$0xff]
        %v1934 = vld [vmem:[%s1044 + $0x30] sm:$0xff]
        %v1935 = vld [vmem:[%s1044 + $0x38] sm:$0xff]
        %v1936 = vld [vmem:[%s1044 + $0x48] sm:$0xff]
        %v1937 = vld [vmem:[%s1044 + $0x50] sm:$0xff]
        %v1938 = vld [vmem:[%s1044 + $0x60] sm:$0xff]
        %v1939 = vld [vmem:[%s1044 + $0x68] sm:$0xff]
        %v1940 = vld [vmem:[%s1044 + $0x78] sm:$0xff]
        %v1941 = vld [vmem:[%s1044 + $0x80] sm:$0xff]
        %v1942 = vld [vmem:[%s1044 + $0x90] sm:$0xff]
        %v1943 = vld [vmem:[%s1044 + $0x98] sm:$0xff]
        %v1944 = vld [vmem:[%s1044 + $0xa8] sm:$0xff]
        %v1945 = vld [vmem:[%s1044 + $0xb0] sm:$0xff]
        %v1946 = vld [vmem:[%s1044 + $0xc0] sm:$0xff]
        %v1947 = vld [vmem:[%s1044 + $0xc8] sm:$0xff]
        %v1948 = vld [vmem:[%s1044 + $0xd8] sm:$0xff]
        %v1949 = vld [vmem:[%s1044 + $0xe0] sm:$0xff]
        %v1950 = vld [vmem:[%s1044 + $0xf0] sm:$0xff]
        %v1951 = vld [vmem:[%s1044 + $0xf8] sm:$0xff]
        %v1952 = vld [vmem:[%s1044 + $0x108] sm:$0xff]
        %v1953 = vld [vmem:[%s1044 + $0x110] sm:$0xff]
        %v1954 = vld [vmem:[%s1044 + $0x120] sm:$0xff]
        %v1955 = vld [vmem:[%s1044 + $0x128] sm:$0xff]
        %v1956 = vld [vmem:[%s1044 + $0x138] sm:$0xff]
        %v1957 = vld [vmem:[%s1044 + $0x140] sm:$0xff]
        %v1958 = vld [vmem:[%s1044 + $0x150] sm:$0xff]
        %v1959 = vld [vmem:[%s1044 + $0x158] sm:$0xff]
        %v1960 = vld [vmem:[%s1044 + $0x168] sm:$0xff]
        %v1961 = vld [vmem:[%s1044 + $0x170] sm:$0xff]
        %v1962 = vpack.c.bf16 %v1931, %v1930
        %v1963 = vpack.c.bf16 %v1933, %v1932
        %v1964 = vpack.c.bf16 %v1935, %v1934
        %v1965 = vpack.c.bf16 %v1937, %v1936
        %v1966 = vpack.c.bf16 %v1939, %v1938
        %v1967 = vpack.c.bf16 %v1941, %v1940
        %v1968 = vpack.c.bf16 %v1943, %v1942
        %v1969 = vpack.c.bf16 %v1945, %v1944
        %v1970 = vpack.c.bf16 %v1947, %v1946
        %v1971 = vpack.c.bf16 %v1949, %v1948
        %v1972 = vpack.c.bf16 %v1951, %v1950
        %v1973 = vpack.c.bf16 %v1953, %v1952
        %v1974 = vpack.c.bf16 %v1955, %v1954
        %v1975 = vpack.c.bf16 %v1957, %v1956
        %v1976 = vpack.c.bf16 %v1959, %v1958
        %v1977 = vpack.c.bf16 %v1961, %v1960
        %s1978 = scalar_lea.vmem [#allocation8], 192
        %v1979 = vld [vmem:[%s1978] sm:$0xf]
        %v1980 = vld [vmem:[%s1978 + $0x4] sm:$0xf]
        %v1981 = vld [vmem:[%s1978 + $0x8] sm:$0xf]
        %v1982 = vld [vmem:[%s1978 + $0xc] sm:$0xf]
        %v1983 = vld [vmem:[%s1978 + $0x10] sm:$0xf]
        %v1984 = vld [vmem:[%s1978 + $0x14] sm:$0xf]
        %v1985 = vld [vmem:[%s1978 + $0x18] sm:$0xf]
        %v1986 = vld [vmem:[%s1978 + $0x1c] sm:$0xf]
        %v1987 = vld [vmem:[%s1978 + $0x20] sm:$0xf]
        %v1988 = vld [vmem:[%s1978 + $0x24] sm:$0xf]
        %v1989 = vld [vmem:[%s1978 + $0x28] sm:$0xf]
        %v1990 = vld [vmem:[%s1978 + $0x2c] sm:$0xf]
        %v1991 = vld [vmem:[%s1978 + $0x30] sm:$0xf]
        %v1992 = vld [vmem:[%s1978 + $0x34] sm:$0xf]
        %v1993 = vld [vmem:[%s1978 + $0x38] sm:$0xf]
        %v1994 = vld [vmem:[%s1978 + $0x3c] sm:$0xf]
        %v2011 = vunpack.c.l.b16 %v1979
        %v2012 = vunpack.c.l.b16 %v1980
        %v2013 = vunpack.c.l.b16 %v1981
        %v2014 = vunpack.c.l.b16 %v1982
        %v2015 = vunpack.c.l.b16 %v1983
        %v2016 = vunpack.c.l.b16 %v1984
        %v2017 = vunpack.c.l.b16 %v1985
        %v2018 = vunpack.c.l.b16 %v1986
        %v2019 = vunpack.c.l.b16 %v1987
        %v2020 = vunpack.c.l.b16 %v1988
        %v2021 = vunpack.c.l.b16 %v1989
        %v2022 = vunpack.c.l.b16 %v1990
        %v2023 = vunpack.c.l.b16 %v1991
        %v2024 = vunpack.c.l.b16 %v1992
        %v2025 = vunpack.c.l.b16 %v1993
        %v2026 = vunpack.c.l.b16 %v1994
        %v2027 = vpack.c.b16 %v2012, %v2011
        %v2028 = vpack.c.b16 %v2014, %v2013
        %v2029 = vpack.c.b16 %v2016, %v2015
        %v2030 = vpack.c.b16 %v2018, %v2017
        %v2031 = vpack.c.b16 %v2020, %v2019
        %v2032 = vpack.c.b16 %v2022, %v2021
        %v2033 = vpack.c.b16 %v2024, %v2023
        %v2034 = vpack.c.b16 %v2026, %v2025
        %2043 = vmatprep.subr.bf16.mxu0 0
        %2044 = vmatpush1.bf16.msra.mxu0 %v2027
        %2045 = vmatprep.subr.bf16.mxu0 0
        %2046 = vmatpush1.bf16.msra.mxu0 %v2028
        %2047 = vmatprep.subr.bf16.mxu0 0
        %2048 = vmatpush1.bf16.msra.mxu0 %v2029
        %2049 = vmatprep.subr.bf16.mxu0 0
        %2050 = vmatpush1.bf16.msra.mxu0 %v2030
        %2051 = vmatprep.subr.bf16.mxu0 0
        %2052 = vmatpush1.bf16.msra.mxu0 %v2031
        %2053 = vmatprep.subr.bf16.mxu0 0
        %2054 = vmatpush1.bf16.msra.mxu0 %v2032
        %2055 = vmatprep.subr.bf16.mxu0 0
        %2056 = vmatpush1.bf16.msra.mxu0 %v2033
        %2057 = vmatprep.subr.bf16.mxu0 0
        %2058 = vmatpush1.bf16.msra.mxu0 %v2034
        %2059 = vmatprep.subr.bf16.mxu0 0
        %2060 = vmatpush1.bf16.msra.mxu0 0
        %2061 = vmatprep.subr.bf16.mxu0 0
        %2062 = vmatpush1.bf16.msra.mxu0 0
        %2063 = vmatprep.subr.bf16.mxu0 0
        %2064 = vmatpush1.bf16.msra.mxu0 0
        %2065 = vmatprep.subr.bf16.mxu0 0
        %2066 = vmatpush1.bf16.msra.mxu0 0
        %2067 = vmatprep.subr.bf16.mxu0 0
        %2068 = vmatpush1.bf16.msra.mxu0 0
        %2069 = vmatprep.subr.bf16.mxu0 0
        %2070 = vmatpush1.bf16.msra.mxu0 0
        %2071 = vmatprep.subr.bf16.mxu0 0
        %2072 = vmatpush1.bf16.msra.mxu0 0
        %2073 = vmatprep.subr.bf16.mxu0 0
        %2074 = vmatpush1.bf16.msra.mxu0 0
        %2075 = vmatprep.mubr.bf16.mxu0 0
        %2076 = vmatmul.mubr.bf16.gmra.mrb[0].mxu0 %v1962
        %v2077 = vpop.f32.mrb[0].mxu0
        %v2078 = vadd.f32 0.0, %v2077
        %v2079 = vpop.f32.mrb[0].mxu0
        %v2080 = vpop.f32.mrb[0].mxu0
        %v2081 = vadd.f32 0.0, %v2080
        %v2082 = vpop.f32.mrb[0].mxu0
        %2083 = vmatprep.mubr.bf16.mxu0 0
        %2084 = vmatmul.mubr.bf16.gmra.mrb[0].mxu0 %v1963
        %v2085 = vpop.f32.mrb[0].mxu0
        %v2086 = vadd.f32 0.0, %v2085
        %v2087 = vpop.f32.mrb[0].mxu0
        %v2088 = vpop.f32.mrb[0].mxu0
        %v2089 = vadd.f32 0.0, %v2088
        %v2090 = vpop.f32.mrb[0].mxu0
        %2091 = vmatprep.mubr.bf16.mxu0 0
        %2092 = vmatmul.mubr.bf16.gmra.mrb[0].mxu0 %v1964
        %v2093 = vpop.f32.mrb[0].mxu0
        %v2094 = vadd.f32 0.0, %v2093
        %v2095 = vpop.f32.mrb[0].mxu0
        %v2096 = vpop.f32.mrb[0].mxu0
        %v2097 = vadd.f32 0.0, %v2096
        %v2098 = vpop.f32.mrb[0].mxu0
        %2099 = vmatprep.mubr.bf16.mxu0 0
        %2100 = vmatmul.mubr.bf16.gmra.mrb[0].mxu0 %v1965
        %v2101 = vpop.f32.mrb[0].mxu0
        %v2102 = vadd.f32 0.0, %v2101
        %v2103 = vpop.f32.mrb[0].mxu0
        %v2104 = vpop.f32.mrb[0].mxu0
        %v2105 = vadd.f32 0.0, %v2104
        %v2106 = vpop.f32.mrb[0].mxu0
        %2107 = vmatprep.mubr.bf16.mxu0 0
        %2108 = vmatmul.mubr.bf16.gmra.mrb[0].mxu0 %v1966
        %v2109 = vpop.f32.mrb[0].mxu0
        %v2110 = vadd.f32 0.0, %v2109
        %v2111 = vpop.f32.mrb[0].mxu0
        %v2112 = vpop.f32.mrb[0].mxu0
        %v2113 = vadd.f32 0.0, %v2112
        %v2114 = vpop.f32.mrb[0].mxu0
        %2115 = vmatprep.mubr.bf16.mxu0 0
        %2116 = vmatmul.mubr.bf16.gmra.mrb[0].mxu0 %v1967
        %v2117 = vpop.f32.mrb[0].mxu0
        %v2118 = vadd.f32 0.0, %v2117
        %v2119 = vpop.f32.mrb[0].mxu0
        %v2120 = vpop.f32.mrb[0].mxu0
        %v2121 = vadd.f32 0.0, %v2120
        %v2122 = vpop.f32.mrb[0].mxu0
        %2123 = vmatprep.mubr.bf16.mxu0 0
        %2124 = vmatmul.mubr.bf16.gmra.mrb[0].mxu0 %v1968
        %v2125 = vpop.f32.mrb[0].mxu0
        %v2126 = vadd.f32 0.0, %v2125
        %v2127 = vpop.f32.mrb[0].mxu0
        %v2128 = vpop.f32.mrb[0].mxu0
        %v2129 = vadd.f32 0.0, %v2128
        %v2130 = vpop.f32.mrb[0].mxu0
        %2131 = vmatprep.mubr.bf16.mxu0 0
        %2132 = vmatmul.mubr.bf16.gmra.mrb[0].mxu0 %v1969
        %v2133 = vpop.f32.mrb[0].mxu0
        %v2134 = vadd.f32 0.0, %v2133
        %v2135 = vpop.f32.mrb[0].mxu0
        %v2136 = vpop.f32.mrb[0].mxu0
        %v2137 = vadd.f32 0.0, %v2136
        %v2138 = vpop.f32.mrb[0].mxu0
        %2139 = vmatprep.mubr.bf16.mxu0 0
        %2140 = vmatmul.mubr.bf16.gmra.mrb[0].mxu0 %v1970
        %v2141 = vpop.f32.mrb[0].mxu0
        %v2142 = vadd.f32 0.0, %v2141
        %v2143 = vpop.f32.mrb[0].mxu0
        %v2144 = vpop.f32.mrb[0].mxu0
        %v2145 = vadd.f32 0.0, %v2144
        %v2146 = vpop.f32.mrb[0].mxu0
        %2147 = vmatprep.mubr.bf16.mxu0 0
        %2148 = vmatmul.mubr.bf16.gmra.mrb[0].mxu0 %v1971
        %v2149 = vpop.f32.mrb[0].mxu0
        %v2150 = vadd.f32 0.0, %v2149
        %v2151 = vpop.f32.mrb[0].mxu0
        %v2152 = vpop.f32.mrb[0].mxu0
        %v2153 = vadd.f32 0.0, %v2152
        %v2154 = vpop.f32.mrb[0].mxu0
        %2155 = vmatprep.mubr.bf16.mxu0 0
        %2156 = vmatmul.mubr.bf16.gmra.mrb[0].mxu0 %v1972
        %v2157 = vpop.f32.mrb[0].mxu0
        %v2158 = vadd.f32 0.0, %v2157
        %v2159 = vpop.f32.mrb[0].mxu0
        %v2160 = vpop.f32.mrb[0].mxu0
        %v2161 = vadd.f32 0.0, %v2160
        %v2162 = vpop.f32.mrb[0].mxu0
        %2163 = vmatprep.mubr.bf16.mxu0 0
        %2164 = vmatmul.mubr.bf16.gmra.mrb[0].mxu0 %v1973
        %v2165 = vpop.f32.mrb[0].mxu0
        %v2166 = vadd.f32 0.0, %v2165
        %v2167 = vpop.f32.mrb[0].mxu0
        %v2168 = vpop.f32.mrb[0].mxu0
        %v2169 = vadd.f32 0.0, %v2168
        %v2170 = vpop.f32.mrb[0].mxu0
        %2171 = vmatprep.mubr.bf16.mxu0 0
        %2172 = vmatmul.mubr.bf16.gmra.mrb[0].mxu0 %v1974
        %v2173 = vpop.f32.mrb[0].mxu0
        %v2174 = vadd.f32 0.0, %v2173
        %v2175 = vpop.f32.mrb[0].mxu0
        %v2176 = vpop.f32.mrb[0].mxu0
        %v2177 = vadd.f32 0.0, %v2176
        %v2178 = vpop.f32.mrb[0].mxu0
        %2179 = vmatprep.mubr.bf16.mxu0 0
        %2180 = vmatmul.mubr.bf16.gmra.mrb[0].mxu0 %v1975
        %v2181 = vpop.f32.mrb[0].mxu0
        %v2182 = vadd.f32 0.0, %v2181
        %v2183 = vpop.f32.mrb[0].mxu0
        %v2184 = vpop.f32.mrb[0].mxu0
        %v2185 = vadd.f32 0.0, %v2184
        %v2186 = vpop.f32.mrb[0].mxu0
        %2187 = vmatprep.mubr.bf16.mxu0 0
        %2188 = vmatmul.mubr.bf16.gmra.mrb[0].mxu0 %v1976
        %v2189 = vpop.f32.mrb[0].mxu0
        %v2190 = vadd.f32 0.0, %v2189
        %v2191 = vpop.f32.mrb[0].mxu0
        %v2192 = vpop.f32.mrb[0].mxu0
        %v2193 = vadd.f32 0.0, %v2192
        %v2194 = vpop.f32.mrb[0].mxu0
        %2195 = vmatprep.mubr.bf16.mxu0 0
        %2196 = vmatmul.mubr.bf16.gmra.mrb[0].mxu0 %v1977
        %v2197 = vpop.f32.mrb[0].mxu0
        %v2198 = vadd.f32 0.0, %v2197
        %v2199 = vpop.f32.mrb[0].mxu0
        %v2200 = vpop.f32.mrb[0].mxu0
        %v2201 = vadd.f32 0.0, %v2200
        %v2202 = vpop.f32.mrb[0].mxu0
        %2203 = vdwg.mxu0
        %v2204 = vadd.f32 %v1898, %v2078
        %v2205 = vadd.f32 %v1899, %v2081
        %v2206 = vadd.f32 %v1900, %v2086
        %v2207 = vadd.f32 %v1901, %v2089
        %v2208 = vadd.f32 %v1902, %v2094
        %v2209 = vadd.f32 %v1903, %v2097
        %v2210 = vadd.f32 %v1904, %v2102
        %v2211 = vadd.f32 %v1905, %v2105
        %v2212 = vadd.f32 %v1906, %v2110
        %v2213 = vadd.f32 %v1907, %v2113
        %v2214 = vadd.f32 %v1908, %v2118
        %v2215 = vadd.f32 %v1909, %v2121
        %v2216 = vadd.f32 %v1910, %v2126
        %v2217 = vadd.f32 %v1911, %v2129
        %v2218 = vadd.f32 %v1912, %v2134
        %v2219 = vadd.f32 %v1913, %v2137
        %v2220 = vadd.f32 %v1914, %v2142
        %v2221 = vadd.f32 %v1915, %v2145
        %v2222 = vadd.f32 %v1916, %v2150
        %v2223 = vadd.f32 %v1917, %v2153
        %v2224 = vadd.f32 %v1918, %v2158
        %v2225 = vadd.f32 %v1919, %v2161
        %v2226 = vadd.f32 %v1920, %v2166
        %v2227 = vadd.f32 %v1921, %v2169
        %v2228 = vadd.f32 %v1922, %v2174
        %v2229 = vadd.f32 %v1923, %v2177
        %v2230 = vadd.f32 %v1924, %v2182
        %v2231 = vadd.f32 %v1925, %v2185
        %v2232 = vadd.f32 %v1926, %v2190
        %v2233 = vadd.f32 %v1927, %v2193
        %v2234 = vadd.f32 %v1928, %v2198
        %v2235 = vadd.f32 %v1929, %v2201
        %v2236 = vld [vmem:[%s1044 + $0x1] sm:$0xff]
        %v2237 = vld [vmem:[%s1044 + $0x9] sm:$0xff]
        %v2238 = vld [vmem:[%s1044 + $0x19] sm:$0xff]
        %v2239 = vld [vmem:[%s1044 + $0x21] sm:$0xff]
        %v2240 = vld [vmem:[%s1044 + $0x31] sm:$0xff]
        %v2241 = vld [vmem:[%s1044 + $0x39] sm:$0xff]
        %v2242 = vld [vmem:[%s1044 + $0x49] sm:$0xff]
        %v2243 = vld [vmem:[%s1044 + $0x51] sm:$0xff]
        %v2244 = vld [vmem:[%s1044 + $0x61] sm:$0xff]
        %v2245 = vld [vmem:[%s1044 + $0x69] sm:$0xff]
        %v2246 = vld [vmem:[%s1044 + $0x79] sm:$0xff]
        %v2247 = vld [vmem:[%s1044 + $0x81] sm:$0xff]
        %v2248 = vld [vmem:[%s1044 + $0x91] sm:$0xff]
        %v2249 = vld [vmem:[%s1044 + $0x99] sm:$0xff]
        %v2250 = vld [vmem:[%s1044 + $0xa9] sm:$0xff]
        %v2251 = vld [vmem:[%s1044 + $0xb1] sm:$0xff]
        %v2252 = vld [vmem:[%s1044 + $0xc1] sm:$0xff]
        %v2253 = vld [vmem:[%s1044 + $0xc9] sm:$0xff]
        %v2254 = vld [vmem:[%s1044 + $0xd9] sm:$0xff]
        %v2255 = vld [vmem:[%s1044 + $0xe1] sm:$0xff]
        %v2256 = vld [vmem:[%s1044 + $0xf1] sm:$0xff]
        %v2257 = vld [vmem:[%s1044 + $0xf9] sm:$0xff]
        %v2258 = vld [vmem:[%s1044 + $0x109] sm:$0xff]
        %v2259 = vld [vmem:[%s1044 + $0x111] sm:$0xff]
        %v2260 = vld [vmem:[%s1044 + $0x121] sm:$0xff]
        %v2261 = vld [vmem:[%s1044 + $0x129] sm:$0xff]
        %v2262 = vld [vmem:[%s1044 + $0x139] sm:$0xff]
        %v2263 = vld [vmem:[%s1044 + $0x141] sm:$0xff]
        %v2264 = vld [vmem:[%s1044 + $0x151] sm:$0xff]
        %v2265 = vld [vmem:[%s1044 + $0x159] sm:$0xff]
        %v2266 = vld [vmem:[%s1044 + $0x169] sm:$0xff]
        %v2267 = vld [vmem:[%s1044 + $0x171] sm:$0xff]
        %v2268 = vpack.c.bf16 %v2237, %v2236
        %v2269 = vpack.c.bf16 %v2239, %v2238
        %v2270 = vpack.c.bf16 %v2241, %v2240
        %v2271 = vpack.c.bf16 %v2243, %v2242
        %v2272 = vpack.c.bf16 %v2245, %v2244
        %v2273 = vpack.c.bf16 %v2247, %v2246
        %v2274 = vpack.c.bf16 %v2249, %v2248
        %v2275 = vpack.c.bf16 %v2251, %v2250
        %v2276 = vpack.c.bf16 %v2253, %v2252
        %v2277 = vpack.c.bf16 %v2255, %v2254
        %v2278 = vpack.c.bf16 %v2257, %v2256
        %v2279 = vpack.c.bf16 %v2259, %v2258
        %v2280 = vpack.c.bf16 %v2261, %v2260
        %v2281 = vpack.c.bf16 %v2263, %v2262
        %v2282 = vpack.c.bf16 %v2265, %v2264
        %v2283 = vpack.c.bf16 %v2267, %v2266
        %s2284 = scalar_lea.vmem [#allocation8], 256
        %v2285 = vld [vmem:[%s2284] sm:$0xf]
        %v2286 = vld [vmem:[%s2284 + $0x4] sm:$0xf]
        %v2287 = vld [vmem:[%s2284 + $0x8] sm:$0xf]
        %v2288 = vld [vmem:[%s2284 + $0xc] sm:$0xf]
        %v2289 = vld [vmem:[%s2284 + $0x10] sm:$0xf]
        %v2290 = vld [vmem:[%s2284 + $0x14] sm:$0xf]
        %v2291 = vld [vmem:[%s2284 + $0x18] sm:$0xf]
        %v2292 = vld [vmem:[%s2284 + $0x1c] sm:$0xf]
        %v2293 = vld [vmem:[%s2284 + $0x20] sm:$0xf]
        %v2294 = vld [vmem:[%s2284 + $0x24] sm:$0xf]
        %v2295 = vld [vmem:[%s2284 + $0x28] sm:$0xf]
        %v2296 = vld [vmem:[%s2284 + $0x2c] sm:$0xf]
        %v2297 = vld [vmem:[%s2284 + $0x30] sm:$0xf]
        %v2298 = vld [vmem:[%s2284 + $0x34] sm:$0xf]
        %v2299 = vld [vmem:[%s2284 + $0x38] sm:$0xf]
        %v2300 = vld [vmem:[%s2284 + $0x3c] sm:$0xf]
        %v2317 = vunpack.c.l.b16 %v2285
        %v2318 = vunpack.c.l.b16 %v2286
        %v2319 = vunpack.c.l.b16 %v2287
        %v2320 = vunpack.c.l.b16 %v2288
        %v2321 = vunpack.c.l.b16 %v2289
        %v2322 = vunpack.c.l.b16 %v2290
        %v2323 = vunpack.c.l.b16 %v2291
        %v2324 = vunpack.c.l.b16 %v2292
        %v2325 = vunpack.c.l.b16 %v2293
        %v2326 = vunpack.c.l.b16 %v2294
        %v2327 = vunpack.c.l.b16 %v2295
        %v2328 = vunpack.c.l.b16 %v2296
        %v2329 = vunpack.c.l.b16 %v2297
        %v2330 = vunpack.c.l.b16 %v2298
        %v2331 = vunpack.c.l.b16 %v2299
        %v2332 = vunpack.c.l.b16 %v2300
        %v2333 = vpack.c.b16 %v2318, %v2317
        %v2334 = vpack.c.b16 %v2320, %v2319
        %v2335 = vpack.c.b16 %v2322, %v2321
        %v2336 = vpack.c.b16 %v2324, %v2323
        %v2337 = vpack.c.b16 %v2326, %v2325
        %v2338 = vpack.c.b16 %v2328, %v2327
        %v2339 = vpack.c.b16 %v2330, %v2329
        %v2340 = vpack.c.b16 %v2332, %v2331
        %2349 = vmatprep.subr.bf16.mxu0 0
        %2350 = vmatpush1.bf16.msra.mxu0 %v2333
        %2351 = vmatprep.subr.bf16.mxu0 0
        %2352 = vmatpush1.bf16.msra.mxu0 %v2334
        %2353 = vmatprep.subr.bf16.mxu0 0
        %2354 = vmatpush1.bf16.msra.mxu0 %v2335
        %2355 = vmatprep.subr.bf16.mxu0 0
        %2356 = vmatpush1.bf16.msra.mxu0 %v2336
        %2357 = vmatprep.subr.bf16.mxu0 0
        %2358 = vmatpush1.bf16.msra.mxu0 %v2337
        %2359 = vmatprep.subr.bf16.mxu0 0
        %2360 = vmatpush1.bf16.msra.mxu0 %v2338
        %2361 = vmatprep.subr.bf16.mxu0 0
        %2362 = vmatpush1.bf16.msra.mxu0 %v2339
        %2363 = vmatprep.subr.bf16.mxu0 0
        %2364 = vmatpush1.bf16.msra.mxu0 %v2340
        %2365 = vmatprep.subr.bf16.mxu0 0
        %2366 = vmatpush1.bf16.msra.mxu0 0
        %2367 = vmatprep.subr.bf16.mxu0 0
        %2368 = vmatpush1.bf16.msra.mxu0 0
        %2369 = vmatprep.subr.bf16.mxu0 0
        %2370 = vmatpush1.bf16.msra.mxu0 0
        %2371 = vmatprep.subr.bf16.mxu0 0
        %2372 = vmatpush1.bf16.msra.mxu0 0
        %2373 = vmatprep.subr.bf16.mxu0 0
        %2374 = vmatpush1.bf16.msra.mxu0 0
        %2375 = vmatprep.subr.bf16.mxu0 0
        %2376 = vmatpush1.bf16.msra.mxu0 0
        %2377 = vmatprep.subr.bf16.mxu0 0
        %2378 = vmatpush1.bf16.msra.mxu0 0
        %2379 = vmatprep.subr.bf16.mxu0 0
        %2380 = vmatpush1.bf16.msra.mxu0 0
        %2381 = vmatprep.mubr.bf16.mxu0 0
        %2382 = vmatmul.mubr.bf16.gmra.mrb[0].mxu0 %v2268
        %v2383 = vpop.f32.mrb[0].mxu0
        %v2384 = vadd.f32 0.0, %v2383
        %v2385 = vpop.f32.mrb[0].mxu0
        %v2386 = vpop.f32.mrb[0].mxu0
        %v2387 = vadd.f32 0.0, %v2386
        %v2388 = vpop.f32.mrb[0].mxu0
        %2389 = vmatprep.mubr.bf16.mxu0 0
        %2390 = vmatmul.mubr.bf16.gmra.mrb[0].mxu0 %v2269
        %v2391 = vpop.f32.mrb[0].mxu0
        %v2392 = vadd.f32 0.0, %v2391
        %v2393 = vpop.f32.mrb[0].mxu0
        %v2394 = vpop.f32.mrb[0].mxu0
        %v2395 = vadd.f32 0.0, %v2394
        %v2396 = vpop.f32.mrb[0].mxu0
        %2397 = vmatprep.mubr.bf16.mxu0 0
        %2398 = vmatmul.mubr.bf16.gmra.mrb[0].mxu0 %v2270
        %v2399 = vpop.f32.mrb[0].mxu0
        %v2400 = vadd.f32 0.0, %v2399
        %v2401 = vpop.f32.mrb[0].mxu0
        %v2402 = vpop.f32.mrb[0].mxu0
        %v2403 = vadd.f32 0.0, %v2402
        %v2404 = vpop.f32.mrb[0].mxu0
        %2405 = vmatprep.mubr.bf16.mxu0 0
        %2406 = vmatmul.mubr.bf16.gmra.mrb[0].mxu0 %v2271
        %v2407 = vpop.f32.mrb[0].mxu0
        %v2408 = vadd.f32 0.0, %v2407
        %v2409 = vpop.f32.mrb[0].mxu0
        %v2410 = vpop.f32.mrb[0].mxu0
        %v2411 = vadd.f32 0.0, %v2410
        %v2412 = vpop.f32.mrb[0].mxu0
        %2413 = vmatprep.mubr.bf16.mxu0 0
        %2414 = vmatmul.mubr.bf16.gmra.mrb[0].mxu0 %v2272
        %v2415 = vpop.f32.mrb[0].mxu0
        %v2416 = vadd.f32 0.0, %v2415
        %v2417 = vpop.f32.mrb[0].mxu0
        %v2418 = vpop.f32.mrb[0].mxu0
        %v2419 = vadd.f32 0.0, %v2418
        %v2420 = vpop.f32.mrb[0].mxu0
        %2421 = vmatprep.mubr.bf16.mxu0 0
        %2422 = vmatmul.mubr.bf16.gmra.mrb[0].mxu0 %v2273
        %v2423 = vpop.f32.mrb[0].mxu0
        %v2424 = vadd.f32 0.0, %v2423
        %v2425 = vpop.f32.mrb[0].mxu0
        %v2426 = vpop.f32.mrb[0].mxu0
        %v2427 = vadd.f32 0.0, %v2426
        %v2428 = vpop.f32.mrb[0].mxu0
        %2429 = vmatprep.mubr.bf16.mxu0 0
        %2430 = vmatmul.mubr.bf16.gmra.mrb[0].mxu0 %v2274
        %v2431 = vpop.f32.mrb[0].mxu0
        %v2432 = vadd.f32 0.0, %v2431
        %v2433 = vpop.f32.mrb[0].mxu0
        %v2434 = vpop.f32.mrb[0].mxu0
        %v2435 = vadd.f32 0.0, %v2434
        %v2436 = vpop.f32.mrb[0].mxu0
        %2437 = vmatprep.mubr.bf16.mxu0 0
        %2438 = vmatmul.mubr.bf16.gmra.mrb[0].mxu0 %v2275
        %v2439 = vpop.f32.mrb[0].mxu0
        %v2440 = vadd.f32 0.0, %v2439
        %v2441 = vpop.f32.mrb[0].mxu0
        %v2442 = vpop.f32.mrb[0].mxu0
        %v2443 = vadd.f32 0.0, %v2442
        %v2444 = vpop.f32.mrb[0].mxu0
        %2445 = vmatprep.mubr.bf16.mxu0 0
        %2446 = vmatmul.mubr.bf16.gmra.mrb[0].mxu0 %v2276
        %v2447 = vpop.f32.mrb[0].mxu0
        %v2448 = vadd.f32 0.0, %v2447
        %v2449 = vpop.f32.mrb[0].mxu0
        %v2450 = vpop.f32.mrb[0].mxu0
        %v2451 = vadd.f32 0.0, %v2450
        %v2452 = vpop.f32.mrb[0].mxu0
        %2453 = vmatprep.mubr.bf16.mxu0 0
        %2454 = vmatmul.mubr.bf16.gmra.mrb[0].mxu0 %v2277
        %v2455 = vpop.f32.mrb[0].mxu0
        %v2456 = vadd.f32 0.0, %v2455
        %v2457 = vpop.f32.mrb[0].mxu0
        %v2458 = vpop.f32.mrb[0].mxu0
        %v2459 = vadd.f32 0.0, %v2458
        %v2460 = vpop.f32.mrb[0].mxu0
        %2461 = vmatprep.mubr.bf16.mxu0 0
        %2462 = vmatmul.mubr.bf16.gmra.mrb[0].mxu0 %v2278
        %v2463 = vpop.f32.mrb[0].mxu0
        %v2464 = vadd.f32 0.0, %v2463
        %v2465 = vpop.f32.mrb[0].mxu0
        %v2466 = vpop.f32.mrb[0].mxu0
        %v2467 = vadd.f32 0.0, %v2466
        %v2468 = vpop.f32.mrb[0].mxu0
        %2469 = vmatprep.mubr.bf16.mxu0 0
        %2470 = vmatmul.mubr.bf16.gmra.mrb[0].mxu0 %v2279
        %v2471 = vpop.f32.mrb[0].mxu0
        %v2472 = vadd.f32 0.0, %v2471
        %v2473 = vpop.f32.mrb[0].mxu0
        %v2474 = vpop.f32.mrb[0].mxu0
        %v2475 = vadd.f32 0.0, %v2474
        %v2476 = vpop.f32.mrb[0].mxu0
        %2477 = vmatprep.mubr.bf16.mxu0 0
        %2478 = vmatmul.mubr.bf16.gmra.mrb[0].mxu0 %v2280
        %v2479 = vpop.f32.mrb[0].mxu0
        %v2480 = vadd.f32 0.0, %v2479
        %v2481 = vpop.f32.mrb[0].mxu0
        %v2482 = vpop.f32.mrb[0].mxu0
        %v2483 = vadd.f32 0.0, %v2482
        %v2484 = vpop.f32.mrb[0].mxu0
        %2485 = vmatprep.mubr.bf16.mxu0 0
        %2486 = vmatmul.mubr.bf16.gmra.mrb[0].mxu0 %v2281
        %v2487 = vpop.f32.mrb[0].mxu0
        %v2488 = vadd.f32 0.0, %v2487
        %v2489 = vpop.f32.mrb[0].mxu0
        %v2490 = vpop.f32.mrb[0].mxu0
        %v2491 = vadd.f32 0.0, %v2490
        %v2492 = vpop.f32.mrb[0].mxu0
        %2493 = vmatprep.mubr.bf16.mxu0 0
        %2494 = vmatmul.mubr.bf16.gmra.mrb[0].mxu0 %v2282
        %v2495 = vpop.f32.mrb[0].mxu0
        %v2496 = vadd.f32 0.0, %v2495
        %v2497 = vpop.f32.mrb[0].mxu0
        %v2498 = vpop.f32.mrb[0].mxu0
        %v2499 = vadd.f32 0.0, %v2498
        %v2500 = vpop.f32.mrb[0].mxu0
        %2501 = vmatprep.mubr.bf16.mxu0 0
        %2502 = vmatmul.mubr.bf16.gmra.mrb[0].mxu0 %v2283
        %v2503 = vpop.f32.mrb[0].mxu0
        %v2504 = vadd.f32 0.0, %v2503
        %v2505 = vpop.f32.mrb[0].mxu0
        %v2506 = vpop.f32.mrb[0].mxu0
        %v2507 = vadd.f32 0.0, %v2506
        %v2508 = vpop.f32.mrb[0].mxu0
        %2509 = vdwg.mxu0
        %v2510 = vadd.f32 %v2204, %v2384
        %v2511 = vadd.f32 %v2205, %v2387
        %v2512 = vadd.f32 %v2206, %v2392
        %v2513 = vadd.f32 %v2207, %v2395
        %v2514 = vadd.f32 %v2208, %v2400
        %v2515 = vadd.f32 %v2209, %v2403
        %v2516 = vadd.f32 %v2210, %v2408
        %v2517 = vadd.f32 %v2211, %v2411
        %v2518 = vadd.f32 %v2212, %v2416
        %v2519 = vadd.f32 %v2213, %v2419
        %v2520 = vadd.f32 %v2214, %v2424
        %v2521 = vadd.f32 %v2215, %v2427
        %v2522 = vadd.f32 %v2216, %v2432
        %v2523 = vadd.f32 %v2217, %v2435
        %v2524 = vadd.f32 %v2218, %v2440
        %v2525 = vadd.f32 %v2219, %v2443
        %v2526 = vadd.f32 %v2220, %v2448
        %v2527 = vadd.f32 %v2221, %v2451
        %v2528 = vadd.f32 %v2222, %v2456
        %v2529 = vadd.f32 %v2223, %v2459
        %v2530 = vadd.f32 %v2224, %v2464
        %v2531 = vadd.f32 %v2225, %v2467
        %v2532 = vadd.f32 %v2226, %v2472
        %v2533 = vadd.f32 %v2227, %v2475
        %v2534 = vadd.f32 %v2228, %v2480
        %v2535 = vadd.f32 %v2229, %v2483
        %v2536 = vadd.f32 %v2230, %v2488
        %v2537 = vadd.f32 %v2231, %v2491
        %v2538 = vadd.f32 %v2232, %v2496
        %v2539 = vadd.f32 %v2233, %v2499
        %v2540 = vadd.f32 %v2234, %v2504
        %v2541 = vadd.f32 %v2235, %v2507
        %v2542 = vld [vmem:[%s1044 + $0x2] sm:$0xff]
        %v2543 = vld [vmem:[%s1044 + $0xa] sm:$0xff]
        %v2544 = vld [vmem:[%s1044 + $0x1a] sm:$0xff]
        %v2545 = vld [vmem:[%s1044 + $0x22] sm:$0xff]
        %v2546 = vld [vmem:[%s1044 + $0x32] sm:$0xff]
        %v2547 = vld [vmem:[%s1044 + $0x3a] sm:$0xff]
        %v2548 = vld [vmem:[%s1044 + $0x4a] sm:$0xff]
        %v2549 = vld [vmem:[%s1044 + $0x52] sm:$0xff]
        %v2550 = vld [vmem:[%s1044 + $0x62] sm:$0xff]
        %v2551 = vld [vmem:[%s1044 + $0x6a] sm:$0xff]
        %v2552 = vld [vmem:[%s1044 + $0x7a] sm:$0xff]
        %v2553 = vld [vmem:[%s1044 + $0x82] sm:$0xff]
        %v2554 = vld [vmem:[%s1044 + $0x92] sm:$0xff]
        %v2555 = vld [vmem:[%s1044 + $0x9a] sm:$0xff]
        %v2556 = vld [vmem:[%s1044 + $0xaa] sm:$0xff]
        %v2557 = vld [vmem:[%s1044 + $0xb2] sm:$0xff]
        %v2558 = vld [vmem:[%s1044 + $0xc2] sm:$0xff]
        %v2559 = vld [vmem:[%s1044 + $0xca] sm:$0xff]
        %v2560 = vld [vmem:[%s1044 + $0xda] sm:$0xff]
        %v2561 = vld [vmem:[%s1044 + $0xe2] sm:$0xff]
        %v2562 = vld [vmem:[%s1044 + $0xf2] sm:$0xff]
        %v2563 = vld [vmem:[%s1044 + $0xfa] sm:$0xff]
        %v2564 = vld [vmem:[%s1044 + $0x10a] sm:$0xff]
        %v2565 = vld [vmem:[%s1044 + $0x112] sm:$0xff]
        %v2566 = vld [vmem:[%s1044 + $0x122] sm:$0xff]
        %v2567 = vld [vmem:[%s1044 + $0x12a] sm:$0xff]
        %v2568 = vld [vmem:[%s1044 + $0x13a] sm:$0xff]
        %v2569 = vld [vmem:[%s1044 + $0x142] sm:$0xff]
        %v2570 = vld [vmem:[%s1044 + $0x152] sm:$0xff]
        %v2571 = vld [vmem:[%s1044 + $0x15a] sm:$0xff]
        %v2572 = vld [vmem:[%s1044 + $0x16a] sm:$0xff]
        %v2573 = vld [vmem:[%s1044 + $0x172] sm:$0xff]
        %v2574 = vpack.c.bf16 %v2543, %v2542
        %v2575 = vpack.c.bf16 %v2545, %v2544
        %v2576 = vpack.c.bf16 %v2547, %v2546
        %v2577 = vpack.c.bf16 %v2549, %v2548
        %v2578 = vpack.c.bf16 %v2551, %v2550
        %v2579 = vpack.c.bf16 %v2553, %v2552
        %v2580 = vpack.c.bf16 %v2555, %v2554
        %v2581 = vpack.c.bf16 %v2557, %v2556
        %v2582 = vpack.c.bf16 %v2559, %v2558
        %v2583 = vpack.c.bf16 %v2561, %v2560
        %v2584 = vpack.c.bf16 %v2563, %v2562
        %v2585 = vpack.c.bf16 %v2565, %v2564
        %v2586 = vpack.c.bf16 %v2567, %v2566
        %v2587 = vpack.c.bf16 %v2569, %v2568
        %v2588 = vpack.c.bf16 %v2571, %v2570
        %v2589 = vpack.c.bf16 %v2573, %v2572
        %s2590 = scalar_lea.vmem [#allocation8], 320
        %v2591 = vld [vmem:[%s2590] sm:$0xf]
        %v2592 = vld [vmem:[%s2590 + $0x4] sm:$0xf]
        %v2593 = vld [vmem:[%s2590 + $0x8] sm:$0xf]
        %v2594 = vld [vmem:[%s2590 + $0xc] sm:$0xf]
        %v2595 = vld [vmem:[%s2590 + $0x10] sm:$0xf]
        %v2596 = vld [vmem:[%s2590 + $0x14] sm:$0xf]
        %v2597 = vld [vmem:[%s2590 + $0x18] sm:$0xf]
        %v2598 = vld [vmem:[%s2590 + $0x1c] sm:$0xf]
        %v2599 = vld [vmem:[%s2590 + $0x20] sm:$0xf]
        %v2600 = vld [vmem:[%s2590 + $0x24] sm:$0xf]
        %v2601 = vld [vmem:[%s2590 + $0x28] sm:$0xf]
        %v2602 = vld [vmem:[%s2590 + $0x2c] sm:$0xf]
        %v2603 = vld [vmem:[%s2590 + $0x30] sm:$0xf]
        %v2604 = vld [vmem:[%s2590 + $0x34] sm:$0xf]
        %v2605 = vld [vmem:[%s2590 + $0x38] sm:$0xf]
        %v2606 = vld [vmem:[%s2590 + $0x3c] sm:$0xf]
        %v2623 = vunpack.c.l.b16 %v2591
        %v2624 = vunpack.c.l.b16 %v2592
        %v2625 = vunpack.c.l.b16 %v2593
        %v2626 = vunpack.c.l.b16 %v2594
        %v2627 = vunpack.c.l.b16 %v2595
        %v2628 = vunpack.c.l.b16 %v2596
        %v2629 = vunpack.c.l.b16 %v2597
        %v2630 = vunpack.c.l.b16 %v2598
        %v2631 = vunpack.c.l.b16 %v2599
        %v2632 = vunpack.c.l.b16 %v2600
        %v2633 = vunpack.c.l.b16 %v2601
        %v2634 = vunpack.c.l.b16 %v2602
        %v2635 = vunpack.c.l.b16 %v2603
        %v2636 = vunpack.c.l.b16 %v2604
        %v2637 = vunpack.c.l.b16 %v2605
        %v2638 = vunpack.c.l.b16 %v2606
        %v2639 = vpack.c.b16 %v2624, %v2623
        %v2640 = vpack.c.b16 %v2626, %v2625
        %v2641 = vpack.c.b16 %v2628, %v2627
        %v2642 = vpack.c.b16 %v2630, %v2629
        %v2643 = vpack.c.b16 %v2632, %v2631
        %v2644 = vpack.c.b16 %v2634, %v2633
        %v2645 = vpack.c.b16 %v2636, %v2635
        %v2646 = vpack.c.b16 %v2638, %v2637
        %2655 = vmatprep.subr.bf16.mxu0 0
        %2656 = vmatpush1.bf16.msra.mxu0 %v2639
        %2657 = vmatprep.subr.bf16.mxu0 0
        %2658 = vmatpush1.bf16.msra.mxu0 %v2640
        %2659 = vmatprep.subr.bf16.mxu0 0
        %2660 = vmatpush1.bf16.msra.mxu0 %v2641
        %2661 = vmatprep.subr.bf16.mxu0 0
        %2662 = vmatpush1.bf16.msra.mxu0 %v2642
        %2663 = vmatprep.subr.bf16.mxu0 0
        %2664 = vmatpush1.bf16.msra.mxu0 %v2643
        %2665 = vmatprep.subr.bf16.mxu0 0
        %2666 = vmatpush1.bf16.msra.mxu0 %v2644
        %2667 = vmatprep.subr.bf16.mxu0 0
        %2668 = vmatpush1.bf16.msra.mxu0 %v2645
        %2669 = vmatprep.subr.bf16.mxu0 0
        %2670 = vmatpush1.bf16.msra.mxu0 %v2646
        %2671 = vmatprep.subr.bf16.mxu0 0
        %2672 = vmatpush1.bf16.msra.mxu0 0
        %2673 = vmatprep.subr.bf16.mxu0 0
        %2674 = vmatpush1.bf16.msra.mxu0 0
        %2675 = vmatprep.subr.bf16.mxu0 0
        %2676 = vmatpush1.bf16.msra.mxu0 0
        %2677 = vmatprep.subr.bf16.mxu0 0
        %2678 = vmatpush1.bf16.msra.mxu0 0
        %2679 = vmatprep.subr.bf16.mxu0 0
        %2680 = vmatpush1.bf16.msra.mxu0 0
        %2681 = vmatprep.subr.bf16.mxu0 0
        %2682 = vmatpush1.bf16.msra.mxu0 0
        %2683 = vmatprep.subr.bf16.mxu0 0
        %2684 = vmatpush1.bf16.msra.mxu0 0
        %2685 = vmatprep.subr.bf16.mxu0 0
        %2686 = vmatpush1.bf16.msra.mxu0 0
        %2687 = vmatprep.mubr.bf16.mxu0 0
        %2688 = vmatmul.mubr.bf16.gmra.mrb[0].mxu0 %v2574
        %v2689 = vpop.f32.mrb[0].mxu0
        %v2690 = vadd.f32 0.0, %v2689
        %v2691 = vpop.f32.mrb[0].mxu0
        %v2692 = vpop.f32.mrb[0].mxu0
        %v2693 = vadd.f32 0.0, %v2692
        %v2694 = vpop.f32.mrb[0].mxu0
        %2695 = vmatprep.mubr.bf16.mxu0 0
        %2696 = vmatmul.mubr.bf16.gmra.mrb[0].mxu0 %v2575
        %v2697 = vpop.f32.mrb[0].mxu0
        %v2698 = vadd.f32 0.0, %v2697
        %v2699 = vpop.f32.mrb[0].mxu0
        %v2700 = vpop.f32.mrb[0].mxu0
        %v2701 = vadd.f32 0.0, %v2700
        %v2702 = vpop.f32.mrb[0].mxu0
        %2703 = vmatprep.mubr.bf16.mxu0 0
        %2704 = vmatmul.mubr.bf16.gmra.mrb[0].mxu0 %v2576
        %v2705 = vpop.f32.mrb[0].mxu0
        %v2706 = vadd.f32 0.0, %v2705
        %v2707 = vpop.f32.mrb[0].mxu0
        %v2708 = vpop.f32.mrb[0].mxu0
        %v2709 = vadd.f32 0.0, %v2708
        %v2710 = vpop.f32.mrb[0].mxu0
        %2711 = vmatprep.mubr.bf16.mxu0 0
        %2712 = vmatmul.mubr.bf16.gmra.mrb[0].mxu0 %v2577
        %v2713 = vpop.f32.mrb[0].mxu0
        %v2714 = vadd.f32 0.0, %v2713
        %v2715 = vpop.f32.mrb[0].mxu0
        %v2716 = vpop.f32.mrb[0].mxu0
        %v2717 = vadd.f32 0.0, %v2716
        %v2718 = vpop.f32.mrb[0].mxu0
        %2719 = vmatprep.mubr.bf16.mxu0 0
        %2720 = vmatmul.mubr.bf16.gmra.mrb[0].mxu0 %v2578
        %v2721 = vpop.f32.mrb[0].mxu0
        %v2722 = vadd.f32 0.0, %v2721
        %v2723 = vpop.f32.mrb[0].mxu0
        %v2724 = vpop.f32.mrb[0].mxu0
        %v2725 = vadd.f32 0.0, %v2724
        %v2726 = vpop.f32.mrb[0].mxu0
        %2727 = vmatprep.mubr.bf16.mxu0 0
        %2728 = vmatmul.mubr.bf16.gmra.mrb[0].mxu0 %v2579
        %v2729 = vpop.f32.mrb[0].mxu0
        %v2730 = vadd.f32 0.0, %v2729
        %v2731 = vpop.f32.mrb[0].mxu0
        %v2732 = vpop.f32.mrb[0].mxu0
        %v2733 = vadd.f32 0.0, %v2732
        %v2734 = vpop.f32.mrb[0].mxu0
        %2735 = vmatprep.mubr.bf16.mxu0 0
        %2736 = vmatmul.mubr.bf16.gmra.mrb[0].mxu0 %v2580
        %v2737 = vpop.f32.mrb[0].mxu0
        %v2738 = vadd.f32 0.0, %v2737
        %v2739 = vpop.f32.mrb[0].mxu0
        %v2740 = vpop.f32.mrb[0].mxu0
        %v2741 = vadd.f32 0.0, %v2740
        %v2742 = vpop.f32.mrb[0].mxu0
        %2743 = vmatprep.mubr.bf16.mxu0 0
        %2744 = vmatmul.mubr.bf16.gmra.mrb[0].mxu0 %v2581
        %v2745 = vpop.f32.mrb[0].mxu0
        %v2746 = vadd.f32 0.0, %v2745
        %v2747 = vpop.f32.mrb[0].mxu0
        %v2748 = vpop.f32.mrb[0].mxu0
        %v2749 = vadd.f32 0.0, %v2748
        %v2750 = vpop.f32.mrb[0].mxu0
        %2751 = vmatprep.mubr.bf16.mxu0 0
        %2752 = vmatmul.mubr.bf16.gmra.mrb[0].mxu0 %v2582
        %v2753 = vpop.f32.mrb[0].mxu0
        %v2754 = vadd.f32 0.0, %v2753
        %v2755 = vpop.f32.mrb[0].mxu0
        %v2756 = vpop.f32.mrb[0].mxu0
        %v2757 = vadd.f32 0.0, %v2756
        %v2758 = vpop.f32.mrb[0].mxu0
        %2759 = vmatprep.mubr.bf16.mxu0 0
        %2760 = vmatmul.mubr.bf16.gmra.mrb[0].mxu0 %v2583
        %v2761 = vpop.f32.mrb[0].mxu0
        %v2762 = vadd.f32 0.0, %v2761
        %v2763 = vpop.f32.mrb[0].mxu0
        %v2764 = vpop.f32.mrb[0].mxu0
        %v2765 = vadd.f32 0.0, %v2764
        %v2766 = vpop.f32.mrb[0].mxu0
        %2767 = vmatprep.mubr.bf16.mxu0 0
        %2768 = vmatmul.mubr.bf16.gmra.mrb[0].mxu0 %v2584
        %v2769 = vpop.f32.mrb[0].mxu0
        %v2770 = vadd.f32 0.0, %v2769
        %v2771 = vpop.f32.mrb[0].mxu0
        %v2772 = vpop.f32.mrb[0].mxu0
        %v2773 = vadd.f32 0.0, %v2772
        %v2774 = vpop.f32.mrb[0].mxu0
        %2775 = vmatprep.mubr.bf16.mxu0 0
        %2776 = vmatmul.mubr.bf16.gmra.mrb[0].mxu0 %v2585
        %v2777 = vpop.f32.mrb[0].mxu0
        %v2778 = vadd.f32 0.0, %v2777
        %v2779 = vpop.f32.mrb[0].mxu0
        %v2780 = vpop.f32.mrb[0].mxu0
        %v2781 = vadd.f32 0.0, %v2780
        %v2782 = vpop.f32.mrb[0].mxu0
        %2783 = vmatprep.mubr.bf16.mxu0 0
        %2784 = vmatmul.mubr.bf16.gmra.mrb[0].mxu0 %v2586
        %v2785 = vpop.f32.mrb[0].mxu0
        %v2786 = vadd.f32 0.0, %v2785
        %v2787 = vpop.f32.mrb[0].mxu0
        %v2788 = vpop.f32.mrb[0].mxu0
        %v2789 = vadd.f32 0.0, %v2788
        %v2790 = vpop.f32.mrb[0].mxu0
        %2791 = vmatprep.mubr.bf16.mxu0 0
        %2792 = vmatmul.mubr.bf16.gmra.mrb[0].mxu0 %v2587
        %v2793 = vpop.f32.mrb[0].mxu0
        %v2794 = vadd.f32 0.0, %v2793
        %v2795 = vpop.f32.mrb[0].mxu0
        %v2796 = vpop.f32.mrb[0].mxu0
        %v2797 = vadd.f32 0.0, %v2796
        %v2798 = vpop.f32.mrb[0].mxu0
        %2799 = vmatprep.mubr.bf16.mxu0 0
        %2800 = vmatmul.mubr.bf16.gmra.mrb[0].mxu0 %v2588
        %v2801 = vpop.f32.mrb[0].mxu0
        %v2802 = vadd.f32 0.0, %v2801
        %v2803 = vpop.f32.mrb[0].mxu0
        %v2804 = vpop.f32.mrb[0].mxu0
        %v2805 = vadd.f32 0.0, %v2804
        %v2806 = vpop.f32.mrb[0].mxu0
        %2807 = vmatprep.mubr.bf16.mxu0 0
        %2808 = vmatmul.mubr.bf16.gmra.mrb[0].mxu0 %v2589
        %v2809 = vpop.f32.mrb[0].mxu0
        %v2810 = vadd.f32 0.0, %v2809
        %v2811 = vpop.f32.mrb[0].mxu0
        %v2812 = vpop.f32.mrb[0].mxu0
        %v2813 = vadd.f32 0.0, %v2812
        %v2814 = vpop.f32.mrb[0].mxu0
        %2815 = vdwg.mxu0
        %v2816 = vadd.f32 %v2510, %v2690
        %v2817 = vadd.f32 %v2511, %v2693
        %v2818 = vadd.f32 %v2512, %v2698
        %v2819 = vadd.f32 %v2513, %v2701
        %v2820 = vadd.f32 %v2514, %v2706
        %v2821 = vadd.f32 %v2515, %v2709
        %v2822 = vadd.f32 %v2516, %v2714
        %v2823 = vadd.f32 %v2517, %v2717
        %v2824 = vadd.f32 %v2518, %v2722
        %v2825 = vadd.f32 %v2519, %v2725
        %v2826 = vadd.f32 %v2520, %v2730
        %v2827 = vadd.f32 %v2521, %v2733
        %v2828 = vadd.f32 %v2522, %v2738
        %v2829 = vadd.f32 %v2523, %v2741
        %v2830 = vadd.f32 %v2524, %v2746
        %v2831 = vadd.f32 %v2525, %v2749
        %v2832 = vadd.f32 %v2526, %v2754
        %v2833 = vadd.f32 %v2527, %v2757
        %v2834 = vadd.f32 %v2528, %v2762
        %v2835 = vadd.f32 %v2529, %v2765
        %v2836 = vadd.f32 %v2530, %v2770
        %v2837 = vadd.f32 %v2531, %v2773
        %v2838 = vadd.f32 %v2532, %v2778
        %v2839 = vadd.f32 %v2533, %v2781
        %v2840 = vadd.f32 %v2534, %v2786
        %v2841 = vadd.f32 %v2535, %v2789
        %v2842 = vadd.f32 %v2536, %v2794
        %v2843 = vadd.f32 %v2537, %v2797
        %v2844 = vadd.f32 %v2538, %v2802
        %v2845 = vadd.f32 %v2539, %v2805
        %v2846 = vadd.f32 %v2540, %v2810
        %v2847 = vadd.f32 %v2541, %v2813
        %s2848 = scalar_lea.vmem [#allocation2], 48
        %v2849 = vld [vmem:[%s2848] sm:$0xff]
        %v2850 = vld [vmem:[%s2848 + $0x8] sm:$0xff]
        %v2851 = vld [vmem:[%s2848 + $0x18] sm:$0xff]
        %v2852 = vld [vmem:[%s2848 + $0x20] sm:$0xff]
        %v2853 = vld [vmem:[%s2848 + $0x30] sm:$0xff]
        %v2854 = vld [vmem:[%s2848 + $0x38] sm:$0xff]
        %v2855 = vld [vmem:[%s2848 + $0x48] sm:$0xff]
        %v2856 = vld [vmem:[%s2848 + $0x50] sm:$0xff]
        %v2857 = vld [vmem:[%s2848 + $0x60] sm:$0xff]
        %v2858 = vld [vmem:[%s2848 + $0x68] sm:$0xff]
        %v2859 = vld [vmem:[%s2848 + $0x78] sm:$0xff]
        %v2860 = vld [vmem:[%s2848 + $0x80] sm:$0xff]
        %v2861 = vld [vmem:[%s2848 + $0x90] sm:$0xff]
        %v2862 = vld [vmem:[%s2848 + $0x98] sm:$0xff]
        %v2863 = vld [vmem:[%s2848 + $0xa8] sm:$0xff]
        %v2864 = vld [vmem:[%s2848 + $0xb0] sm:$0xff]
        %v2865 = vld [vmem:[%s2848 + $0xc0] sm:$0xff]
        %v2866 = vld [vmem:[%s2848 + $0xc8] sm:$0xff]
        %v2867 = vld [vmem:[%s2848 + $0xd8] sm:$0xff]
        %v2868 = vld [vmem:[%s2848 + $0xe0] sm:$0xff]
        %v2869 = vld [vmem:[%s2848 + $0xf0] sm:$0xff]
        %v2870 = vld [vmem:[%s2848 + $0xf8] sm:$0xff]
        %v2871 = vld [vmem:[%s2848 + $0x108] sm:$0xff]
        %v2872 = vld [vmem:[%s2848 + $0x110] sm:$0xff]
        %v2873 = vld [vmem:[%s2848 + $0x120] sm:$0xff]
        %v2874 = vld [vmem:[%s2848 + $0x128] sm:$0xff]
        %v2875 = vld [vmem:[%s2848 + $0x138] sm:$0xff]
        %v2876 = vld [vmem:[%s2848 + $0x140] sm:$0xff]
        %v2877 = vld [vmem:[%s2848 + $0x150] sm:$0xff]
        %v2878 = vld [vmem:[%s2848 + $0x158] sm:$0xff]
        %v2879 = vld [vmem:[%s2848 + $0x168] sm:$0xff]
        %v2880 = vld [vmem:[%s2848 + $0x170] sm:$0xff]
        %v2881 = vpack.c.bf16 %v2850, %v2849
        %v2882 = vpack.c.bf16 %v2852, %v2851
        %v2883 = vpack.c.bf16 %v2854, %v2853
        %v2884 = vpack.c.bf16 %v2856, %v2855
        %v2885 = vpack.c.bf16 %v2858, %v2857
        %v2886 = vpack.c.bf16 %v2860, %v2859
        %v2887 = vpack.c.bf16 %v2862, %v2861
        %v2888 = vpack.c.bf16 %v2864, %v2863
        %v2889 = vpack.c.bf16 %v2866, %v2865
        %v2890 = vpack.c.bf16 %v2868, %v2867
        %v2891 = vpack.c.bf16 %v2870, %v2869
        %v2892 = vpack.c.bf16 %v2872, %v2871
        %v2893 = vpack.c.bf16 %v2874, %v2873
        %v2894 = vpack.c.bf16 %v2876, %v2875
        %v2895 = vpack.c.bf16 %v2878, %v2877
        %v2896 = vpack.c.bf16 %v2880, %v2879
        %s2897 = scalar_lea.vmem [#allocation8], 384
        %v2898 = vld [vmem:[%s2897] sm:$0xf]
        %v2899 = vld [vmem:[%s2897 + $0x4] sm:$0xf]
        %v2900 = vld [vmem:[%s2897 + $0x8] sm:$0xf]
        %v2901 = vld [vmem:[%s2897 + $0xc] sm:$0xf]
        %v2902 = vld [vmem:[%s2897 + $0x10] sm:$0xf]
        %v2903 = vld [vmem:[%s2897 + $0x14] sm:$0xf]
        %v2904 = vld [vmem:[%s2897 + $0x18] sm:$0xf]
        %v2905 = vld [vmem:[%s2897 + $0x1c] sm:$0xf]
        %v2906 = vld [vmem:[%s2897 + $0x20] sm:$0xf]
        %v2907 = vld [vmem:[%s2897 + $0x24] sm:$0xf]
        %v2908 = vld [vmem:[%s2897 + $0x28] sm:$0xf]
        %v2909 = vld [vmem:[%s2897 + $0x2c] sm:$0xf]
        %v2910 = vld [vmem:[%s2897 + $0x30] sm:$0xf]
        %v2911 = vld [vmem:[%s2897 + $0x34] sm:$0xf]
        %v2912 = vld [vmem:[%s2897 + $0x38] sm:$0xf]
        %v2913 = vld [vmem:[%s2897 + $0x3c] sm:$0xf]
        %v2930 = vunpack.c.l.b16 %v2898
        %v2931 = vunpack.c.l.b16 %v2899
        %v2932 = vunpack.c.l.b16 %v2900
        %v2933 = vunpack.c.l.b16 %v2901
        %v2934 = vunpack.c.l.b16 %v2902
        %v2935 = vunpack.c.l.b16 %v2903
        %v2936 = vunpack.c.l.b16 %v2904
        %v2937 = vunpack.c.l.b16 %v2905
        %v2938 = vunpack.c.l.b16 %v2906
        %v2939 = vunpack.c.l.b16 %v2907
        %v2940 = vunpack.c.l.b16 %v2908
        %v2941 = vunpack.c.l.b16 %v2909
        %v2942 = vunpack.c.l.b16 %v2910
        %v2943 = vunpack.c.l.b16 %v2911
        %v2944 = vunpack.c.l.b16 %v2912
        %v2945 = vunpack.c.l.b16 %v2913
        %v2946 = vpack.c.b16 %v2931, %v2930
        %v2947 = vpack.c.b16 %v2933, %v2932
        %v2948 = vpack.c.b16 %v2935, %v2934
        %v2949 = vpack.c.b16 %v2937, %v2936
        %v2950 = vpack.c.b16 %v2939, %v2938
        %v2951 = vpack.c.b16 %v2941, %v2940
        %v2952 = vpack.c.b16 %v2943, %v2942
        %v2953 = vpack.c.b16 %v2945, %v2944
        %2962 = vmatprep.subr.bf16.mxu0 0
        %2963 = vmatpush1.bf16.msra.mxu0 %v2946
        %2964 = vmatprep.subr.bf16.mxu0 0
        %2965 = vmatpush1.bf16.msra.mxu0 %v2947
        %2966 = vmatprep.subr.bf16.mxu0 0
        %2967 = vmatpush1.bf16.msra.mxu0 %v2948
        %2968 = vmatprep.subr.bf16.mxu0 0
        %2969 = vmatpush1.bf16.msra.mxu0 %v2949
        %2970 = vmatprep.subr.bf16.mxu0 0
        %2971 = vmatpush1.bf16.msra.mxu0 %v2950
        %2972 = vmatprep.subr.bf16.mxu0 0
        %2973 = vmatpush1.bf16.msra.mxu0 %v2951
        %2974 = vmatprep.subr.bf16.mxu0 0
        %2975 = vmatpush1.bf16.msra.mxu0 %v2952
        %2976 = vmatprep.subr.bf16.mxu0 0
        %2977 = vmatpush1.bf16.msra.mxu0 %v2953
        %2978 = vmatprep.subr.bf16.mxu0 0
        %2979 = vmatpush1.bf16.msra.mxu0 0
        %2980 = vmatprep.subr.bf16.mxu0 0
        %2981 = vmatpush1.bf16.msra.mxu0 0
        %2982 = vmatprep.subr.bf16.mxu0 0
        %2983 = vmatpush1.bf16.msra.mxu0 0
        %2984 = vmatprep.subr.bf16.mxu0 0
        %2985 = vmatpush1.bf16.msra.mxu0 0
        %2986 = vmatprep.subr.bf16.mxu0 0
        %2987 = vmatpush1.bf16.msra.mxu0 0
        %2988 = vmatprep.subr.bf16.mxu0 0
        %2989 = vmatpush1.bf16.msra.mxu0 0
        %2990 = vmatprep.subr.bf16.mxu0 0
        %2991 = vmatpush1.bf16.msra.mxu0 0
        %2992 = vmatprep.subr.bf16.mxu0 0
        %2993 = vmatpush1.bf16.msra.mxu0 0
        %2994 = vmatprep.mubr.bf16.mxu0 0
        %2995 = vmatmul.mubr.bf16.gmra.mrb[0].mxu0 %v2881
        %v2996 = vpop.f32.mrb[0].mxu0
        %v2997 = vadd.f32 0.0, %v2996
        %v2998 = vpop.f32.mrb[0].mxu0
        %v2999 = vpop.f32.mrb[0].mxu0
        %v3000 = vadd.f32 0.0, %v2999
        %v3001 = vpop.f32.mrb[0].mxu0
        %3002 = vmatprep.mubr.bf16.mxu0 0
        %3003 = vmatmul.mubr.bf16.gmra.mrb[0].mxu0 %v2882
        %v3004 = vpop.f32.mrb[0].mxu0
        %v3005 = vadd.f32 0.0, %v3004
        %v3006 = vpop.f32.mrb[0].mxu0
        %v3007 = vpop.f32.mrb[0].mxu0
        %v3008 = vadd.f32 0.0, %v3007
        %v3009 = vpop.f32.mrb[0].mxu0
        %3010 = vmatprep.mubr.bf16.mxu0 0
        %3011 = vmatmul.mubr.bf16.gmra.mrb[0].mxu0 %v2883
        %v3012 = vpop.f32.mrb[0].mxu0
        %v3013 = vadd.f32 0.0, %v3012
        %v3014 = vpop.f32.mrb[0].mxu0
        %v3015 = vpop.f32.mrb[0].mxu0
        %v3016 = vadd.f32 0.0, %v3015
        %v3017 = vpop.f32.mrb[0].mxu0
        %3018 = vmatprep.mubr.bf16.mxu0 0
        %3019 = vmatmul.mubr.bf16.gmra.mrb[0].mxu0 %v2884
        %v3020 = vpop.f32.mrb[0].mxu0
        %v3021 = vadd.f32 0.0, %v3020
        %v3022 = vpop.f32.mrb[0].mxu0
        %v3023 = vpop.f32.mrb[0].mxu0
        %v3024 = vadd.f32 0.0, %v3023
        %v3025 = vpop.f32.mrb[0].mxu0
        %3026 = vmatprep.mubr.bf16.mxu0 0
        %3027 = vmatmul.mubr.bf16.gmra.mrb[0].mxu0 %v2885
        %v3028 = vpop.f32.mrb[0].mxu0
        %v3029 = vadd.f32 0.0, %v3028
        %v3030 = vpop.f32.mrb[0].mxu0
        %v3031 = vpop.f32.mrb[0].mxu0
        %v3032 = vadd.f32 0.0, %v3031
        %v3033 = vpop.f32.mrb[0].mxu0
        %3034 = vmatprep.mubr.bf16.mxu0 0
        %3035 = vmatmul.mubr.bf16.gmra.mrb[0].mxu0 %v2886
        %v3036 = vpop.f32.mrb[0].mxu0
        %v3037 = vadd.f32 0.0, %v3036
        %v3038 = vpop.f32.mrb[0].mxu0
        %v3039 = vpop.f32.mrb[0].mxu0
        %v3040 = vadd.f32 0.0, %v3039
        %v3041 = vpop.f32.mrb[0].mxu0
        %3042 = vmatprep.mubr.bf16.mxu0 0
        %3043 = vmatmul.mubr.bf16.gmra.mrb[0].mxu0 %v2887
        %v3044 = vpop.f32.mrb[0].mxu0
        %v3045 = vadd.f32 0.0, %v3044
        %v3046 = vpop.f32.mrb[0].mxu0
        %v3047 = vpop.f32.mrb[0].mxu0
        %v3048 = vadd.f32 0.0, %v3047
        %v3049 = vpop.f32.mrb[0].mxu0
        %3050 = vmatprep.mubr.bf16.mxu0 0
        %3051 = vmatmul.mubr.bf16.gmra.mrb[0].mxu0 %v2888
        %v3052 = vpop.f32.mrb[0].mxu0
        %v3053 = vadd.f32 0.0, %v3052
        %v3054 = vpop.f32.mrb[0].mxu0
        %v3055 = vpop.f32.mrb[0].mxu0
        %v3056 = vadd.f32 0.0, %v3055
        %v3057 = vpop.f32.mrb[0].mxu0
        %3058 = vmatprep.mubr.bf16.mxu0 0
        %3059 = vmatmul.mubr.bf16.gmra.mrb[0].mxu0 %v2889
        %v3060 = vpop.f32.mrb[0].mxu0
        %v3061 = vadd.f32 0.0, %v3060
        %v3062 = vpop.f32.mrb[0].mxu0
        %v3063 = vpop.f32.mrb[0].mxu0
        %v3064 = vadd.f32 0.0, %v3063
        %v3065 = vpop.f32.mrb[0].mxu0
        %3066 = vmatprep.mubr.bf16.mxu0 0
        %3067 = vmatmul.mubr.bf16.gmra.mrb[0].mxu0 %v2890
        %v3068 = vpop.f32.mrb[0].mxu0
        %v3069 = vadd.f32 0.0, %v3068
        %v3070 = vpop.f32.mrb[0].mxu0
        %v3071 = vpop.f32.mrb[0].mxu0
        %v3072 = vadd.f32 0.0, %v3071
        %v3073 = vpop.f32.mrb[0].mxu0
        %3074 = vmatprep.mubr.bf16.mxu0 0
        %3075 = vmatmul.mubr.bf16.gmra.mrb[0].mxu0 %v2891
        %v3076 = vpop.f32.mrb[0].mxu0
        %v3077 = vadd.f32 0.0, %v3076
        %v3078 = vpop.f32.mrb[0].mxu0
        %v3079 = vpop.f32.mrb[0].mxu0
        %v3080 = vadd.f32 0.0, %v3079
        %v3081 = vpop.f32.mrb[0].mxu0
        %3082 = vmatprep.mubr.bf16.mxu0 0
        %3083 = vmatmul.mubr.bf16.gmra.mrb[0].mxu0 %v2892
        %v3084 = vpop.f32.mrb[0].mxu0
        %v3085 = vadd.f32 0.0, %v3084
        %v3086 = vpop.f32.mrb[0].mxu0
        %v3087 = vpop.f32.mrb[0].mxu0
        %v3088 = vadd.f32 0.0, %v3087
        %v3089 = vpop.f32.mrb[0].mxu0
        %3090 = vmatprep.mubr.bf16.mxu0 0
        %3091 = vmatmul.mubr.bf16.gmra.mrb[0].mxu0 %v2893
        %v3092 = vpop.f32.mrb[0].mxu0
        %v3093 = vadd.f32 0.0, %v3092
        %v3094 = vpop.f32.mrb[0].mxu0
        %v3095 = vpop.f32.mrb[0].mxu0
        %v3096 = vadd.f32 0.0, %v3095
        %v3097 = vpop.f32.mrb[0].mxu0
        %3098 = vmatprep.mubr.bf16.mxu0 0
        %3099 = vmatmul.mubr.bf16.gmra.mrb[0].mxu0 %v2894
        %v3100 = vpop.f32.mrb[0].mxu0
        %v3101 = vadd.f32 0.0, %v3100
        %v3102 = vpop.f32.mrb[0].mxu0
        %v3103 = vpop.f32.mrb[0].mxu0
        %v3104 = vadd.f32 0.0, %v3103
        %v3105 = vpop.f32.mrb[0].mxu0
        %3106 = vmatprep.mubr.bf16.mxu0 0
        %3107 = vmatmul.mubr.bf16.gmra.mrb[0].mxu0 %v2895
        %v3108 = vpop.f32.mrb[0].mxu0
        %v3109 = vadd.f32 0.0, %v3108
        %v3110 = vpop.f32.mrb[0].mxu0
        %v3111 = vpop.f32.mrb[0].mxu0
        %v3112 = vadd.f32 0.0, %v3111
        %v3113 = vpop.f32.mrb[0].mxu0
        %3114 = vmatprep.mubr.bf16.mxu0 0
        %3115 = vmatmul.mubr.bf16.gmra.mrb[0].mxu0 %v2896
        %v3116 = vpop.f32.mrb[0].mxu0
        %v3117 = vadd.f32 0.0, %v3116
        %v3118 = vpop.f32.mrb[0].mxu0
        %v3119 = vpop.f32.mrb[0].mxu0
        %v3120 = vadd.f32 0.0, %v3119
        %v3121 = vpop.f32.mrb[0].mxu0
        %3122 = vdwg.mxu0
        %v3123 = vadd.f32 %v2816, %v2997
        %v3124 = vadd.f32 %v2817, %v3000
        %v3125 = vadd.f32 %v2818, %v3005
        %v3126 = vadd.f32 %v2819, %v3008
        %v3127 = vadd.f32 %v2820, %v3013
        %v3128 = vadd.f32 %v2821, %v3016
        %v3129 = vadd.f32 %v2822, %v3021
        %v3130 = vadd.f32 %v2823, %v3024
        %v3131 = vadd.f32 %v2824, %v3029
        %v3132 = vadd.f32 %v2825, %v3032
        %v3133 = vadd.f32 %v2826, %v3037
        %v3134 = vadd.f32 %v2827, %v3040
        %v3135 = vadd.f32 %v2828, %v3045
        %v3136 = vadd.f32 %v2829, %v3048
        %v3137 = vadd.f32 %v2830, %v3053
        %v3138 = vadd.f32 %v2831, %v3056
        %v3139 = vadd.f32 %v2832, %v3061
        %v3140 = vadd.f32 %v2833, %v3064
        %v3141 = vadd.f32 %v2834, %v3069
        %v3142 = vadd.f32 %v2835, %v3072
        %v3143 = vadd.f32 %v2836, %v3077
        %v3144 = vadd.f32 %v2837, %v3080
        %v3145 = vadd.f32 %v2838, %v3085
        %v3146 = vadd.f32 %v2839, %v3088
        %v3147 = vadd.f32 %v2840, %v3093
        %v3148 = vadd.f32 %v2841, %v3096
        %v3149 = vadd.f32 %v2842, %v3101
        %v3150 = vadd.f32 %v2843, %v3104
        %v3151 = vadd.f32 %v2844, %v3109
        %v3152 = vadd.f32 %v2845, %v3112
        %v3153 = vadd.f32 %v2846, %v3117
        %v3154 = vadd.f32 %v2847, %v3120
        %v3155 = vld [vmem:[%s2848 + $0x1] sm:$0xff]
        %v3156 = vld [vmem:[%s2848 + $0x9] sm:$0xff]
        %v3157 = vld [vmem:[%s2848 + $0x19] sm:$0xff]
        %v3158 = vld [vmem:[%s2848 + $0x21] sm:$0xff]
        %v3159 = vld [vmem:[%s2848 + $0x31] sm:$0xff]
        %v3160 = vld [vmem:[%s2848 + $0x39] sm:$0xff]
        %v3161 = vld [vmem:[%s2848 + $0x49] sm:$0xff]
        %v3162 = vld [vmem:[%s2848 + $0x51] sm:$0xff]
        %v3163 = vld [vmem:[%s2848 + $0x61] sm:$0xff]
        %v3164 = vld [vmem:[%s2848 + $0x69] sm:$0xff]
        %v3165 = vld [vmem:[%s2848 + $0x79] sm:$0xff]
        %v3166 = vld [vmem:[%s2848 + $0x81] sm:$0xff]
        %v3167 = vld [vmem:[%s2848 + $0x91] sm:$0xff]
        %v3168 = vld [vmem:[%s2848 + $0x99] sm:$0xff]
        %v3169 = vld [vmem:[%s2848 + $0xa9] sm:$0xff]
        %v3170 = vld [vmem:[%s2848 + $0xb1] sm:$0xff]
        %v3171 = vld [vmem:[%s2848 + $0xc1] sm:$0xff]
        %v3172 = vld [vmem:[%s2848 + $0xc9] sm:$0xff]
        %v3173 = vld [vmem:[%s2848 + $0xd9] sm:$0xff]
        %v3174 = vld [vmem:[%s2848 + $0xe1] sm:$0xff]
        %v3175 = vld [vmem:[%s2848 + $0xf1] sm:$0xff]
        %v3176 = vld [vmem:[%s2848 + $0xf9] sm:$0xff]
        %v3177 = vld [vmem:[%s2848 + $0x109] sm:$0xff]
        %v3178 = vld [vmem:[%s2848 + $0x111] sm:$0xff]
        %v3179 = vld [vmem:[%s2848 + $0x121] sm:$0xff]
        %v3180 = vld [vmem:[%s2848 + $0x129] sm:$0xff]
        %v3181 = vld [vmem:[%s2848 + $0x139] sm:$0xff]
        %v3182 = vld [vmem:[%s2848 + $0x141] sm:$0xff]
        %v3183 = vld [vmem:[%s2848 + $0x151] sm:$0xff]
        %v3184 = vld [vmem:[%s2848 + $0x159] sm:$0xff]
        %v3185 = vld [vmem:[%s2848 + $0x169] sm:$0xff]
        %v3186 = vld [vmem:[%s2848 + $0x171] sm:$0xff]
        %v3187 = vpack.c.bf16 %v3156, %v3155
        %v3188 = vpack.c.bf16 %v3158, %v3157
        %v3189 = vpack.c.bf16 %v3160, %v3159
        %v3190 = vpack.c.bf16 %v3162, %v3161
        %v3191 = vpack.c.bf16 %v3164, %v3163
        %v3192 = vpack.c.bf16 %v3166, %v3165
        %v3193 = vpack.c.bf16 %v3168, %v3167
        %v3194 = vpack.c.bf16 %v3170, %v3169
        %v3195 = vpack.c.bf16 %v3172, %v3171
        %v3196 = vpack.c.bf16 %v3174, %v3173
        %v3197 = vpack.c.bf16 %v3176, %v3175
        %v3198 = vpack.c.bf16 %v3178, %v3177
        %v3199 = vpack.c.bf16 %v3180, %v3179
        %v3200 = vpack.c.bf16 %v3182, %v3181
        %v3201 = vpack.c.bf16 %v3184, %v3183
        %v3202 = vpack.c.bf16 %v3186, %v3185
        %s3203 = scalar_lea.vmem [#allocation8], 448
        %v3204 = vld [vmem:[%s3203] sm:$0xf]
        %v3205 = vld [vmem:[%s3203 + $0x4] sm:$0xf]
        %v3206 = vld [vmem:[%s3203 + $0x8] sm:$0xf]
        %v3207 = vld [vmem:[%s3203 + $0xc] sm:$0xf]
        %v3208 = vld [vmem:[%s3203 + $0x10] sm:$0xf]
        %v3209 = vld [vmem:[%s3203 + $0x14] sm:$0xf]
        %v3210 = vld [vmem:[%s3203 + $0x18] sm:$0xf]
        %v3211 = vld [vmem:[%s3203 + $0x1c] sm:$0xf]
        %v3212 = vld [vmem:[%s3203 + $0x20] sm:$0xf]
        %v3213 = vld [vmem:[%s3203 + $0x24] sm:$0xf]
        %v3214 = vld [vmem:[%s3203 + $0x28] sm:$0xf]
        %v3215 = vld [vmem:[%s3203 + $0x2c] sm:$0xf]
        %v3216 = vld [vmem:[%s3203 + $0x30] sm:$0xf]
        %v3217 = vld [vmem:[%s3203 + $0x34] sm:$0xf]
        %v3218 = vld [vmem:[%s3203 + $0x38] sm:$0xf]
        %v3219 = vld [vmem:[%s3203 + $0x3c] sm:$0xf]
        %v3236 = vunpack.c.l.b16 %v3204
        %v3237 = vunpack.c.l.b16 %v3205
        %v3238 = vunpack.c.l.b16 %v3206
        %v3239 = vunpack.c.l.b16 %v3207
        %v3240 = vunpack.c.l.b16 %v3208
        %v3241 = vunpack.c.l.b16 %v3209
        %v3242 = vunpack.c.l.b16 %v3210
        %v3243 = vunpack.c.l.b16 %v3211
        %v3244 = vunpack.c.l.b16 %v3212
        %v3245 = vunpack.c.l.b16 %v3213
        %v3246 = vunpack.c.l.b16 %v3214
        %v3247 = vunpack.c.l.b16 %v3215
        %v3248 = vunpack.c.l.b16 %v3216
        %v3249 = vunpack.c.l.b16 %v3217
        %v3250 = vunpack.c.l.b16 %v3218
        %v3251 = vunpack.c.l.b16 %v3219
        %v3252 = vpack.c.b16 %v3237, %v3236
        %v3253 = vpack.c.b16 %v3239, %v3238
        %v3254 = vpack.c.b16 %v3241, %v3240
        %v3255 = vpack.c.b16 %v3243, %v3242
        %v3256 = vpack.c.b16 %v3245, %v3244
        %v3257 = vpack.c.b16 %v3247, %v3246
        %v3258 = vpack.c.b16 %v3249, %v3248
        %v3259 = vpack.c.b16 %v3251, %v3250
        %3268 = vmatprep.subr.bf16.mxu0 0
        %3269 = vmatpush1.bf16.msra.mxu0 %v3252
        %3270 = vmatprep.subr.bf16.mxu0 0
        %3271 = vmatpush1.bf16.msra.mxu0 %v3253
        %3272 = vmatprep.subr.bf16.mxu0 0
        %3273 = vmatpush1.bf16.msra.mxu0 %v3254
        %3274 = vmatprep.subr.bf16.mxu0 0
        %3275 = vmatpush1.bf16.msra.mxu0 %v3255
        %3276 = vmatprep.subr.bf16.mxu0 0
        %3277 = vmatpush1.bf16.msra.mxu0 %v3256
        %3278 = vmatprep.subr.bf16.mxu0 0
        %3279 = vmatpush1.bf16.msra.mxu0 %v3257
        %3280 = vmatprep.subr.bf16.mxu0 0
        %3281 = vmatpush1.bf16.msra.mxu0 %v3258
        %3282 = vmatprep.subr.bf16.mxu0 0
        %3283 = vmatpush1.bf16.msra.mxu0 %v3259
        %3284 = vmatprep.subr.bf16.mxu0 0
        %3285 = vmatpush1.bf16.msra.mxu0 0
        %3286 = vmatprep.subr.bf16.mxu0 0
        %3287 = vmatpush1.bf16.msra.mxu0 0
        %3288 = vmatprep.subr.bf16.mxu0 0
        %3289 = vmatpush1.bf16.msra.mxu0 0
        %3290 = vmatprep.subr.bf16.mxu0 0
        %3291 = vmatpush1.bf16.msra.mxu0 0
        %3292 = vmatprep.subr.bf16.mxu0 0
        %3293 = vmatpush1.bf16.msra.mxu0 0
        %3294 = vmatprep.subr.bf16.mxu0 0
        %3295 = vmatpush1.bf16.msra.mxu0 0
        %3296 = vmatprep.subr.bf16.mxu0 0
        %3297 = vmatpush1.bf16.msra.mxu0 0
        %3298 = vmatprep.subr.bf16.mxu0 0
        %3299 = vmatpush1.bf16.msra.mxu0 0
        %3300 = vmatprep.mubr.bf16.mxu0 0
        %3301 = vmatmul.mubr.bf16.gmra.mrb[0].mxu0 %v3187
        %v3302 = vpop.f32.mrb[0].mxu0
        %v3303 = vadd.f32 0.0, %v3302
        %v3304 = vpop.f32.mrb[0].mxu0
        %v3305 = vpop.f32.mrb[0].mxu0
        %v3306 = vadd.f32 0.0, %v3305
        %v3307 = vpop.f32.mrb[0].mxu0
        %3308 = vmatprep.mubr.bf16.mxu0 0
        %3309 = vmatmul.mubr.bf16.gmra.mrb[0].mxu0 %v3188
        %v3310 = vpop.f32.mrb[0].mxu0
        %v3311 = vadd.f32 0.0, %v3310
        %v3312 = vpop.f32.mrb[0].mxu0
        %v3313 = vpop.f32.mrb[0].mxu0
        %v3314 = vadd.f32 0.0, %v3313
        %v3315 = vpop.f32.mrb[0].mxu0
        %3316 = vmatprep.mubr.bf16.mxu0 0
        %3317 = vmatmul.mubr.bf16.gmra.mrb[0].mxu0 %v3189
        %v3318 = vpop.f32.mrb[0].mxu0
        %v3319 = vadd.f32 0.0, %v3318
        %v3320 = vpop.f32.mrb[0].mxu0
        %v3321 = vpop.f32.mrb[0].mxu0
        %v3322 = vadd.f32 0.0, %v3321
        %v3323 = vpop.f32.mrb[0].mxu0
        %3324 = vmatprep.mubr.bf16.mxu0 0
        %3325 = vmatmul.mubr.bf16.gmra.mrb[0].mxu0 %v3190
        %v3326 = vpop.f32.mrb[0].mxu0
        %v3327 = vadd.f32 0.0, %v3326
        %v3328 = vpop.f32.mrb[0].mxu0
        %v3329 = vpop.f32.mrb[0].mxu0
        %v3330 = vadd.f32 0.0, %v3329
        %v3331 = vpop.f32.mrb[0].mxu0
        %3332 = vmatprep.mubr.bf16.mxu0 0
        %3333 = vmatmul.mubr.bf16.gmra.mrb[0].mxu0 %v3191
        %v3334 = vpop.f32.mrb[0].mxu0
        %v3335 = vadd.f32 0.0, %v3334
        %v3336 = vpop.f32.mrb[0].mxu0
        %v3337 = vpop.f32.mrb[0].mxu0
        %v3338 = vadd.f32 0.0, %v3337
        %v3339 = vpop.f32.mrb[0].mxu0
        %3340 = vmatprep.mubr.bf16.mxu0 0
        %3341 = vmatmul.mubr.bf16.gmra.mrb[0].mxu0 %v3192
        %v3342 = vpop.f32.mrb[0].mxu0
        %v3343 = vadd.f32 0.0, %v3342
        %v3344 = vpop.f32.mrb[0].mxu0
        %v3345 = vpop.f32.mrb[0].mxu0
        %v3346 = vadd.f32 0.0, %v3345
        %v3347 = vpop.f32.mrb[0].mxu0
        %3348 = vmatprep.mubr.bf16.mxu0 0
        %3349 = vmatmul.mubr.bf16.gmra.mrb[0].mxu0 %v3193
        %v3350 = vpop.f32.mrb[0].mxu0
        %v3351 = vadd.f32 0.0, %v3350
        %v3352 = vpop.f32.mrb[0].mxu0
        %v3353 = vpop.f32.mrb[0].mxu0
        %v3354 = vadd.f32 0.0, %v3353
        %v3355 = vpop.f32.mrb[0].mxu0
        %3356 = vmatprep.mubr.bf16.mxu0 0
        %3357 = vmatmul.mubr.bf16.gmra.mrb[0].mxu0 %v3194
        %v3358 = vpop.f32.mrb[0].mxu0
        %v3359 = vadd.f32 0.0, %v3358
        %v3360 = vpop.f32.mrb[0].mxu0
        %v3361 = vpop.f32.mrb[0].mxu0
        %v3362 = vadd.f32 0.0, %v3361
        %v3363 = vpop.f32.mrb[0].mxu0
        %3364 = vmatprep.mubr.bf16.mxu0 0
        %3365 = vmatmul.mubr.bf16.gmra.mrb[0].mxu0 %v3195
        %v3366 = vpop.f32.mrb[0].mxu0
        %v3367 = vadd.f32 0.0, %v3366
        %v3368 = vpop.f32.mrb[0].mxu0
        %v3369 = vpop.f32.mrb[0].mxu0
        %v3370 = vadd.f32 0.0, %v3369
        %v3371 = vpop.f32.mrb[0].mxu0
        %3372 = vmatprep.mubr.bf16.mxu0 0
        %3373 = vmatmul.mubr.bf16.gmra.mrb[0].mxu0 %v3196
        %v3374 = vpop.f32.mrb[0].mxu0
        %v3375 = vadd.f32 0.0, %v3374
        %v3376 = vpop.f32.mrb[0].mxu0
        %v3377 = vpop.f32.mrb[0].mxu0
        %v3378 = vadd.f32 0.0, %v3377
        %v3379 = vpop.f32.mrb[0].mxu0
        %3380 = vmatprep.mubr.bf16.mxu0 0
        %3381 = vmatmul.mubr.bf16.gmra.mrb[0].mxu0 %v3197
        %v3382 = vpop.f32.mrb[0].mxu0
        %v3383 = vadd.f32 0.0, %v3382
        %v3384 = vpop.f32.mrb[0].mxu0
        %v3385 = vpop.f32.mrb[0].mxu0
        %v3386 = vadd.f32 0.0, %v3385
        %v3387 = vpop.f32.mrb[0].mxu0
        %3388 = vmatprep.mubr.bf16.mxu0 0
        %3389 = vmatmul.mubr.bf16.gmra.mrb[0].mxu0 %v3198
        %v3390 = vpop.f32.mrb[0].mxu0
        %v3391 = vadd.f32 0.0, %v3390
        %v3392 = vpop.f32.mrb[0].mxu0
        %v3393 = vpop.f32.mrb[0].mxu0
        %v3394 = vadd.f32 0.0, %v3393
        %v3395 = vpop.f32.mrb[0].mxu0
        %3396 = vmatprep.mubr.bf16.mxu0 0
        %3397 = vmatmul.mubr.bf16.gmra.mrb[0].mxu0 %v3199
        %v3398 = vpop.f32.mrb[0].mxu0
        %v3399 = vadd.f32 0.0, %v3398
        %v3400 = vpop.f32.mrb[0].mxu0
        %v3401 = vpop.f32.mrb[0].mxu0
        %v3402 = vadd.f32 0.0, %v3401
        %v3403 = vpop.f32.mrb[0].mxu0
        %3404 = vmatprep.mubr.bf16.mxu0 0
        %3405 = vmatmul.mubr.bf16.gmra.mrb[0].mxu0 %v3200
        %v3406 = vpop.f32.mrb[0].mxu0
        %v3407 = vadd.f32 0.0, %v3406
        %v3408 = vpop.f32.mrb[0].mxu0
        %v3409 = vpop.f32.mrb[0].mxu0
        %v3410 = vadd.f32 0.0, %v3409
        %v3411 = vpop.f32.mrb[0].mxu0
        %3412 = vmatprep.mubr.bf16.mxu0 0
        %3413 = vmatmul.mubr.bf16.gmra.mrb[0].mxu0 %v3201
        %v3414 = vpop.f32.mrb[0].mxu0
        %v3415 = vadd.f32 0.0, %v3414
        %v3416 = vpop.f32.mrb[0].mxu0
        %v3417 = vpop.f32.mrb[0].mxu0
        %v3418 = vadd.f32 0.0, %v3417
        %v3419 = vpop.f32.mrb[0].mxu0
        %3420 = vmatprep.mubr.bf16.mxu0 0
        %3421 = vmatmul.mubr.bf16.gmra.mrb[0].mxu0 %v3202
        %v3422 = vpop.f32.mrb[0].mxu0
        %v3423 = vadd.f32 0.0, %v3422
        %v3424 = vpop.f32.mrb[0].mxu0
        %v3425 = vpop.f32.mrb[0].mxu0
        %v3426 = vadd.f32 0.0, %v3425
        %v3427 = vpop.f32.mrb[0].mxu0
        %3428 = vdwg.mxu0
        %v3429 = vadd.f32 %v3123, %v3303
        %v3430 = vadd.f32 %v3124, %v3306
        %v3431 = vadd.f32 %v3125, %v3311
        %v3432 = vadd.f32 %v3126, %v3314
        %v3433 = vadd.f32 %v3127, %v3319
        %v3434 = vadd.f32 %v3128, %v3322
        %v3435 = vadd.f32 %v3129, %v3327
        %v3436 = vadd.f32 %v3130, %v3330
        %v3437 = vadd.f32 %v3131, %v3335
        %v3438 = vadd.f32 %v3132, %v3338
        %v3439 = vadd.f32 %v3133, %v3343
        %v3440 = vadd.f32 %v3134, %v3346
        %v3441 = vadd.f32 %v3135, %v3351
        %v3442 = vadd.f32 %v3136, %v3354
        %v3443 = vadd.f32 %v3137, %v3359
        %v3444 = vadd.f32 %v3138, %v3362
        %v3445 = vadd.f32 %v3139, %v3367
        %v3446 = vadd.f32 %v3140, %v3370
        %v3447 = vadd.f32 %v3141, %v3375
        %v3448 = vadd.f32 %v3142, %v3378
        %v3449 = vadd.f32 %v3143, %v3383
        %v3450 = vadd.f32 %v3144, %v3386
        %v3451 = vadd.f32 %v3145, %v3391
        %v3452 = vadd.f32 %v3146, %v3394
        %v3453 = vadd.f32 %v3147, %v3399
        %v3454 = vadd.f32 %v3148, %v3402
        %v3455 = vadd.f32 %v3149, %v3407
        %v3456 = vadd.f32 %v3150, %v3410
        %v3457 = vadd.f32 %v3151, %v3415
        %v3458 = vadd.f32 %v3152, %v3418
        %v3459 = vadd.f32 %v3153, %v3423
        %v3460 = vadd.f32 %v3154, %v3426
        %v3461 = vld [vmem:[%s2848 + $0x2] sm:$0xff]
        %v3462 = vld [vmem:[%s2848 + $0xa] sm:$0xff]
        %v3463 = vld [vmem:[%s2848 + $0x1a] sm:$0xff]
        %v3464 = vld [vmem:[%s2848 + $0x22] sm:$0xff]
        %v3465 = vld [vmem:[%s2848 + $0x32] sm:$0xff]
        %v3466 = vld [vmem:[%s2848 + $0x3a] sm:$0xff]
        %v3467 = vld [vmem:[%s2848 + $0x4a] sm:$0xff]
        %v3468 = vld [vmem:[%s2848 + $0x52] sm:$0xff]
        %v3469 = vld [vmem:[%s2848 + $0x62] sm:$0xff]
        %v3470 = vld [vmem:[%s2848 + $0x6a] sm:$0xff]
        %v3471 = vld [vmem:[%s2848 + $0x7a] sm:$0xff]
        %v3472 = vld [vmem:[%s2848 + $0x82] sm:$0xff]
        %v3473 = vld [vmem:[%s2848 + $0x92] sm:$0xff]
        %v3474 = vld [vmem:[%s2848 + $0x9a] sm:$0xff]
        %v3475 = vld [vmem:[%s2848 + $0xaa] sm:$0xff]
        %v3476 = vld [vmem:[%s2848 + $0xb2] sm:$0xff]
        %v3477 = vld [vmem:[%s2848 + $0xc2] sm:$0xff]
        %v3478 = vld [vmem:[%s2848 + $0xca] sm:$0xff]
        %v3479 = vld [vmem:[%s2848 + $0xda] sm:$0xff]
        %v3480 = vld [vmem:[%s2848 + $0xe2] sm:$0xff]
        %v3481 = vld [vmem:[%s2848 + $0xf2] sm:$0xff]
        %v3482 = vld [vmem:[%s2848 + $0xfa] sm:$0xff]
        %v3483 = vld [vmem:[%s2848 + $0x10a] sm:$0xff]
        %v3484 = vld [vmem:[%s2848 + $0x112] sm:$0xff]
        %v3485 = vld [vmem:[%s2848 + $0x122] sm:$0xff]
        %v3486 = vld [vmem:[%s2848 + $0x12a] sm:$0xff]
        %v3487 = vld [vmem:[%s2848 + $0x13a] sm:$0xff]
        %v3488 = vld [vmem:[%s2848 + $0x142] sm:$0xff]
        %v3489 = vld [vmem:[%s2848 + $0x152] sm:$0xff]
        %v3490 = vld [vmem:[%s2848 + $0x15a] sm:$0xff]
        %v3491 = vld [vmem:[%s2848 + $0x16a] sm:$0xff]
        %v3492 = vld [vmem:[%s2848 + $0x172] sm:$0xff]
        %v3493 = vpack.c.bf16 %v3462, %v3461
        %v3494 = vpack.c.bf16 %v3464, %v3463
        %v3495 = vpack.c.bf16 %v3466, %v3465
        %v3496 = vpack.c.bf16 %v3468, %v3467
        %v3497 = vpack.c.bf16 %v3470, %v3469
        %v3498 = vpack.c.bf16 %v3472, %v3471
        %v3499 = vpack.c.bf16 %v3474, %v3473
        %v3500 = vpack.c.bf16 %v3476, %v3475
        %v3501 = vpack.c.bf16 %v3478, %v3477
        %v3502 = vpack.c.bf16 %v3480, %v3479
        %v3503 = vpack.c.bf16 %v3482, %v3481
        %v3504 = vpack.c.bf16 %v3484, %v3483
        %v3505 = vpack.c.bf16 %v3486, %v3485
        %v3506 = vpack.c.bf16 %v3488, %v3487
        %v3507 = vpack.c.bf16 %v3490, %v3489
        %v3508 = vpack.c.bf16 %v3492, %v3491
        %s3509 = scalar_lea.vmem [#allocation8], 512
        %v3510 = vld [vmem:[%s3509] sm:$0xf]
        %v3511 = vld [vmem:[%s3509 + $0x4] sm:$0xf]
        %v3512 = vld [vmem:[%s3509 + $0x8] sm:$0xf]
        %v3513 = vld [vmem:[%s3509 + $0xc] sm:$0xf]
        %v3514 = vld [vmem:[%s3509 + $0x10] sm:$0xf]
        %v3515 = vld [vmem:[%s3509 + $0x14] sm:$0xf]
        %v3516 = vld [vmem:[%s3509 + $0x18] sm:$0xf]
        %v3517 = vld [vmem:[%s3509 + $0x1c] sm:$0xf]
        %v3518 = vld [vmem:[%s3509 + $0x20] sm:$0xf]
        %v3519 = vld [vmem:[%s3509 + $0x24] sm:$0xf]
        %v3520 = vld [vmem:[%s3509 + $0x28] sm:$0xf]
        %v3521 = vld [vmem:[%s3509 + $0x2c] sm:$0xf]
        %v3522 = vld [vmem:[%s3509 + $0x30] sm:$0xf]
        %v3523 = vld [vmem:[%s3509 + $0x34] sm:$0xf]
        %v3524 = vld [vmem:[%s3509 + $0x38] sm:$0xf]
        %v3525 = vld [vmem:[%s3509 + $0x3c] sm:$0xf]
        %v3542 = vunpack.c.l.b16 %v3510
        %v3543 = vunpack.c.l.b16 %v3511
        %v3544 = vunpack.c.l.b16 %v3512
        %v3545 = vunpack.c.l.b16 %v3513
        %v3546 = vunpack.c.l.b16 %v3514
        %v3547 = vunpack.c.l.b16 %v3515
        %v3548 = vunpack.c.l.b16 %v3516
        %v3549 = vunpack.c.l.b16 %v3517
        %v3550 = vunpack.c.l.b16 %v3518
        %v3551 = vunpack.c.l.b16 %v3519
        %v3552 = vunpack.c.l.b16 %v3520
        %v3553 = vunpack.c.l.b16 %v3521
        %v3554 = vunpack.c.l.b16 %v3522
        %v3555 = vunpack.c.l.b16 %v3523
        %v3556 = vunpack.c.l.b16 %v3524
        %v3557 = vunpack.c.l.b16 %v3525
        %v3558 = vpack.c.b16 %v3543, %v3542
        %v3559 = vpack.c.b16 %v3545, %v3544
        %v3560 = vpack.c.b16 %v3547, %v3546
        %v3561 = vpack.c.b16 %v3549, %v3548
        %v3562 = vpack.c.b16 %v3551, %v3550
        %v3563 = vpack.c.b16 %v3553, %v3552
        %v3564 = vpack.c.b16 %v3555, %v3554
        %v3565 = vpack.c.b16 %v3557, %v3556
        %3574 = vmatprep.subr.bf16.mxu0 0
        %3575 = vmatpush1.bf16.msra.mxu0 %v3558
        %3576 = vmatprep.subr.bf16.mxu0 0
        %3577 = vmatpush1.bf16.msra.mxu0 %v3559
        %3578 = vmatprep.subr.bf16.mxu0 0
        %3579 = vmatpush1.bf16.msra.mxu0 %v3560
        %3580 = vmatprep.subr.bf16.mxu0 0
        %3581 = vmatpush1.bf16.msra.mxu0 %v3561
        %3582 = vmatprep.subr.bf16.mxu0 0
        %3583 = vmatpush1.bf16.msra.mxu0 %v3562
        %3584 = vmatprep.subr.bf16.mxu0 0
        %3585 = vmatpush1.bf16.msra.mxu0 %v3563
        %3586 = vmatprep.subr.bf16.mxu0 0
        %3587 = vmatpush1.bf16.msra.mxu0 %v3564
        %3588 = vmatprep.subr.bf16.mxu0 0
        %3589 = vmatpush1.bf16.msra.mxu0 %v3565
        %3590 = vmatprep.subr.bf16.mxu0 0
        %3591 = vmatpush1.bf16.msra.mxu0 0
        %3592 = vmatprep.subr.bf16.mxu0 0
        %3593 = vmatpush1.bf16.msra.mxu0 0
        %3594 = vmatprep.subr.bf16.mxu0 0
        %3595 = vmatpush1.bf16.msra.mxu0 0
        %3596 = vmatprep.subr.bf16.mxu0 0
        %3597 = vmatpush1.bf16.msra.mxu0 0
        %3598 = vmatprep.subr.bf16.mxu0 0
        %3599 = vmatpush1.bf16.msra.mxu0 0
        %3600 = vmatprep.subr.bf16.mxu0 0
        %3601 = vmatpush1.bf16.msra.mxu0 0
        %3602 = vmatprep.subr.bf16.mxu0 0
        %3603 = vmatpush1.bf16.msra.mxu0 0
        %3604 = vmatprep.subr.bf16.mxu0 0
        %3605 = vmatpush1.bf16.msra.mxu0 0
        %3606 = vmatprep.mubr.bf16.mxu0 0
        %3607 = vmatmul.mubr.bf16.gmra.mrb[0].mxu0 %v3493
        %v3608 = vpop.f32.mrb[0].mxu0
        %v3609 = vadd.f32 0.0, %v3608
        %v3610 = vpop.f32.mrb[0].mxu0
        %v3611 = vpop.f32.mrb[0].mxu0
        %v3612 = vadd.f32 0.0, %v3611
        %v3613 = vpop.f32.mrb[0].mxu0
        %3614 = vmatprep.mubr.bf16.mxu0 0
        %3615 = vmatmul.mubr.bf16.gmra.mrb[0].mxu0 %v3494
        %v3616 = vpop.f32.mrb[0].mxu0
        %v3617 = vadd.f32 0.0, %v3616
        %v3618 = vpop.f32.mrb[0].mxu0
        %v3619 = vpop.f32.mrb[0].mxu0
        %v3620 = vadd.f32 0.0, %v3619
        %v3621 = vpop.f32.mrb[0].mxu0
        %3622 = vmatprep.mubr.bf16.mxu0 0
        %3623 = vmatmul.mubr.bf16.gmra.mrb[0].mxu0 %v3495
        %v3624 = vpop.f32.mrb[0].mxu0
        %v3625 = vadd.f32 0.0, %v3624
        %v3626 = vpop.f32.mrb[0].mxu0
        %v3627 = vpop.f32.mrb[0].mxu0
        %v3628 = vadd.f32 0.0, %v3627
        %v3629 = vpop.f32.mrb[0].mxu0
        %3630 = vmatprep.mubr.bf16.mxu0 0
        %3631 = vmatmul.mubr.bf16.gmra.mrb[0].mxu0 %v3496
        %v3632 = vpop.f32.mrb[0].mxu0
        %v3633 = vadd.f32 0.0, %v3632
        %v3634 = vpop.f32.mrb[0].mxu0
        %v3635 = vpop.f32.mrb[0].mxu0
        %v3636 = vadd.f32 0.0, %v3635
        %v3637 = vpop.f32.mrb[0].mxu0
        %3638 = vmatprep.mubr.bf16.mxu0 0
        %3639 = vmatmul.mubr.bf16.gmra.mrb[0].mxu0 %v3497
        %v3640 = vpop.f32.mrb[0].mxu0
        %v3641 = vadd.f32 0.0, %v3640
        %v3642 = vpop.f32.mrb[0].mxu0
        %v3643 = vpop.f32.mrb[0].mxu0
        %v3644 = vadd.f32 0.0, %v3643
        %v3645 = vpop.f32.mrb[0].mxu0
        %3646 = vmatprep.mubr.bf16.mxu0 0
        %3647 = vmatmul.mubr.bf16.gmra.mrb[0].mxu0 %v3498
        %v3648 = vpop.f32.mrb[0].mxu0
        %v3649 = vadd.f32 0.0, %v3648
        %v3650 = vpop.f32.mrb[0].mxu0
        %v3651 = vpop.f32.mrb[0].mxu0
        %v3652 = vadd.f32 0.0, %v3651
        %v3653 = vpop.f32.mrb[0].mxu0
        %3654 = vmatprep.mubr.bf16.mxu0 0
        %3655 = vmatmul.mubr.bf16.gmra.mrb[0].mxu0 %v3499
        %v3656 = vpop.f32.mrb[0].mxu0
        %v3657 = vadd.f32 0.0, %v3656
        %v3658 = vpop.f32.mrb[0].mxu0
        %v3659 = vpop.f32.mrb[0].mxu0
        %v3660 = vadd.f32 0.0, %v3659
        %v3661 = vpop.f32.mrb[0].mxu0
        %3662 = vmatprep.mubr.bf16.mxu0 0
        %3663 = vmatmul.mubr.bf16.gmra.mrb[0].mxu0 %v3500
        %v3664 = vpop.f32.mrb[0].mxu0
        %v3665 = vadd.f32 0.0, %v3664
        %v3666 = vpop.f32.mrb[0].mxu0
        %v3667 = vpop.f32.mrb[0].mxu0
        %v3668 = vadd.f32 0.0, %v3667
        %v3669 = vpop.f32.mrb[0].mxu0
        %3670 = vmatprep.mubr.bf16.mxu0 0
        %3671 = vmatmul.mubr.bf16.gmra.mrb[0].mxu0 %v3501
        %v3672 = vpop.f32.mrb[0].mxu0
        %v3673 = vadd.f32 0.0, %v3672
        %v3674 = vpop.f32.mrb[0].mxu0
        %v3675 = vpop.f32.mrb[0].mxu0
        %v3676 = vadd.f32 0.0, %v3675
        %v3677 = vpop.f32.mrb[0].mxu0
        %3678 = vmatprep.mubr.bf16.mxu0 0
        %3679 = vmatmul.mubr.bf16.gmra.mrb[0].mxu0 %v3502
        %v3680 = vpop.f32.mrb[0].mxu0
        %v3681 = vadd.f32 0.0, %v3680
        %v3682 = vpop.f32.mrb[0].mxu0
        %v3683 = vpop.f32.mrb[0].mxu0
        %v3684 = vadd.f32 0.0, %v3683
        %v3685 = vpop.f32.mrb[0].mxu0
        %3686 = vmatprep.mubr.bf16.mxu0 0
        %3687 = vmatmul.mubr.bf16.gmra.mrb[0].mxu0 %v3503
        %v3688 = vpop.f32.mrb[0].mxu0
        %v3689 = vadd.f32 0.0, %v3688
        %v3690 = vpop.f32.mrb[0].mxu0
        %v3691 = vpop.f32.mrb[0].mxu0
        %v3692 = vadd.f32 0.0, %v3691
        %v3693 = vpop.f32.mrb[0].mxu0
        %3694 = vmatprep.mubr.bf16.mxu0 0
        %3695 = vmatmul.mubr.bf16.gmra.mrb[0].mxu0 %v3504
        %v3696 = vpop.f32.mrb[0].mxu0
        %v3697 = vadd.f32 0.0, %v3696
        %v3698 = vpop.f32.mrb[0].mxu0
        %v3699 = vpop.f32.mrb[0].mxu0
        %v3700 = vadd.f32 0.0, %v3699
        %v3701 = vpop.f32.mrb[0].mxu0
        %3702 = vmatprep.mubr.bf16.mxu0 0
        %3703 = vmatmul.mubr.bf16.gmra.mrb[0].mxu0 %v3505
        %v3704 = vpop.f32.mrb[0].mxu0
        %v3705 = vadd.f32 0.0, %v3704
        %v3706 = vpop.f32.mrb[0].mxu0
        %v3707 = vpop.f32.mrb[0].mxu0
        %v3708 = vadd.f32 0.0, %v3707
        %v3709 = vpop.f32.mrb[0].mxu0
        %3710 = vmatprep.mubr.bf16.mxu0 0
        %3711 = vmatmul.mubr.bf16.gmra.mrb[0].mxu0 %v3506
        %v3712 = vpop.f32.mrb[0].mxu0
        %v3713 = vadd.f32 0.0, %v3712
        %v3714 = vpop.f32.mrb[0].mxu0
        %v3715 = vpop.f32.mrb[0].mxu0
        %v3716 = vadd.f32 0.0, %v3715
        %v3717 = vpop.f32.mrb[0].mxu0
        %3718 = vmatprep.mubr.bf16.mxu0 0
        %3719 = vmatmul.mubr.bf16.gmra.mrb[0].mxu0 %v3507
        %v3720 = vpop.f32.mrb[0].mxu0
        %v3721 = vadd.f32 0.0, %v3720
        %v3722 = vpop.f32.mrb[0].mxu0
        %v3723 = vpop.f32.mrb[0].mxu0
        %v3724 = vadd.f32 0.0, %v3723
        %v3725 = vpop.f32.mrb[0].mxu0
        %3726 = vmatprep.mubr.bf16.mxu0 0
        %3727 = vmatmul.mubr.bf16.gmra.mrb[0].mxu0 %v3508
        %v3728 = vpop.f32.mrb[0].mxu0
        %v3729 = vadd.f32 0.0, %v3728
        %v3730 = vpop.f32.mrb[0].mxu0
        %v3731 = vpop.f32.mrb[0].mxu0
        %v3732 = vadd.f32 0.0, %v3731
        %v3733 = vpop.f32.mrb[0].mxu0
        %3734 = vdwg.mxu0
        %v3735 = vadd.f32 %v3429, %v3609
        %v3736 = vadd.f32 %v3430, %v3612
        %v3737 = vadd.f32 %v3431, %v3617
        %v3738 = vadd.f32 %v3432, %v3620
        %v3739 = vadd.f32 %v3433, %v3625
        %v3740 = vadd.f32 %v3434, %v3628
        %v3741 = vadd.f32 %v3435, %v3633
        %v3742 = vadd.f32 %v3436, %v3636
        %v3743 = vadd.f32 %v3437, %v3641
        %v3744 = vadd.f32 %v3438, %v3644
        %v3745 = vadd.f32 %v3439, %v3649
        %v3746 = vadd.f32 %v3440, %v3652
        %v3747 = vadd.f32 %v3441, %v3657
        %v3748 = vadd.f32 %v3442, %v3660
        %v3749 = vadd.f32 %v3443, %v3665
        %v3750 = vadd.f32 %v3444, %v3668
        %v3751 = vadd.f32 %v3445, %v3673
        %v3752 = vadd.f32 %v3446, %v3676
        %v3753 = vadd.f32 %v3447, %v3681
        %v3754 = vadd.f32 %v3448, %v3684
        %v3755 = vadd.f32 %v3449, %v3689
        %v3756 = vadd.f32 %v3450, %v3692
        %v3757 = vadd.f32 %v3451, %v3697
        %v3758 = vadd.f32 %v3452, %v3700
        %v3759 = vadd.f32 %v3453, %v3705
        %v3760 = vadd.f32 %v3454, %v3708
        %v3761 = vadd.f32 %v3455, %v3713
        %v3762 = vadd.f32 %v3456, %v3716
        %v3763 = vadd.f32 %v3457, %v3721
        %v3764 = vadd.f32 %v3458, %v3724
        %v3765 = vadd.f32 %v3459, %v3729
        %v3766 = vadd.f32 %v3460, %v3732
        %v3767 = vld [vmem:[%s4] sm:$0x1]
        %v3769 = vlaneseq
        %v3770 = vshrl.u32 %v3769, 7
        %v3771 = vsub.s32 0, %v3770
        %v3772 = vrot.slane %v3767, %v3771
        %v3774 = vadd.f32 %v3735, %v3772
        %v3775 = vadd.f32 %v3736, %v3772
        %v3776 = vadd.f32 %v3737, %v3772
        %v3777 = vadd.f32 %v3738, %v3772
        %v3778 = vadd.f32 %v3739, %v3772
        %v3779 = vadd.f32 %v3740, %v3772
        %v3780 = vadd.f32 %v3741, %v3772
        %v3781 = vadd.f32 %v3742, %v3772
        %v3782 = vadd.f32 %v3743, %v3772
        %v3783 = vadd.f32 %v3744, %v3772
        %v3784 = vadd.f32 %v3745, %v3772
        %v3785 = vadd.f32 %v3746, %v3772
        %v3786 = vadd.f32 %v3747, %v3772
        %v3787 = vadd.f32 %v3748, %v3772
        %v3788 = vadd.f32 %v3749, %v3772
        %v3789 = vadd.f32 %v3750, %v3772
        %v3790 = vadd.f32 %v3751, %v3772
        %v3791 = vadd.f32 %v3752, %v3772
        %v3792 = vadd.f32 %v3753, %v3772
        %v3793 = vadd.f32 %v3754, %v3772
        %v3794 = vadd.f32 %v3755, %v3772
        %v3795 = vadd.f32 %v3756, %v3772
        %v3796 = vadd.f32 %v3757, %v3772
        %v3797 = vadd.f32 %v3758, %v3772
        %v3798 = vadd.f32 %v3759, %v3772
        %v3799 = vadd.f32 %v3760, %v3772
        %v3800 = vadd.f32 %v3761, %v3772
        %v3801 = vadd.f32 %v3762, %v3772
        %v3802 = vadd.f32 %v3763, %v3772
        %v3803 = vadd.f32 %v3764, %v3772
        %v3804 = vadd.f32 %v3765, %v3772
        %v3805 = vadd.f32 %v3766, %v3772
        %v3806 = vsub.f32 0.0, %v3774
        %v3807 = vsub.f32 0.0, %v3775
        %v3808 = vsub.f32 0.0, %v3776
        %v3809 = vsub.f32 0.0, %v3777
        %v3810 = vsub.f32 0.0, %v3778
        %v3811 = vsub.f32 0.0, %v3779
        %v3812 = vsub.f32 0.0, %v3780
        %v3813 = vsub.f32 0.0, %v3781
        %v3814 = vsub.f32 0.0, %v3782
        %v3815 = vsub.f32 0.0, %v3783
        %v3816 = vsub.f32 0.0, %v3784
        %v3817 = vsub.f32 0.0, %v3785
        %v3818 = vsub.f32 0.0, %v3786
        %v3819 = vsub.f32 0.0, %v3787
        %v3820 = vsub.f32 0.0, %v3788
        %v3821 = vsub.f32 0.0, %v3789
        %v3822 = vsub.f32 0.0, %v3790
        %v3823 = vsub.f32 0.0, %v3791
        %v3824 = vsub.f32 0.0, %v3792
        %v3825 = vsub.f32 0.0, %v3793
        %v3826 = vsub.f32 0.0, %v3794
        %v3827 = vsub.f32 0.0, %v3795
        %v3828 = vsub.f32 0.0, %v3796
        %v3829 = vsub.f32 0.0, %v3797
        %v3830 = vsub.f32 0.0, %v3798
        %v3831 = vsub.f32 0.0, %v3799
        %v3832 = vsub.f32 0.0, %v3800
        %v3833 = vsub.f32 0.0, %v3801
        %v3834 = vsub.f32 0.0, %v3802
        %v3835 = vsub.f32 0.0, %v3803
        %v3836 = vsub.f32 0.0, %v3804
        %v3837 = vsub.f32 0.0, %v3805
        %v3838 = vmul.f32 %v3806, 1.442695
        %v3839 = vpow.pop %v3838
        %v3840 = vmul.f32 %v3807, 1.442695
        %v3841 = vpow.pop %v3840
        %v3842 = vmul.f32 %v3808, 1.442695
        %v3843 = vpow.pop %v3842
        %v3844 = vmul.f32 %v3809, 1.442695
        %v3845 = vpow.pop %v3844
        %v3846 = vmul.f32 %v3810, 1.442695
        %v3847 = vpow.pop %v3846
        %v3848 = vmul.f32 %v3811, 1.442695
        %v3849 = vpow.pop %v3848
        %v3850 = vmul.f32 %v3812, 1.442695
        %v3851 = vpow.pop %v3850
        %v3852 = vmul.f32 %v3813, 1.442695
        %v3853 = vpow.pop %v3852
        %v3854 = vmul.f32 %v3814, 1.442695
        %v3855 = vpow.pop %v3854
        %v3856 = vmul.f32 %v3815, 1.442695
        %v3857 = vpow.pop %v3856
        %v3858 = vmul.f32 %v3816, 1.442695
        %v3859 = vpow.pop %v3858
        %v3860 = vmul.f32 %v3817, 1.442695
        %v3861 = vpow.pop %v3860
        %v3862 = vmul.f32 %v3818, 1.442695
        %v3863 = vpow.pop %v3862
        %v3864 = vmul.f32 %v3819, 1.442695
        %v3865 = vpow.pop %v3864
        %v3866 = vmul.f32 %v3820, 1.442695
        %v3867 = vpow.pop %v3866
        %v3868 = vmul.f32 %v3821, 1.442695
        %v3869 = vpow.pop %v3868
        %v3870 = vmul.f32 %v3822, 1.442695
        %v3871 = vpow.pop %v3870
        %v3872 = vmul.f32 %v3823, 1.442695
        %v3873 = vpow.pop %v3872
        %v3874 = vmul.f32 %v3824, 1.442695
        %v3875 = vpow.pop %v3874
        %v3876 = vmul.f32 %v3825, 1.442695
        %v3877 = vpow.pop %v3876
        %v3878 = vmul.f32 %v3826, 1.442695
        %v3879 = vpow.pop %v3878
        %v3880 = vmul.f32 %v3827, 1.442695
        %v3881 = vpow.pop %v3880
        %v3882 = vmul.f32 %v3828, 1.442695
        %v3883 = vpow.pop %v3882
        %v3884 = vmul.f32 %v3829, 1.442695
        %v3885 = vpow.pop %v3884
        %v3886 = vmul.f32 %v3830, 1.442695
        %v3887 = vpow.pop %v3886
        %v3888 = vmul.f32 %v3831, 1.442695
        %v3889 = vpow.pop %v3888
        %v3890 = vmul.f32 %v3832, 1.442695
        %v3891 = vpow.pop %v3890
        %v3892 = vmul.f32 %v3833, 1.442695
        %v3893 = vpow.pop %v3892
        %v3894 = vmul.f32 %v3834, 1.442695
        %v3895 = vpow.pop %v3894
        %v3896 = vmul.f32 %v3835, 1.442695
        %v3897 = vpow.pop %v3896
        %v3898 = vmul.f32 %v3836, 1.442695
        %v3899 = vpow.pop %v3898
        %v3900 = vmul.f32 %v3837, 1.442695
        %v3901 = vpow.pop %v3900
        %v3902 = vadd.f32 %v3839, 1.0
        %v3903 = vadd.f32 %v3841, 1.0
        %v3904 = vadd.f32 %v3843, 1.0
        %v3905 = vadd.f32 %v3845, 1.0
        %v3906 = vadd.f32 %v3847, 1.0
        %v3907 = vadd.f32 %v3849, 1.0
        %v3908 = vadd.f32 %v3851, 1.0
        %v3909 = vadd.f32 %v3853, 1.0
        %v3910 = vadd.f32 %v3855, 1.0
        %v3911 = vadd.f32 %v3857, 1.0
        %v3912 = vadd.f32 %v3859, 1.0
        %v3913 = vadd.f32 %v3861, 1.0
        %v3914 = vadd.f32 %v3863, 1.0
        %v3915 = vadd.f32 %v3865, 1.0
        %v3916 = vadd.f32 %v3867, 1.0
        %v3917 = vadd.f32 %v3869, 1.0
        %v3918 = vadd.f32 %v3871, 1.0
        %v3919 = vadd.f32 %v3873, 1.0
        %v3920 = vadd.f32 %v3875, 1.0
        %v3921 = vadd.f32 %v3877, 1.0
        %v3922 = vadd.f32 %v3879, 1.0
        %v3923 = vadd.f32 %v3881, 1.0
        %v3924 = vadd.f32 %v3883, 1.0
        %v3925 = vadd.f32 %v3885, 1.0
        %v3926 = vadd.f32 %v3887, 1.0
        %v3927 = vadd.f32 %v3889, 1.0
        %v3928 = vadd.f32 %v3891, 1.0
        %v3929 = vadd.f32 %v3893, 1.0
        %v3930 = vadd.f32 %v3895, 1.0
        %v3931 = vadd.f32 %v3897, 1.0
        %v3932 = vadd.f32 %v3899, 1.0
        %v3933 = vadd.f32 %v3901, 1.0
        %v3934 = vrcp.pop %v3902
        %v3935 = vrcp.pop %v3903
        %v3936 = vrcp.pop %v3904
        %v3937 = vrcp.pop %v3905
        %v3938 = vrcp.pop %v3906
        %v3939 = vrcp.pop %v3907
        %v3940 = vrcp.pop %v3908
        %v3941 = vrcp.pop %v3909
        %v3942 = vrcp.pop %v3910
        %v3943 = vrcp.pop %v3911
        %v3944 = vrcp.pop %v3912
        %v3945 = vrcp.pop %v3913
        %v3946 = vrcp.pop %v3914
        %v3947 = vrcp.pop %v3915
        %v3948 = vrcp.pop %v3916
        %v3949 = vrcp.pop %v3917
        %v3950 = vrcp.pop %v3918
        %v3951 = vrcp.pop %v3919
        %v3952 = vrcp.pop %v3920
        %v3953 = vrcp.pop %v3921
        %v3954 = vrcp.pop %v3922
        %v3955 = vrcp.pop %v3923
        %v3956 = vrcp.pop %v3924
        %v3957 = vrcp.pop %v3925
        %v3958 = vrcp.pop %v3926
        %v3959 = vrcp.pop %v3927
        %v3960 = vrcp.pop %v3928
        %v3961 = vrcp.pop %v3929
        %v3962 = vrcp.pop %v3930
        %v3963 = vrcp.pop %v3931
        %v3964 = vrcp.pop %v3932
        %v3965 = vrcp.pop %v3933
        %v3966 = vmul.f32 %v3774, %v3934
        %v3967 = vmul.f32 %v3775, %v3935
        %v3968 = vmul.f32 %v3776, %v3936
        %v3969 = vmul.f32 %v3777, %v3937
        %v3970 = vmul.f32 %v3778, %v3938
        %v3971 = vmul.f32 %v3779, %v3939
        %v3972 = vmul.f32 %v3780, %v3940
        %v3973 = vmul.f32 %v3781, %v3941
        %v3974 = vmul.f32 %v3782, %v3942
        %v3975 = vmul.f32 %v3783, %v3943
        %v3976 = vmul.f32 %v3784, %v3944
        %v3977 = vmul.f32 %v3785, %v3945
        %v3978 = vmul.f32 %v3786, %v3946
        %v3979 = vmul.f32 %v3787, %v3947
        %v3980 = vmul.f32 %v3788, %v3948
        %v3981 = vmul.f32 %v3789, %v3949
        %v3982 = vmul.f32 %v3790, %v3950
        %v3983 = vmul.f32 %v3791, %v3951
        %v3984 = vmul.f32 %v3792, %v3952
        %v3985 = vmul.f32 %v3793, %v3953
        %v3986 = vmul.f32 %v3794, %v3954
        %v3987 = vmul.f32 %v3795, %v3955
        %v3988 = vmul.f32 %v3796, %v3956
        %v3989 = vmul.f32 %v3797, %v3957
        %v3990 = vmul.f32 %v3798, %v3958
        %v3991 = vmul.f32 %v3799, %v3959
        %v3992 = vmul.f32 %v3800, %v3960
        %v3993 = vmul.f32 %v3801, %v3961
        %v3994 = vmul.f32 %v3802, %v3962
        %v3995 = vmul.f32 %v3803, %v3963
        %v3996 = vmul.f32 %v3804, %v3964
        %v3997 = vmul.f32 %v3805, %v3965
        %v3998 = vpack.c.bf16 %v3967, %v3966
        %v3999 = vpack.c.bf16 %v3969, %v3968
        %v4000 = vpack.c.bf16 %v3971, %v3970
        %v4001 = vpack.c.bf16 %v3973, %v3972
        %v4002 = vpack.c.bf16 %v3975, %v3974
        %v4003 = vpack.c.bf16 %v3977, %v3976
        %v4004 = vpack.c.bf16 %v3979, %v3978
        %v4005 = vpack.c.bf16 %v3981, %v3980
        %v4006 = vpack.c.bf16 %v3983, %v3982
        %v4007 = vpack.c.bf16 %v3985, %v3984
        %v4008 = vpack.c.bf16 %v3987, %v3986
        %v4009 = vpack.c.bf16 %v3989, %v3988
        %v4010 = vpack.c.bf16 %v3991, %v3990
        %v4011 = vpack.c.bf16 %v3993, %v3992
        %v4012 = vpack.c.bf16 %v3995, %v3994
        %v4013 = vpack.c.bf16 %v3997, %v3996
        %v4014 = vld [vmem:[#allocation9] sm:$0xf]
        %v4015 = vld [vmem:[#allocation9 + $0x4] sm:$0xf]
        %v4016 = vld [vmem:[#allocation9 + $0x8] sm:$0xf]
        %v4017 = vld [vmem:[#allocation9 + $0xc] sm:$0xf]
        %v4018 = vld [vmem:[#allocation9 + $0x10] sm:$0xf]
        %v4019 = vld [vmem:[#allocation9 + $0x14] sm:$0xf]
        %v4020 = vld [vmem:[#allocation9 + $0x18] sm:$0xf]
        %v4021 = vld [vmem:[#allocation9 + $0x1c] sm:$0xf]
        %v4022 = vld [vmem:[#allocation9 + $0x20] sm:$0xf]
        %v4023 = vld [vmem:[#allocation9 + $0x24] sm:$0xf]
        %v4024 = vld [vmem:[#allocation9 + $0x28] sm:$0xf]
        %v4025 = vld [vmem:[#allocation9 + $0x2c] sm:$0xf]
        %v4026 = vld [vmem:[#allocation9 + $0x30] sm:$0xf]
        %v4027 = vld [vmem:[#allocation9 + $0x34] sm:$0xf]
        %v4028 = vld [vmem:[#allocation9 + $0x38] sm:$0xf]
        %v4029 = vld [vmem:[#allocation9 + $0x3c] sm:$0xf]
        %v4046 = vunpack.c.l.b16 %v4014
        %v4047 = vunpack.c.l.b16 %v4015
        %v4048 = vunpack.c.l.b16 %v4016
        %v4049 = vunpack.c.l.b16 %v4017
        %v4050 = vunpack.c.l.b16 %v4018
        %v4051 = vunpack.c.l.b16 %v4019
        %v4052 = vunpack.c.l.b16 %v4020
        %v4053 = vunpack.c.l.b16 %v4021
        %v4054 = vunpack.c.l.b16 %v4022
        %v4055 = vunpack.c.l.b16 %v4023
        %v4056 = vunpack.c.l.b16 %v4024
        %v4057 = vunpack.c.l.b16 %v4025
        %v4058 = vunpack.c.l.b16 %v4026
        %v4059 = vunpack.c.l.b16 %v4027
        %v4060 = vunpack.c.l.b16 %v4028
        %v4061 = vunpack.c.l.b16 %v4029
        %v4062 = vpack.c.b16 %v4047, %v4046
        %v4063 = vpack.c.b16 %v4049, %v4048
        %v4064 = vpack.c.b16 %v4051, %v4050
        %v4065 = vpack.c.b16 %v4053, %v4052
        %v4066 = vpack.c.b16 %v4055, %v4054
        %v4067 = vpack.c.b16 %v4057, %v4056
        %v4068 = vpack.c.b16 %v4059, %v4058
        %v4069 = vpack.c.b16 %v4061, %v4060
        %4078 = vmatprep.subr.bf16.mxu0 0
        %4079 = vmatpush1.bf16.msra.mxu0 %v4062
        %4080 = vmatprep.subr.bf16.mxu0 0
        %4081 = vmatpush1.bf16.msra.mxu0 %v4063
        %4082 = vmatprep.subr.bf16.mxu0 0
        %4083 = vmatpush1.bf16.msra.mxu0 %v4064
        %4084 = vmatprep.subr.bf16.mxu0 0
        %4085 = vmatpush1.bf16.msra.mxu0 %v4065
        %4086 = vmatprep.subr.bf16.mxu0 0
        %4087 = vmatpush1.bf16.msra.mxu0 %v4066
        %4088 = vmatprep.subr.bf16.mxu0 0
        %4089 = vmatpush1.bf16.msra.mxu0 %v4067
        %4090 = vmatprep.subr.bf16.mxu0 0
        %4091 = vmatpush1.bf16.msra.mxu0 %v4068
        %4092 = vmatprep.subr.bf16.mxu0 0
        %4093 = vmatpush1.bf16.msra.mxu0 %v4069
        %4094 = vmatprep.subr.bf16.mxu0 0
        %4095 = vmatpush1.bf16.msra.mxu0 0
        %4096 = vmatprep.subr.bf16.mxu0 0
        %4097 = vmatpush1.bf16.msra.mxu0 0
        %4098 = vmatprep.subr.bf16.mxu0 0
        %4099 = vmatpush1.bf16.msra.mxu0 0
        %4100 = vmatprep.subr.bf16.mxu0 0
        %4101 = vmatpush1.bf16.msra.mxu0 0
        %4102 = vmatprep.subr.bf16.mxu0 0
        %4103 = vmatpush1.bf16.msra.mxu0 0
        %4104 = vmatprep.subr.bf16.mxu0 0
        %4105 = vmatpush1.bf16.msra.mxu0 0
        %4106 = vmatprep.subr.bf16.mxu0 0
        %4107 = vmatpush1.bf16.msra.mxu0 0
        %4108 = vmatprep.subr.bf16.mxu0 0
        %4109 = vmatpush1.bf16.msra.mxu0 0
        %4110 = vmatprep.mubr.bf16.mxu0 0
        %4111 = vmatmul.mubr.bf16.gmra.mrb[0].mxu0 %v3998
        %v4112 = vpop.f32.mrb[0].mxu0
        %v4113 = vadd.f32 %v603, %v4112
        %v4114 = vpop.f32.mrb[0].mxu0
        %v4115 = vpop.f32.mrb[0].mxu0
        %v4116 = vadd.f32 %v607, %v4115
        %v4117 = vpop.f32.mrb[0].mxu0
        %4118 = vmatprep.mubr.bf16.mxu0 0
        %4119 = vmatmul.mubr.bf16.gmra.mrb[0].mxu0 %v3999
        %v4120 = vpop.f32.mrb[0].mxu0
        %v4121 = vadd.f32 %v613, %v4120
        %v4122 = vpop.f32.mrb[0].mxu0
        %v4123 = vpop.f32.mrb[0].mxu0
        %v4124 = vadd.f32 %v617, %v4123
        %v4125 = vpop.f32.mrb[0].mxu0
        %4126 = vmatprep.mubr.bf16.mxu0 0
        %4127 = vmatmul.mubr.bf16.gmra.mrb[0].mxu0 %v4000
        %v4128 = vpop.f32.mrb[0].mxu0
        %v4129 = vadd.f32 %v623, %v4128
        %v4130 = vpop.f32.mrb[0].mxu0
        %v4131 = vpop.f32.mrb[0].mxu0
        %v4132 = vadd.f32 %v627, %v4131
        %v4133 = vpop.f32.mrb[0].mxu0
        %4134 = vmatprep.mubr.bf16.mxu0 0
        %4135 = vmatmul.mubr.bf16.gmra.mrb[0].mxu0 %v4001
        %v4136 = vpop.f32.mrb[0].mxu0
        %v4137 = vadd.f32 %v633, %v4136
        %v4138 = vpop.f32.mrb[0].mxu0
        %v4139 = vpop.f32.mrb[0].mxu0
        %v4140 = vadd.f32 %v637, %v4139
        %v4141 = vpop.f32.mrb[0].mxu0
        %4142 = vmatprep.mubr.bf16.mxu0 0
        %4143 = vmatmul.mubr.bf16.gmra.mrb[0].mxu0 %v4002
        %v4144 = vpop.f32.mrb[0].mxu0
        %v4145 = vadd.f32 %v643, %v4144
        %v4146 = vpop.f32.mrb[0].mxu0
        %v4147 = vpop.f32.mrb[0].mxu0
        %v4148 = vadd.f32 %v647, %v4147
        %v4149 = vpop.f32.mrb[0].mxu0
        %4150 = vmatprep.mubr.bf16.mxu0 0
        %4151 = vmatmul.mubr.bf16.gmra.mrb[0].mxu0 %v4003
        %v4152 = vpop.f32.mrb[0].mxu0
        %v4153 = vadd.f32 %v653, %v4152
        %v4154 = vpop.f32.mrb[0].mxu0
        %v4155 = vpop.f32.mrb[0].mxu0
        %v4156 = vadd.f32 %v657, %v4155
        %v4157 = vpop.f32.mrb[0].mxu0
        %4158 = vmatprep.mubr.bf16.mxu0 0
        %4159 = vmatmul.mubr.bf16.gmra.mrb[0].mxu0 %v4004
        %v4160 = vpop.f32.mrb[0].mxu0
        %v4161 = vadd.f32 %v663, %v4160
        %v4162 = vpop.f32.mrb[0].mxu0
        %v4163 = vpop.f32.mrb[0].mxu0
        %v4164 = vadd.f32 %v667, %v4163
        %v4165 = vpop.f32.mrb[0].mxu0
        %4166 = vmatprep.mubr.bf16.mxu0 0
        %4167 = vmatmul.mubr.bf16.gmra.mrb[0].mxu0 %v4005
        %v4168 = vpop.f32.mrb[0].mxu0
        %v4169 = vadd.f32 %v673, %v4168
        %v4170 = vpop.f32.mrb[0].mxu0
        %v4171 = vpop.f32.mrb[0].mxu0
        %v4172 = vadd.f32 %v677, %v4171
        %v4173 = vpop.f32.mrb[0].mxu0
        %4174 = vmatprep.mubr.bf16.mxu0 0
        %4175 = vmatmul.mubr.bf16.gmra.mrb[0].mxu0 %v4006
        %v4176 = vpop.f32.mrb[0].mxu0
        %v4177 = vadd.f32 %v683, %v4176
        %v4178 = vpop.f32.mrb[0].mxu0
        %v4179 = vpop.f32.mrb[0].mxu0
        %v4180 = vadd.f32 %v687, %v4179
        %v4181 = vpop.f32.mrb[0].mxu0
        %4182 = vmatprep.mubr.bf16.mxu0 0
        %4183 = vmatmul.mubr.bf16.gmra.mrb[0].mxu0 %v4007
        %v4184 = vpop.f32.mrb[0].mxu0
        %v4185 = vadd.f32 %v693, %v4184
        %v4186 = vpop.f32.mrb[0].mxu0
        %v4187 = vpop.f32.mrb[0].mxu0
        %v4188 = vadd.f32 %v697, %v4187
        %v4189 = vpop.f32.mrb[0].mxu0
        %4190 = vmatprep.mubr.bf16.mxu0 0
        %4191 = vmatmul.mubr.bf16.gmra.mrb[0].mxu0 %v4008
        %v4192 = vpop.f32.mrb[0].mxu0
        %v4193 = vadd.f32 %v703, %v4192
        %v4194 = vpop.f32.mrb[0].mxu0
        %v4195 = vpop.f32.mrb[0].mxu0
        %v4196 = vadd.f32 %v707, %v4195
        %v4197 = vpop.f32.mrb[0].mxu0
        %4198 = vmatprep.mubr.bf16.mxu0 0
        %4199 = vmatmul.mubr.bf16.gmra.mrb[0].mxu0 %v4009
        %v4200 = vpop.f32.mrb[0].mxu0
        %v4201 = vadd.f32 %v713, %v4200
        %v4202 = vpop.f32.mrb[0].mxu0
        %v4203 = vpop.f32.mrb[0].mxu0
        %v4204 = vadd.f32 %v717, %v4203
        %v4205 = vpop.f32.mrb[0].mxu0
        %4206 = vmatprep.mubr.bf16.mxu0 0
        %4207 = vmatmul.mubr.bf16.gmra.mrb[0].mxu0 %v4010
        %v4208 = vpop.f32.mrb[0].mxu0
        %v4209 = vadd.f32 %v723, %v4208
        %v4210 = vpop.f32.mrb[0].mxu0
        %v4211 = vpop.f32.mrb[0].mxu0
        %v4212 = vadd.f32 %v727, %v4211
        %v4213 = vpop.f32.mrb[0].mxu0
        %4214 = vmatprep.mubr.bf16.mxu0 0
        %4215 = vmatmul.mubr.bf16.gmra.mrb[0].mxu0 %v4011
        %v4216 = vpop.f32.mrb[0].mxu0
        %v4217 = vadd.f32 %v733, %v4216
        %v4218 = vpop.f32.mrb[0].mxu0
        %v4219 = vpop.f32.mrb[0].mxu0
        %v4220 = vadd.f32 %v737, %v4219
        %v4221 = vpop.f32.mrb[0].mxu0
        %4222 = vmatprep.mubr.bf16.mxu0 0
        %4223 = vmatmul.mubr.bf16.gmra.mrb[0].mxu0 %v4012
        %v4224 = vpop.f32.mrb[0].mxu0
        %v4225 = vadd.f32 %v743, %v4224
        %v4226 = vpop.f32.mrb[0].mxu0
        %v4227 = vpop.f32.mrb[0].mxu0
        %v4228 = vadd.f32 %v747, %v4227
        %v4229 = vpop.f32.mrb[0].mxu0
        %4230 = vmatprep.mubr.bf16.mxu0 0
        %4231 = vmatmul.mubr.bf16.gmra.mrb[0].mxu0 %v4013
        %v4232 = vpop.f32.mrb[0].mxu0
        %v4233 = vadd.f32 %v753, %v4232
        %v4234 = vpop.f32.mrb[0].mxu0
        %v4235 = vpop.f32.mrb[0].mxu0
        %v4236 = vadd.f32 %v757, %v4235
        %v4237 = vpop.f32.mrb[0].mxu0
        %4238 = vdwg.mxu0
        %v4239 = vld [vmem:[%s6] sm:$0x1]
        %v4241 = vlaneseq
        %v4242 = vshrl.u32 %v4241, 7
        %v4243 = vsub.s32 0, %v4242
        %v4244 = vrot.slane %v4239, %v4243
        %v4246 = vadd.f32 %v4113, %v4244
        %v4247 = vadd.f32 %v4116, %v4244
        %v4248 = vadd.f32 %v4121, %v4244
        %v4249 = vadd.f32 %v4124, %v4244
        %v4250 = vadd.f32 %v4129, %v4244
        %v4251 = vadd.f32 %v4132, %v4244
        %v4252 = vadd.f32 %v4137, %v4244
        %v4253 = vadd.f32 %v4140, %v4244
        %v4254 = vadd.f32 %v4145, %v4244
        %v4255 = vadd.f32 %v4148, %v4244
        %v4256 = vadd.f32 %v4153, %v4244
        %v4257 = vadd.f32 %v4156, %v4244
        %v4258 = vadd.f32 %v4161, %v4244
        %v4259 = vadd.f32 %v4164, %v4244
        %v4260 = vadd.f32 %v4169, %v4244
        %v4261 = vadd.f32 %v4172, %v4244
        %v4262 = vadd.f32 %v4177, %v4244
        %v4263 = vadd.f32 %v4180, %v4244
        %v4264 = vadd.f32 %v4185, %v4244
        %v4265 = vadd.f32 %v4188, %v4244
        %v4266 = vadd.f32 %v4193, %v4244
        %v4267 = vadd.f32 %v4196, %v4244
        %v4268 = vadd.f32 %v4201, %v4244
        %v4269 = vadd.f32 %v4204, %v4244
        %v4270 = vadd.f32 %v4209, %v4244
        %v4271 = vadd.f32 %v4212, %v4244
        %v4272 = vadd.f32 %v4217, %v4244
        %v4273 = vadd.f32 %v4220, %v4244
        %v4274 = vadd.f32 %v4225, %v4244
        %v4275 = vadd.f32 %v4228, %v4244
        %v4276 = vadd.f32 %v4233, %v4244
        %v4277 = vadd.f32 %v4236, %v4244
        %v4278 = vmax.f32 %v4246, 0.0
        %v4279 = vmax.f32 %v4247, 0.0
        %v4280 = vmax.f32 %v4248, 0.0
        %v4281 = vmax.f32 %v4249, 0.0
        %v4282 = vmax.f32 %v4250, 0.0
        %v4283 = vmax.f32 %v4251, 0.0
        %v4284 = vmax.f32 %v4252, 0.0
        %v4285 = vmax.f32 %v4253, 0.0
        %v4286 = vmax.f32 %v4254, 0.0
        %v4287 = vmax.f32 %v4255, 0.0
        %v4288 = vmax.f32 %v4256, 0.0
        %v4289 = vmax.f32 %v4257, 0.0
        %v4290 = vmax.f32 %v4258, 0.0
        %v4291 = vmax.f32 %v4259, 0.0
        %v4292 = vmax.f32 %v4260, 0.0
        %v4293 = vmax.f32 %v4261, 0.0
        %v4294 = vmax.f32 %v4262, 0.0
        %v4295 = vmax.f32 %v4263, 0.0
        %v4296 = vmax.f32 %v4264, 0.0
        %v4297 = vmax.f32 %v4265, 0.0
        %v4298 = vmax.f32 %v4266, 0.0
        %v4299 = vmax.f32 %v4267, 0.0
        %v4300 = vmax.f32 %v4268, 0.0
        %v4301 = vmax.f32 %v4269, 0.0
        %v4302 = vmax.f32 %v4270, 0.0
        %v4303 = vmax.f32 %v4271, 0.0
        %v4304 = vmax.f32 %v4272, 0.0
        %v4305 = vmax.f32 %v4273, 0.0
        %v4306 = vmax.f32 %v4274, 0.0
        %v4307 = vmax.f32 %v4275, 0.0
        %v4308 = vmax.f32 %v4276, 0.0
        %v4309 = vmax.f32 %v4277, 0.0
        %4310 = vst [vmem:[%s340] sm:$0xff] %v4278
        %4311 = vst [vmem:[%s340 + $0x8] sm:$0xff] %v4279
        %4312 = vst [vmem:[%s340 + $0x10] sm:$0xff] %v4280
        %4313 = vst [vmem:[%s340 + $0x18] sm:$0xff] %v4281
        %4314 = vst [vmem:[%s340 + $0x20] sm:$0xff] %v4282
        %4315 = vst [vmem:[%s340 + $0x28] sm:$0xff] %v4283
        %4316 = vst [vmem:[%s340 + $0x30] sm:$0xff] %v4284
        %4317 = vst [vmem:[%s340 + $0x38] sm:$0xff] %v4285
        %4318 = vst [vmem:[%s340 + $0x40] sm:$0xff] %v4286
        %4319 = vst [vmem:[%s340 + $0x48] sm:$0xff] %v4287
        %4320 = vst [vmem:[%s340 + $0x50] sm:$0xff] %v4288
        %4321 = vst [vmem:[%s340 + $0x58] sm:$0xff] %v4289
        %4322 = vst [vmem:[%s340 + $0x60] sm:$0xff] %v4290
        %4323 = vst [vmem:[%s340 + $0x68] sm:$0xff] %v4291
        %4324 = vst [vmem:[%s340 + $0x70] sm:$0xff] %v4292
        %4325 = vst [vmem:[%s340 + $0x78] sm:$0xff] %v4293
        %4326 = vst [vmem:[%s340 + $0x80] sm:$0xff] %v4294
        %4327 = vst [vmem:[%s340 + $0x88] sm:$0xff] %v4295
        %4328 = vst [vmem:[%s340 + $0x90] sm:$0xff] %v4296
        %4329 = vst [vmem:[%s340 + $0x98] sm:$0xff] %v4297
        %4330 = vst [vmem:[%s340 + $0xa0] sm:$0xff] %v4298
        %4331 = vst [vmem:[%s340 + $0xa8] sm:$0xff] %v4299
        %4332 = vst [vmem:[%s340 + $0xb0] sm:$0xff] %v4300
        %4333 = vst [vmem:[%s340 + $0xb8] sm:$0xff] %v4301
        %4334 = vst [vmem:[%s340 + $0xc0] sm:$0xff] %v4302
        %4335 = vst [vmem:[%s340 + $0xc8] sm:$0xff] %v4303
        %4336 = vst [vmem:[%s340 + $0xd0] sm:$0xff] %v4304
        %4337 = vst [vmem:[%s340 + $0xd8] sm:$0xff] %v4305
        %4338 = vst [vmem:[%s340 + $0xe0] sm:$0xff] %v4306
        %4339 = vst [vmem:[%s340 + $0xe8] sm:$0xff] %v4307
        %4340 = vst [vmem:[%s340 + $0xf0] sm:$0xff] %v4308
        %4341 = vst [vmem:[%s340 + $0xf8] sm:$0xff] %v4309
        %s4342 = sand.u32 %s186, 1
        %s4343 = scalar_lea.sflag [#allocation5], %s4342
        %s4344 = sand.u32 %s186, 1
        %s4345 = smul.addr %s4344, 256
        %s4346 = scalar_lea.vmem [#allocation11], %s4345
        // Predicated region
        $region65: #{tpu_custom_call.1} parent=47 // pred_check
          %p4347 = pneg %p196
        $region66: #{tpu_custom_call.1} parent=47 // pred_check_branch
          %4349 = sbr.rel (%p4347) target = $region68
        $region67: #{tpu_custom_call.1} parent=47 // pred_region
          %s4351 = ssub.s32 4096, 4096
          %4352 = vsyncadd %s4343, %s4351
          %s4353 = smul.addr %s26, 32
          %s4354 = smul.addr %s4353, 128
          %s4355 = scalar_lea.hbm %s7, %s4354
          %s4356 = sshll.u32 %s4346, 4
          %s4357 = int_to_ptr.vmem [resolvable:$true] %s4356
          %4362 = dma.vmem_to_hbm [thread:$0]  %s4357, 4096, %s4355, %s4343, 128, 128, 8
        $region68: #{tpu_custom_call.1} parent=47 // pred_fallthru
          _
      $region48: #{tpu_custom_call.1} parent=5 // pred_fallthru
        _
      %p4363 = scmp.le.s32.totalorder 2, %s21
      // Predicated region
      $region69: #{tpu_custom_call.1} parent=5 // pred_check
        %p4364 = pneg %p4363
      $region70: #{tpu_custom_call.1} parent=5 // pred_check_branch
        %4366 = sbr.rel (%p4364) target = $region72
      $region71: #{tpu_custom_call.1} parent=5 // pred_region
        %s4367 = ssub.s32 %s21, 2
        // Predicated region
        $region73: #{tpu_custom_call.1} parent=71 // pred_check
          %p4368 = pneg %p202
        $region74: #{tpu_custom_call.1} parent=71 // pred_check_branch
          %4370 = sbr.rel (%p4368) target = $region76
        $region75: #{tpu_custom_call.1} parent=71 // pred_region
          %s4371 = sand.u32 %s187, 1
          %s4372 = scalar_lea.sflag [#allocation5], %s4371
          %s4373 = sand.u32 %s187, 1
          %s4374 = smul.addr %s4373, 256
          %s4375 = scalar_lea.vmem [#allocation11], %s4374
          %4376 = dma.done %s4372, 4096
        $region76: #{tpu_custom_call.1} parent=71 // pred_fallthru
          _
      $region72: #{tpu_custom_call.1} parent=5 // pred_fallthru
        _
    $region6: #{tpu_custom_call.1} parent=1 // loop_footer
      %s25 = sadd.s32 1, %s21
    $region7: #{tpu_custom_call.1} parent=1 // loop_footer_branch
      %20 = sbr.rel target = $region3
    $region8: #{tpu_custom_call.1} parent=1 // loop_exit
      _
    %4377 = vsyncpa [#allocation4], 1
    %s4378 = scalar_lea.sflag [#allocation4], 1
    %4379 = vsyncpa %s4378, 1
    %4380 = vsyncpa [#allocation7], 1
    %4381 = vsyncpa [#allocation10], 1
    %4382 = vsyncpa [#allocation5], 1
    %s4383 = scalar_lea.sflag [#allocation5], 1
    %4384 = vsyncpa %s4383, 1

</llo_original>
